<compile_context>
chip_gen: v7x
topology: tpu7x:2x2x1
jax: 0.10.0
libtpu: 0.0.40
codegen_flags: <defaults>
</compile_context>

<pallas_src>
import functools

import jax
import jax.numpy as jnp
from jax.experimental import pallas as pl
from jax.experimental.pallas import tpu as pltpu

INPUT_DIM = 384
ENC_DIMS = [INPUT_DIM, 512, 256, 128, 64, 2]
DEC_DIMS = [2, 64, 128, 256, 512, INPUT_DIM]
N_LINEAR = 10                      # 5 encoder + 5 decoder Linear layers
BOTT_PAD = 128                     # bottleneck padded 2 -> 128 lanes (lane-dense)

# kernel-side layer layout (after padding + fusion):
#   0..3 : encoder trunk 384->512->256->128->64 (ReLU after each)
#   4    : bottleneck head 64->128 (zero-padded 64->2; output only)
#   5    : fused (64->2)·(2->64) decoder entry (ReLU after)
#   6..9 : decoder trunk 64->128->256->512->384 (ReLU / Sigmoid on last)
N_MATMUL = 10
IDX_BOTT = 4
IDX_FUSE = 5


def autoencoder_kernel(x_ref, *refs):
    """refs = (w0..w9, b0..b9, bottleneck_ref, reconstruction_ref).

    Weights are bf16 (in, out); biases are f32 (1, out). Activations are bf16
    into every dot; accumulation is f32 on the MXU.
    """
    w = refs[:N_MATMUL]
    b = refs[N_MATMUL:2 * N_MATMUL]
    bott_ref = refs[2 * N_MATMUL]
    recon_ref = refs[2 * N_MATMUL + 1]

    h = x_ref[...].astype(jnp.bfloat16)              # (tile_b, 384) bf16

    # ----- encoder trunk: 384 -> 512 -> 256 -> 128 -> 64, ReLU each -----
    for i in range(IDX_BOTT):
        acc = jnp.dot(h, w[i][...], preferred_element_type=jnp.float32)
        acc = acc + b[i][...]
        h = jnp.maximum(acc, 0.0).astype(jnp.bfloat16)

    # ----- bottleneck output: 64 -> 128 padded head, lane-dense bf16 store ----
    # Weight/bias columns 2..127 are exactly zero, so padded lanes are 0.
    bott = jnp.dot(h, w[IDX_BOTT][...], preferred_element_type=jnp.float32)
    bott = bott + b[IDX_BOTT][...]
    bott_ref[...] = bott.astype(bott_ref.dtype)

    # ----- fused (64->2)·(2->64) decoder entry (no nonlinearity in between) ---
    acc = jnp.dot(h, w[IDX_FUSE][...], preferred_element_type=jnp.float32)
    acc = acc + b[IDX_FUSE][...]
    h = jnp.maximum(acc, 0.0).astype(jnp.bfloat16)   # decoder's first ReLU

    # ----- decoder trunk: 64 -> 128 -> 256 -> 512 -> 384 -----
    for j in range(IDX_FUSE + 1, N_MATMUL):
        acc = jnp.dot(h, w[j][...], preferred_element_type=jnp.float32)
        acc = acc + b[j][...]
        if j < N_MATMUL - 1:
            h = jnp.maximum(acc, 0.0).astype(jnp.bfloat16)
        else:
            recon_ref[...] = jax.nn.sigmoid(acc).astype(recon_ref.dtype)


def _pick_tile_b(batch):
    """Pick the batch tile: big enough to amortise per-step overhead / MXU
    fill-drain, small enough to keep >=2 grid steps (v7x has 2 TensorCores),
    and exactly-sized (sublane-rounded) for small batches so no pad is needed."""
    if batch >= 1024:
        return 512
    if batch >= 512:
        return 256
    if batch >= 256:
        return 128
    return max(8, ((batch + 7) // 8) * 8)


@functools.partial(jax.jit, static_argnames=("tile_b",))
def autoencoder_forward(x, weights, biases, *, tile_b=None):
    """x: (B, 384) f32.  weights[i]: (in_i, out_i) f32.  biases[i]: (1, out_i) f32.

    Returns (bottleneck (B, 2) f32, reconstruction (B, 384) f32).
    """
    B, F = x.shape
    assert F == INPUT_DIM
    if tile_b is None:
        tile_b = _pick_tile_b(B)

    # --- parameter prep: pad bottleneck head, fuse 64->2 / 2->64, cast bf16 ---
    ws = [w.astype(jnp.float32) for w in weights]
    bs = [jnp.asarray(bb, jnp.float32).reshape(1, -1) for bb in biases]
    w_e5, b_e5 = ws[4], bs[4]                        # 64 -> 2
    w_d1, b_d1 = ws[5], bs[5]                        # 2 -> 64
    w_bott = jnp.pad(w_e5, ((0, 0), (0, BOTT_PAD - w_e5.shape[1])))
    b_bott = jnp.pad(b_e5, ((0, 0), (0, BOTT_PAD - b_e5.shape[1])))
    w_fuse = w_e5 @ w_d1                             # (64, 64)
    b_fuse = b_e5 @ w_d1 + b_d1                      # (1, 64)
    kw = ws[:4] + [w_bott, w_fuse] + ws[6:]
    kb = bs[:4] + [b_bott, b_fuse] + bs[6:]
    kw = [w.astype(jnp.bfloat16) for w in kw]

    # --- batch padding only when the tile does not divide B (small tail) ---
    b_pad = pl.cdiv(B, tile_b) * tile_b
    xp = jnp.pad(x, ((0, b_pad - B), (0, 0))) if b_pad != B else x
    grid = (b_pad // tile_b,)

    # Input: tile over batch (f32; cast to bf16 inside the kernel).
    # Weights/biases: full array, constant block index -> VMEM-resident.
    x_spec = pl.BlockSpec((tile_b, INPUT_DIM), lambda i: (i, 0))
    w_specs = [pl.BlockSpec(w.shape, lambda i: (0, 0)) for w in kw]
    b_specs = [pl.BlockSpec(bb.shape, lambda i: (0, 0)) for bb in kb]

    out_shapes = (
        jax.ShapeDtypeStruct((b_pad, BOTT_PAD), jnp.bfloat16),   # padded bottleneck
        jax.ShapeDtypeStruct((b_pad, INPUT_DIM), jnp.float32),   # reconstruction
    )
    out_specs = (
        pl.BlockSpec((tile_b, BOTT_PAD), lambda i: (i, 0)),
        pl.BlockSpec((tile_b, INPUT_DIM), lambda i: (i, 0)),
    )

    flops = 2 * b_pad * sum(w.shape[0] * w.shape[1] for w in kw)
    bytes_accessed = (
        xp.size * 4
        + sum(w.size * 2 for w in kw) + sum(bb.size * 4 for bb in kb)
        + b_pad * BOTT_PAD * 2 + b_pad * INPUT_DIM * 4)

    bott_blk, recon = pl.pallas_call(
        autoencoder_kernel,
        out_shape=out_shapes,
        grid=grid,
        in_specs=[x_spec] + w_specs + b_specs,
        out_specs=out_specs,
        compiler_params=pltpu.CompilerParams(
            # batch axis is independent -> shards across v7x's 2 TensorCores
            dimension_semantics=("parallel",),
        ),
        cost_estimate=pl.CostEstimate(
            flops=flops,
            transcendentals=b_pad * INPUT_DIM,       # sigmoid on the last layer
            bytes_accessed=bytes_accessed,
        ),
    )(xp, *kw, *kb)

    if b_pad != B:
        bott_blk = bott_blk[:B]
        recon = recon[:B]
    bottleneck = bott_blk[:, :2].astype(jnp.float32)
    return bottleneck, recon


def init_params(key):
    """Deterministic init mimicking torch.nn.Linear defaults (uniform ±1/sqrt(fan_in)).

    Weights are stored pre-transposed as (in, out) so the kernel does x @ W.
    """
    dims_in = ENC_DIMS[:-1] + DEC_DIMS[:-1]
    dims_out = ENC_DIMS[1:] + DEC_DIMS[1:]
    weights, biases = [], []
    for din, dout in zip(dims_in, dims_out):
        key, kw, kb = jax.random.split(key, 3)
        bound = 1.0 / jnp.sqrt(jnp.float32(din))
        weights.append(jax.random.uniform(kw, (din, dout), jnp.float32, -bound, bound))
        biases.append(jax.random.uniform(kb, (1, dout), jnp.float32, -bound, bound))
    return weights, biases


def reference_forward(x, weights, biases):
    """Plain-JAX reference: same bf16-operand / f32-accumulate recipe, unfused."""
    h = x.astype(jnp.bfloat16)
    acc = None
    for i in range(5):
        acc = jnp.dot(h, weights[i].astype(jnp.bfloat16),
                      preferred_element_type=jnp.float32) + biases[i].reshape(1, -1)
        if i < 4:
            acc = jnp.maximum(acc, 0.0)
        h = acc.astype(jnp.bfloat16)
    bott = acc
    for j in range(5, 10):
        acc = jnp.dot(h, weights[j].astype(jnp.bfloat16),
                      preferred_element_type=jnp.float32) + biases[j].reshape(1, -1)
        if j < 9:
            h = jnp.maximum(acc, 0.0).astype(jnp.bfloat16)
        else:
            acc = jax.nn.sigmoid(acc)
    return bott, acc


if __name__ == "__main__":
    key = jax.random.PRNGKey(0)
    k_params, k_x = jax.random.split(key)

    weights, biases = init_params(k_params)

    B = 16  # small demo batch; tile picker sizes a single 16-row tile (no pad)
    x = jax.random.normal(k_x, (B, INPUT_DIM), jnp.float32)

    bottleneck, reconstruction = autoencoder_forward(x, weights, biases)
    jax.block_until_ready((bottleneck, reconstruction))

    # correctness check against the plain-JAX reference (same bf16/f32 recipe;
    # kernel additionally fuses the bottleneck pair and stores bf16 bottleneck)
    ref_bott, ref_recon = reference_forward(x, weights, biases)
    assert bottleneck.shape == (B, 2)
    assert reconstruction.shape == (B, INPUT_DIM)
    assert jnp.allclose(bottleneck, ref_bott, atol=1e-2, rtol=1e-2)
    assert jnp.allclose(reconstruction, ref_recon, atol=1e-2, rtol=1e-2)

    print("KERNEL_OK")
</pallas_src>

<mosaic_0001>
module attributes {stable_mosaic.version = 11 : i64} {
  func.func @autoencoder_kernel(%arg0: i32, %arg1: memref<16x384xf32, #tpu.memory_space<vmem>>, %arg2: memref<384x512xbf16, #tpu.memory_space<vmem>>, %arg3: memref<512x256xbf16, #tpu.memory_space<vmem>>, %arg4: memref<256x128xbf16, #tpu.memory_space<vmem>>, %arg5: memref<128x64xbf16, #tpu.memory_space<vmem>>, %arg6: memref<64x128xbf16, #tpu.memory_space<vmem>>, %arg7: memref<64x64xbf16, #tpu.memory_space<vmem>>, %arg8: memref<64x128xbf16, #tpu.memory_space<vmem>>, %arg9: memref<128x256xbf16, #tpu.memory_space<vmem>>, %arg10: memref<256x512xbf16, #tpu.memory_space<vmem>>, %arg11: memref<512x384xbf16, #tpu.memory_space<vmem>>, %arg12: memref<1x512xf32, #tpu.memory_space<vmem>>, %arg13: memref<1x256xf32, #tpu.memory_space<vmem>>, %arg14: memref<1x128xf32, #tpu.memory_space<vmem>>, %arg15: memref<1x64xf32, #tpu.memory_space<vmem>>, %arg16: memref<1x128xf32, #tpu.memory_space<vmem>>, %arg17: memref<1x64xf32, #tpu.memory_space<vmem>>, %arg18: memref<1x128xf32, #tpu.memory_space<vmem>>, %arg19: memref<1x256xf32, #tpu.memory_space<vmem>>, %arg20: memref<1x512xf32, #tpu.memory_space<vmem>>, %arg21: memref<1x384xf32, #tpu.memory_space<vmem>>, %arg22: memref<16x128xbf16, #tpu.memory_space<vmem>>, %arg23: memref<16x384xf32, #tpu.memory_space<vmem>>) attributes {dimension_semantics = [#tpu.dimension_semantics<parallel>], iteration_bounds = array<i64: 1>, scalar_prefetch = 0 : i64, scratch_operands = 0 : i64, tpu.core_type = #tpu.core_type<tc>, window_params = [{transform_indices = @transform_0, window_bounds = array<i64: 16, 384>}, {pipeline_mode = #tpu.pipeline_mode<synchronous>, transform_indices = @transform_1, window_bounds = array<i64: 384, 512>}, {pipeline_mode = #tpu.pipeline_mode<synchronous>, transform_indices = @transform_2, window_bounds = array<i64: 512, 256>}, {pipeline_mode = #tpu.pipeline_mode<synchronous>, transform_indices = @transform_3, window_bounds = array<i64: 256, 128>}, {pipeline_mode = #tpu.pipeline_mode<synchronous>, transform_indices = @transform_4, window_bounds = array<i64: 128, 64>}, {pipeline_mode = #tpu.pipeline_mode<synchronous>, transform_indices = @transform_5, window_bounds = array<i64: 64, 128>}, {pipeline_mode = #tpu.pipeline_mode<synchronous>, transform_indices = @transform_6, window_bounds = array<i64: 64, 64>}, {pipeline_mode = #tpu.pipeline_mode<synchronous>, transform_indices = @transform_7, window_bounds = array<i64: 64, 128>}, {pipeline_mode = #tpu.pipeline_mode<synchronous>, transform_indices = @transform_8, window_bounds = array<i64: 128, 256>}, {pipeline_mode = #tpu.pipeline_mode<synchronous>, transform_indices = @transform_9, window_bounds = array<i64: 256, 512>}, {pipeline_mode = #tpu.pipeline_mode<synchronous>, transform_indices = @transform_10, window_bounds = array<i64: 512, 384>}, {pipeline_mode = #tpu.pipeline_mode<synchronous>, transform_indices = @transform_11, window_bounds = array<i64: 1, 512>}, {pipeline_mode = #tpu.pipeline_mode<synchronous>, transform_indices = @transform_12, window_bounds = array<i64: 1, 256>}, {pipeline_mode = #tpu.pipeline_mode<synchronous>, transform_indices = @transform_13, window_bounds = array<i64: 1, 128>}, {pipeline_mode = #tpu.pipeline_mode<synchronous>, transform_indices = @transform_14, window_bounds = array<i64: 1, 64>}, {pipeline_mode = #tpu.pipeline_mode<synchronous>, transform_indices = @transform_15, window_bounds = array<i64: 1, 128>}, {pipeline_mode = #tpu.pipeline_mode<synchronous>, transform_indices = @transform_16, window_bounds = array<i64: 1, 64>}, {pipeline_mode = #tpu.pipeline_mode<synchronous>, transform_indices = @transform_17, window_bounds = array<i64: 1, 128>}, {pipeline_mode = #tpu.pipeline_mode<synchronous>, transform_indices = @transform_18, window_bounds = array<i64: 1, 256>}, {pipeline_mode = #tpu.pipeline_mode<synchronous>, transform_indices = @transform_19, window_bounds = array<i64: 1, 512>}, {pipeline_mode = #tpu.pipeline_mode<synchronous>, transform_indices = @transform_20, window_bounds = array<i64: 1, 384>}, {transform_indices = @transform_21, window_bounds = array<i64: 16, 128>}, {transform_indices = @transform_22, window_bounds = array<i64: 16, 384>}]} {
    %c0 = arith.constant 0 : index
    %c0_0 = arith.constant 0 : index
    %0 = vector.load %arg1[%c0, %c0_0] : memref<16x384xf32, #tpu.memory_space<vmem>>, vector<16x384xf32>
    %1 = arith.truncf %0 : vector<16x384xf32> to vector<16x384xbf16>
    %c0_1 = arith.constant 0 : index
    %c0_2 = arith.constant 0 : index
    %2 = vector.load %arg2[%c0_1, %c0_2] : memref<384x512xbf16, #tpu.memory_space<vmem>>, vector<384x512xbf16>
    %cst = arith.constant dense<0.000000e+00> : vector<16x512xf32>
    %3 = tpu.matmul %1, %2, %cst {dimension_numbers = #tpu.dot_dimension_numbers<[1], [0], [0], [1], [0, 0, 1, 1], [], []>} : vector<16x384xbf16>, vector<384x512xbf16>, vector<16x512xf32> -> vector<16x512xf32>
    %c0_3 = arith.constant 0 : index
    %c0_4 = arith.constant 0 : index
    %4 = vector.load %arg12[%c0_3, %c0_4] : memref<1x512xf32, #tpu.memory_space<vmem>>, vector<1x512xf32>
    %5 = vector.broadcast %4 : vector<1x512xf32> to vector<16x512xf32>
    %6 = arith.addf %3, %5 : vector<16x512xf32>
    %cst_5 = arith.constant 0.000000e+00 : f32
    %7 = vector.broadcast %cst_5 : f32 to vector<16x512xf32>
    %8 = arith.maximumf %6, %7 : vector<16x512xf32>
    %9 = arith.truncf %8 : vector<16x512xf32> to vector<16x512xbf16>
    %c0_6 = arith.constant 0 : index
    %c0_7 = arith.constant 0 : index
    %10 = vector.load %arg3[%c0_6, %c0_7] : memref<512x256xbf16, #tpu.memory_space<vmem>>, vector<512x256xbf16>
    %cst_8 = arith.constant dense<0.000000e+00> : vector<16x256xf32>
    %11 = tpu.matmul %9, %10, %cst_8 {dimension_numbers = #tpu.dot_dimension_numbers<[1], [0], [0], [1], [0, 0, 1, 1], [], []>} : vector<16x512xbf16>, vector<512x256xbf16>, vector<16x256xf32> -> vector<16x256xf32>
    %c0_9 = arith.constant 0 : index
    %c0_10 = arith.constant 0 : index
    %12 = vector.load %arg13[%c0_9, %c0_10] : memref<1x256xf32, #tpu.memory_space<vmem>>, vector<1x256xf32>
    %13 = vector.broadcast %12 : vector<1x256xf32> to vector<16x256xf32>
    %14 = arith.addf %11, %13 : vector<16x256xf32>
    %cst_11 = arith.constant 0.000000e+00 : f32
    %15 = vector.broadcast %cst_11 : f32 to vector<16x256xf32>
    %16 = arith.maximumf %14, %15 : vector<16x256xf32>
    %17 = arith.truncf %16 : vector<16x256xf32> to vector<16x256xbf16>
    %c0_12 = arith.constant 0 : index
    %c0_13 = arith.constant 0 : index
    %18 = vector.load %arg4[%c0_12, %c0_13] : memref<256x128xbf16, #tpu.memory_space<vmem>>, vector<256x128xbf16>
    %cst_14 = arith.constant dense<0.000000e+00> : vector<16x128xf32>
    %19 = tpu.matmul %17, %18, %cst_14 {dimension_numbers = #tpu.dot_dimension_numbers<[1], [0], [0], [1], [0, 0, 1, 1], [], []>} : vector<16x256xbf16>, vector<256x128xbf16>, vector<16x128xf32> -> vector<16x128xf32>
    %c0_15 = arith.constant 0 : index
    %c0_16 = arith.constant 0 : index
    %20 = vector.load %arg14[%c0_15, %c0_16] : memref<1x128xf32, #tpu.memory_space<vmem>>, vector<1x128xf32>
    %21 = vector.broadcast %20 : vector<1x128xf32> to vector<16x128xf32>
    %22 = arith.addf %19, %21 : vector<16x128xf32>
    %cst_17 = arith.constant 0.000000e+00 : f32
    %23 = vector.broadcast %cst_17 : f32 to vector<16x128xf32>
    %24 = arith.maximumf %22, %23 : vector<16x128xf32>
    %25 = arith.truncf %24 : vector<16x128xf32> to vector<16x128xbf16>
    %c0_18 = arith.constant 0 : index
    %c0_19 = arith.constant 0 : index
    %26 = vector.load %arg5[%c0_18, %c0_19] : memref<128x64xbf16, #tpu.memory_space<vmem>>, vector<128x64xbf16>
    %cst_20 = arith.constant dense<0.000000e+00> : vector<16x64xf32>
    %27 = tpu.matmul %25, %26, %cst_20 {dimension_numbers = #tpu.dot_dimension_numbers<[1], [0], [0], [1], [0, 0, 1, 1], [], []>} : vector<16x128xbf16>, vector<128x64xbf16>, vector<16x64xf32> -> vector<16x64xf32>
    %c0_21 = arith.constant 0 : index
    %c0_22 = arith.constant 0 : index
    %28 = vector.load %arg15[%c0_21, %c0_22] : memref<1x64xf32, #tpu.memory_space<vmem>>, vector<1x64xf32>
    %29 = vector.broadcast %28 : vector<1x64xf32> to vector<16x64xf32>
    %30 = arith.addf %27, %29 : vector<16x64xf32>
    %cst_23 = arith.constant 0.000000e+00 : f32
    %31 = vector.broadcast %cst_23 : f32 to vector<16x64xf32>
    %32 = arith.maximumf %30, %31 : vector<16x64xf32>
    %33 = arith.truncf %32 : vector<16x64xf32> to vector<16x64xbf16>
    %c0_24 = arith.constant 0 : index
    %c0_25 = arith.constant 0 : index
    %34 = vector.load %arg6[%c0_24, %c0_25] : memref<64x128xbf16, #tpu.memory_space<vmem>>, vector<64x128xbf16>
    %cst_26 = arith.constant dense<0.000000e+00> : vector<16x128xf32>
    %35 = tpu.matmul %33, %34, %cst_26 {dimension_numbers = #tpu.dot_dimension_numbers<[1], [0], [0], [1], [0, 0, 1, 1], [], []>} : vector<16x64xbf16>, vector<64x128xbf16>, vector<16x128xf32> -> vector<16x128xf32>
    %c0_27 = arith.constant 0 : index
    %c0_28 = arith.constant 0 : index
    %36 = vector.load %arg16[%c0_27, %c0_28] : memref<1x128xf32, #tpu.memory_space<vmem>>, vector<1x128xf32>
    %37 = vector.broadcast %36 : vector<1x128xf32> to vector<16x128xf32>
    %38 = arith.addf %35, %37 : vector<16x128xf32>
    %39 = arith.truncf %38 : vector<16x128xf32> to vector<16x128xbf16>
    %c0_29 = arith.constant 0 : index
    %c0_30 = arith.constant 0 : index
    %40 = vector.load %arg22[%c0_29, %c0_30] : memref<16x128xbf16, #tpu.memory_space<vmem>>, vector<16x128xbf16>
    tpu.vector_store %arg22[%c0_29, %c0_30], %39 {strides = array<i32>} : memref<16x128xbf16, #tpu.memory_space<vmem>>, vector<16x128xbf16>,
    %c0_31 = arith.constant 0 : index
    %c0_32 = arith.constant 0 : index
    %41 = vector.load %arg7[%c0_31, %c0_32] : memref<64x64xbf16, #tpu.memory_space<vmem>>, vector<64x64xbf16>
    %cst_33 = arith.constant dense<0.000000e+00> : vector<16x64xf32>
    %42 = tpu.matmul %33, %41, %cst_33 {dimension_numbers = #tpu.dot_dimension_numbers<[1], [0], [0], [1], [0, 0, 1, 1], [], []>} : vector<16x64xbf16>, vector<64x64xbf16>, vector<16x64xf32> -> vector<16x64xf32>
    %c0_34 = arith.constant 0 : index
    %c0_35 = arith.constant 0 : index
    %43 = vector.load %arg17[%c0_34, %c0_35] : memref<1x64xf32, #tpu.memory_space<vmem>>, vector<1x64xf32>
    %44 = vector.broadcast %43 : vector<1x64xf32> to vector<16x64xf32>
    %45 = arith.addf %42, %44 : vector<16x64xf32>
    %cst_36 = arith.constant 0.000000e+00 : f32
    %46 = vector.broadcast %cst_36 : f32 to vector<16x64xf32>
    %47 = arith.maximumf %45, %46 : vector<16x64xf32>
    %48 = arith.truncf %47 : vector<16x64xf32> to vector<16x64xbf16>
    %c0_37 = arith.constant 0 : index
    %c0_38 = arith.constant 0 : index
    %49 = vector.load %arg8[%c0_37, %c0_38] : memref<64x128xbf16, #tpu.memory_space<vmem>>, vector<64x128xbf16>
    %cst_39 = arith.constant dense<0.000000e+00> : vector<16x128xf32>
    %50 = tpu.matmul %48, %49, %cst_39 {dimension_numbers = #tpu.dot_dimension_numbers<[1], [0], [0], [1], [0, 0, 1, 1], [], []>} : vector<16x64xbf16>, vector<64x128xbf16>, vector<16x128xf32> -> vector<16x128xf32>
    %c0_40 = arith.constant 0 : index
    %c0_41 = arith.constant 0 : index
    %51 = vector.load %arg18[%c0_40, %c0_41] : memref<1x128xf32, #tpu.memory_space<vmem>>, vector<1x128xf32>
    %52 = vector.broadcast %51 : vector<1x128xf32> to vector<16x128xf32>
    %53 = arith.addf %50, %52 : vector<16x128xf32>
    %cst_42 = arith.constant 0.000000e+00 : f32
    %54 = vector.broadcast %cst_42 : f32 to vector<16x128xf32>
    %55 = arith.maximumf %53, %54 : vector<16x128xf32>
    %56 = arith.truncf %55 : vector<16x128xf32> to vector<16x128xbf16>
    %c0_43 = arith.constant 0 : index
    %c0_44 = arith.constant 0 : index
    %57 = vector.load %arg9[%c0_43, %c0_44] : memref<128x256xbf16, #tpu.memory_space<vmem>>, vector<128x256xbf16>
    %cst_45 = arith.constant dense<0.000000e+00> : vector<16x256xf32>
    %58 = tpu.matmul %56, %57, %cst_45 {dimension_numbers = #tpu.dot_dimension_numbers<[1], [0], [0], [1], [0, 0, 1, 1], [], []>} : vector<16x128xbf16>, vector<128x256xbf16>, vector<16x256xf32> -> vector<16x256xf32>
    %c0_46 = arith.constant 0 : index
    %c0_47 = arith.constant 0 : index
    %59 = vector.load %arg19[%c0_46, %c0_47] : memref<1x256xf32, #tpu.memory_space<vmem>>, vector<1x256xf32>
    %60 = vector.broadcast %59 : vector<1x256xf32> to vector<16x256xf32>
    %61 = arith.addf %58, %60 : vector<16x256xf32>
    %cst_48 = arith.constant 0.000000e+00 : f32
    %62 = vector.broadcast %cst_48 : f32 to vector<16x256xf32>
    %63 = arith.maximumf %61, %62 : vector<16x256xf32>
    %64 = arith.truncf %63 : vector<16x256xf32> to vector<16x256xbf16>
    %c0_49 = arith.constant 0 : index
    %c0_50 = arith.constant 0 : index
    %65 = vector.load %arg10[%c0_49, %c0_50] : memref<256x512xbf16, #tpu.memory_space<vmem>>, vector<256x512xbf16>
    %cst_51 = arith.constant dense<0.000000e+00> : vector<16x512xf32>
    %66 = tpu.matmul %64, %65, %cst_51 {dimension_numbers = #tpu.dot_dimension_numbers<[1], [0], [0], [1], [0, 0, 1, 1], [], []>} : vector<16x256xbf16>, vector<256x512xbf16>, vector<16x512xf32> -> vector<16x512xf32>
    %c0_52 = arith.constant 0 : index
    %c0_53 = arith.constant 0 : index
    %67 = vector.load %arg20[%c0_52, %c0_53] : memref<1x512xf32, #tpu.memory_space<vmem>>, vector<1x512xf32>
    %68 = vector.broadcast %67 : vector<1x512xf32> to vector<16x512xf32>
    %69 = arith.addf %66, %68 : vector<16x512xf32>
    %cst_54 = arith.constant 0.000000e+00 : f32
    %70 = vector.broadcast %cst_54 : f32 to vector<16x512xf32>
    %71 = arith.maximumf %69, %70 : vector<16x512xf32>
    %72 = arith.truncf %71 : vector<16x512xf32> to vector<16x512xbf16>
    %c0_55 = arith.constant 0 : index
    %c0_56 = arith.constant 0 : index
    %73 = vector.load %arg11[%c0_55, %c0_56] : memref<512x384xbf16, #tpu.memory_space<vmem>>, vector<512x384xbf16>
    %cst_57 = arith.constant dense<0.000000e+00> : vector<16x384xf32>
    %74 = tpu.matmul %72, %73, %cst_57 {dimension_numbers = #tpu.dot_dimension_numbers<[1], [0], [0], [1], [0, 0, 1, 1], [], []>} : vector<16x512xbf16>, vector<512x384xbf16>, vector<16x384xf32> -> vector<16x384xf32>
    %c0_58 = arith.constant 0 : index
    %c0_59 = arith.constant 0 : index
    %75 = vector.load %arg21[%c0_58, %c0_59] : memref<1x384xf32, #tpu.memory_space<vmem>>, vector<1x384xf32>
    %76 = vector.broadcast %75 : vector<1x384xf32> to vector<16x384xf32>
    %77 = arith.addf %74, %76 : vector<16x384xf32>
    %78 = arith.negf %77 : vector<16x384xf32>
    %79 = math.exp %78 : vector<16x384xf32>
    %cst_60 = arith.constant 1.000000e+00 : f32
    %80 = vector.broadcast %cst_60 : f32 to vector<16x384xf32>
    %81 = arith.addf %80, %79 : vector<16x384xf32>
    %82 = arith.divf %80, %81 : vector<16x384xf32>
    %c0_61 = arith.constant 0 : index
    %c0_62 = arith.constant 0 : index
    %83 = vector.load %arg23[%c0_61, %c0_62] : memref<16x384xf32, #tpu.memory_space<vmem>>, vector<16x384xf32>
    tpu.vector_store %arg23[%c0_61, %c0_62], %82 {strides = array<i32>} : memref<16x384xf32, #tpu.memory_space<vmem>>, vector<16x384xf32>,
    return
  }
  func.func @transform_0(%arg0: i32) -> (i32, i32) {
    %c0_i32 = arith.constant 0 : i32
    %c0_i32_0 = arith.constant 0 : i32
    return %arg0, %c0_i32 : i32, i32
  }
  func.func @transform_1(%arg0: i32) -> (i32, i32) {
    %c0_i32 = arith.constant 0 : i32
    %c0_i32_0 = arith.constant 0 : i32
    %c0_i32_1 = arith.constant 0 : i32
    return %c0_i32, %c0_i32_0 : i32, i32
  }
  func.func @transform_2(%arg0: i32) -> (i32, i32) {
    %c0_i32 = arith.constant 0 : i32
    %c0_i32_0 = arith.constant 0 : i32
    %c0_i32_1 = arith.constant 0 : i32
    return %c0_i32, %c0_i32_0 : i32, i32
  }
  func.func @transform_3(%arg0: i32) -> (i32, i32) {
    %c0_i32 = arith.constant 0 : i32
    %c0_i32_0 = arith.constant 0 : i32
    %c0_i32_1 = arith.constant 0 : i32
    return %c0_i32, %c0_i32_0 : i32, i32
  }
  func.func @transform_4(%arg0: i32) -> (i32, i32) {
    %c0_i32 = arith.constant 0 : i32
    %c0_i32_0 = arith.constant 0 : i32
    %c0_i32_1 = arith.constant 0 : i32
    return %c0_i32, %c0_i32_0 : i32, i32
  }
  func.func @transform_5(%arg0: i32) -> (i32, i32) {
    %c0_i32 = arith.constant 0 : i32
    %c0_i32_0 = arith.constant 0 : i32
    %c0_i32_1 = arith.constant 0 : i32
    return %c0_i32, %c0_i32_0 : i32, i32
  }
  func.func @transform_6(%arg0: i32) -> (i32, i32) {
    %c0_i32 = arith.constant 0 : i32
    %c0_i32_0 = arith.constant 0 : i32
    %c0_i32_1 = arith.constant 0 : i32
    return %c0_i32, %c0_i32_0 : i32, i32
  }
  func.func @transform_7(%arg0: i32) -> (i32, i32) {
    %c0_i32 = arith.constant 0 : i32
    %c0_i32_0 = arith.constant 0 : i32
    %c0_i32_1 = arith.constant 0 : i32
    return %c0_i32, %c0_i32_0 : i32, i32
  }
  func.func @transform_8(%arg0: i32) -> (i32, i32) {
    %c0_i32 = arith.constant 0 : i32
    %c0_i32_0 = arith.constant 0 : i32
    %c0_i32_1 = arith.constant 0 : i32
    return %c0_i32, %c0_i32_0 : i32, i32
  }
  func.func @transform_9(%arg0: i32) -> (i32, i32) {
    %c0_i32 = arith.constant 0 : i32
    %c0_i32_0 = arith.constant 0 : i32
    %c0_i32_1 = arith.constant 0 : i32
    return %c0_i32, %c0_i32_0 : i32, i32
  }
  func.func @transform_10(%arg0: i32) -> (i32, i32) {
    %c0_i32 = arith.constant 0 : i32
    %c0_i32_0 = arith.constant 0 : i32
    %c0_i32_1 = arith.constant 0 : i32
    return %c0_i32, %c0_i32_0 : i32, i32
  }
  func.func @transform_11(%arg0: i32) -> (i32, i32) {
    %c0_i32 = arith.constant 0 : i32
    %c0_i32_0 = arith.constant 0 : i32
    %c0_i32_1 = arith.constant 0 : i32
    return %c0_i32, %c0_i32_0 : i32, i32
  }
  func.func @transform_12(%arg0: i32) -> (i32, i32) {
    %c0_i32 = arith.constant 0 : i32
    %c0_i32_0 = arith.constant 0 : i32
    %c0_i32_1 = arith.constant 0 : i32
    return %c0_i32, %c0_i32_0 : i32, i32
  }
  func.func @transform_13(%arg0: i32) -> (i32, i32) {
    %c0_i32 = arith.constant 0 : i32
    %c0_i32_0 = arith.constant 0 : i32
    %c0_i32_1 = arith.constant 0 : i32
    return %c0_i32, %c0_i32_0 : i32, i32
  }
  func.func @transform_14(%arg0: i32) -> (i32, i32) {
    %c0_i32 = arith.constant 0 : i32
    %c0_i32_0 = arith.constant 0 : i32
    %c0_i32_1 = arith.constant 0 : i32
    return %c0_i32, %c0_i32_0 : i32, i32
  }
  func.func @transform_15(%arg0: i32) -> (i32, i32) {
    %c0_i32 = arith.constant 0 : i32
    %c0_i32_0 = arith.constant 0 : i32
    %c0_i32_1 = arith.constant 0 : i32
    return %c0_i32, %c0_i32_0 : i32, i32
  }
  func.func @transform_16(%arg0: i32) -> (i32, i32) {
    %c0_i32 = arith.constant 0 : i32
    %c0_i32_0 = arith.constant 0 : i32
    %c0_i32_1 = arith.constant 0 : i32
    return %c0_i32, %c0_i32_0 : i32, i32
  }
  func.func @transform_17(%arg0: i32) -> (i32, i32) {
    %c0_i32 = arith.constant 0 : i32
    %c0_i32_0 = arith.constant 0 : i32
    %c0_i32_1 = arith.constant 0 : i32
    return %c0_i32, %c0_i32_0 : i32, i32
  }
  func.func @transform_18(%arg0: i32) -> (i32, i32) {
    %c0_i32 = arith.constant 0 : i32
    %c0_i32_0 = arith.constant 0 : i32
    %c0_i32_1 = arith.constant 0 : i32
    return %c0_i32, %c0_i32_0 : i32, i32
  }
  func.func @transform_19(%arg0: i32) -> (i32, i32) {
    %c0_i32 = arith.constant 0 : i32
    %c0_i32_0 = arith.constant 0 : i32
    %c0_i32_1 = arith.constant 0 : i32
    return %c0_i32, %c0_i32_0 : i32, i32
  }
  func.func @transform_20(%arg0: i32) -> (i32, i32) {
    %c0_i32 = arith.constant 0 : i32
    %c0_i32_0 = arith.constant 0 : i32
    %c0_i32_1 = arith.constant 0 : i32
    return %c0_i32, %c0_i32_0 : i32, i32
  }
  func.func @transform_21(%arg0: i32) -> (i32, i32) {
    %c0_i32 = arith.constant 0 : i32
    %c0_i32_0 = arith.constant 0 : i32
    return %arg0, %c0_i32 : i32, i32
  }
  func.func @transform_22(%arg0: i32) -> (i32, i32) {
    %c0_i32 = arith.constant 0 : i32
    %c0_i32_0 = arith.constant 0 : i32
    return %arg0, %c0_i32 : i32, i32
  }
}

</mosaic_0001>

<llo_original>
// kernel: autoencoder_forward.1
$region0: #{autoencoder_forward.1}
  #allocation0 [shape = 'u32[]', space=smem, size = 0x4, offset = 0x4, fixed_abs, tag = 'smem constant byte address 0x4 - core index']
  #allocation1 [shape = 'u32[144,128]{1,0:T(1,128)}', space=vmem, size = 0x12000, scoped, tag = 'internal scratch']
  %s0 = inlined_call_operand.vmem [shape: f32[16,384], index: 0, kind: input, shape index: {}]
  %s1 = inlined_call_operand.vmem [shape: bf16[384,512], index: 1, kind: input, shape index: {}]
  %s2 = inlined_call_operand.vmem [shape: bf16[512,256], index: 2, kind: input, shape index: {}]
  %s3 = inlined_call_operand.vmem [shape: bf16[256,128], index: 3, kind: input, shape index: {}]
  %s4 = inlined_call_operand.vmem [shape: bf16[128,64], index: 4, kind: input, shape index: {}]
  %s5 = inlined_call_operand.vmem [shape: bf16[64,128], index: 5, kind: input, shape index: {}]
  %s6 = inlined_call_operand.vmem [shape: bf16[64,64], index: 6, kind: input, shape index: {}]
  %s7 = inlined_call_operand.vmem [shape: bf16[64,128], index: 7, kind: input, shape index: {}]
  %s8 = inlined_call_operand.vmem [shape: bf16[128,256], index: 8, kind: input, shape index: {}]
  %s9 = inlined_call_operand.vmem [shape: bf16[256,512], index: 9, kind: input, shape index: {}]
  %s10 = inlined_call_operand.vmem [shape: bf16[512,384], index: 10, kind: input, shape index: {}]
  %s11 = inlined_call_operand.vmem [shape: f32[1,512], index: 11, kind: input, shape index: {}]
  %s12 = inlined_call_operand.vmem [shape: f32[1,256], index: 12, kind: input, shape index: {}]
  %s13 = inlined_call_operand.vmem [shape: f32[1,128], index: 13, kind: input, shape index: {}]
  %s14 = inlined_call_operand.vmem [shape: f32[1,64], index: 14, kind: input, shape index: {}]
  %s15 = inlined_call_operand.vmem [shape: f32[1,128], index: 15, kind: input, shape index: {}]
  %s16 = inlined_call_operand.vmem [shape: f32[1,64], index: 16, kind: input, shape index: {}]
  %s17 = inlined_call_operand.vmem [shape: f32[1,128], index: 17, kind: input, shape index: {}]
  %s18 = inlined_call_operand.vmem [shape: f32[1,256], index: 18, kind: input, shape index: {}]
  %s19 = inlined_call_operand.vmem [shape: f32[1,512], index: 19, kind: input, shape index: {}]
  %s20 = inlined_call_operand.vmem [shape: f32[1,384], index: 20, kind: input, shape index: {}]
  %s21 = inlined_call_operand.vmem [shape: bf16[16,128], index: 21, kind: output, shape index: {0}]
  %s22 = inlined_call_operand.hbm [shape: f32[16,384], index: 22, kind: output, shape index: {1}]
  %23 = xla_tuple %s21, %s22
  %s24 = sld [smem:[#allocation0]]
  $region102: #{autoencoder_forward.1} parent=0
    _
  %s26 = ssub.s32 1, %s24
  %s27 = scalar_select 0, %s26, %s24
  $region1: #{autoencoder_forward.1} parent=0
    #allocation2 [shape = 'u8[24576]{0}', space=vmem, size = 0x6000, scoped, tag = 'output window, operand 1, single buffered']
    #allocation3 [shape = 's32[1]{0}', space=sflag, size = 0x4, scoped, tag = 'scoped memory for autoencoder_forward.1']
    %28 = vsyncpa [#allocation3], 0
    // Predicated region
    $region2: #{autoencoder_forward.1} parent=1 // pred_check
      _
    $region3: #{autoencoder_forward.1} parent=1 // pred_check_branch
      %30 = sbr.rel (0) target = $region5
    $region4: #{autoencoder_forward.1} parent=1 // pred_region
      _
    $region5: #{autoencoder_forward.1} parent=1 // pred_fallthru
      _
    // Predicated region
    $region6: #{autoencoder_forward.1} parent=1 // pred_check
      _
    $region7: #{autoencoder_forward.1} parent=1 // pred_check_branch
      %32 = sbr.rel (0) target = $region9
    $region8: #{autoencoder_forward.1} parent=1 // pred_region
      _
    $region9: #{autoencoder_forward.1} parent=1 // pred_fallthru
      _
    // Predicated region
    $region10: #{autoencoder_forward.1} parent=1 // pred_check
      _
    $region11: #{autoencoder_forward.1} parent=1 // pred_check_branch
      %34 = sbr.rel (0) target = $region13
    $region12: #{autoencoder_forward.1} parent=1 // pred_region
      _
    $region13: #{autoencoder_forward.1} parent=1 // pred_fallthru
      _
    // Predicated region
    $region14: #{autoencoder_forward.1} parent=1 // pred_check
      _
    $region15: #{autoencoder_forward.1} parent=1 // pred_check_branch
      %36 = sbr.rel (0) target = $region17
    $region16: #{autoencoder_forward.1} parent=1 // pred_region
      _
    $region17: #{autoencoder_forward.1} parent=1 // pred_fallthru
      _
    // Predicated region
    $region18: #{autoencoder_forward.1} parent=1 // pred_check
      _
    $region19: #{autoencoder_forward.1} parent=1 // pred_check_branch
      %38 = sbr.rel (0) target = $region21
    $region20: #{autoencoder_forward.1} parent=1 // pred_region
      _
    $region21: #{autoencoder_forward.1} parent=1 // pred_fallthru
      _
    // Predicated region
    $region22: #{autoencoder_forward.1} parent=1 // pred_check
      _
    $region23: #{autoencoder_forward.1} parent=1 // pred_check_branch
      %40 = sbr.rel (0) target = $region25
    $region24: #{autoencoder_forward.1} parent=1 // pred_region
      _
    $region25: #{autoencoder_forward.1} parent=1 // pred_fallthru
      _
    // Predicated region
    $region26: #{autoencoder_forward.1} parent=1 // pred_check
      _
    $region27: #{autoencoder_forward.1} parent=1 // pred_check_branch
      %42 = sbr.rel (0) target = $region29
    $region28: #{autoencoder_forward.1} parent=1 // pred_region
      _
    $region29: #{autoencoder_forward.1} parent=1 // pred_fallthru
      _
    // Predicated region
    $region30: #{autoencoder_forward.1} parent=1 // pred_check
      _
    $region31: #{autoencoder_forward.1} parent=1 // pred_check_branch
      %44 = sbr.rel (0) target = $region33
    $region32: #{autoencoder_forward.1} parent=1 // pred_region
      _
    $region33: #{autoencoder_forward.1} parent=1 // pred_fallthru
      _
    // Predicated region
    $region34: #{autoencoder_forward.1} parent=1 // pred_check
      _
    $region35: #{autoencoder_forward.1} parent=1 // pred_check_branch
      %46 = sbr.rel (0) target = $region37
    $region36: #{autoencoder_forward.1} parent=1 // pred_region
      _
    $region37: #{autoencoder_forward.1} parent=1 // pred_fallthru
      _
    // Predicated region
    $region38: #{autoencoder_forward.1} parent=1 // pred_check
      _
    $region39: #{autoencoder_forward.1} parent=1 // pred_check_branch
      %48 = sbr.rel (0) target = $region41
    $region40: #{autoencoder_forward.1} parent=1 // pred_region
      _
    $region41: #{autoencoder_forward.1} parent=1 // pred_fallthru
      _
    // Predicated region
    $region42: #{autoencoder_forward.1} parent=1 // pred_check
      _
    $region43: #{autoencoder_forward.1} parent=1 // pred_check_branch
      %50 = sbr.rel (0) target = $region45
    $region44: #{autoencoder_forward.1} parent=1 // pred_region
      _
    $region45: #{autoencoder_forward.1} parent=1 // pred_fallthru
      _
    // Predicated region
    $region46: #{autoencoder_forward.1} parent=1 // pred_check
      _
    $region47: #{autoencoder_forward.1} parent=1 // pred_check_branch
      %52 = sbr.rel (0) target = $region49
    $region48: #{autoencoder_forward.1} parent=1 // pred_region
      _
    $region49: #{autoencoder_forward.1} parent=1 // pred_fallthru
      _
    // Predicated region
    $region50: #{autoencoder_forward.1} parent=1 // pred_check
      _
    $region51: #{autoencoder_forward.1} parent=1 // pred_check_branch
      %54 = sbr.rel (0) target = $region53
    $region52: #{autoencoder_forward.1} parent=1 // pred_region
      _
    $region53: #{autoencoder_forward.1} parent=1 // pred_fallthru
      _
    // Predicated region
    $region54: #{autoencoder_forward.1} parent=1 // pred_check
      _
    $region55: #{autoencoder_forward.1} parent=1 // pred_check_branch
      %56 = sbr.rel (0) target = $region57
    $region56: #{autoencoder_forward.1} parent=1 // pred_region
      _
    $region57: #{autoencoder_forward.1} parent=1 // pred_fallthru
      _
    // Predicated region
    $region58: #{autoencoder_forward.1} parent=1 // pred_check
      _
    $region59: #{autoencoder_forward.1} parent=1 // pred_check_branch
      %58 = sbr.rel (0) target = $region61
    $region60: #{autoencoder_forward.1} parent=1 // pred_region
      _
    $region61: #{autoencoder_forward.1} parent=1 // pred_fallthru
      _
    // Predicated region
    $region62: #{autoencoder_forward.1} parent=1 // pred_check
      _
    $region63: #{autoencoder_forward.1} parent=1 // pred_check_branch
      %60 = sbr.rel (0) target = $region65
    $region64: #{autoencoder_forward.1} parent=1 // pred_region
      _
    $region65: #{autoencoder_forward.1} parent=1 // pred_fallthru
      _
    // Predicated region
    $region66: #{autoencoder_forward.1} parent=1 // pred_check
      _
    $region67: #{autoencoder_forward.1} parent=1 // pred_check_branch
      %62 = sbr.rel (0) target = $region69
    $region68: #{autoencoder_forward.1} parent=1 // pred_region
      _
    $region69: #{autoencoder_forward.1} parent=1 // pred_fallthru
      _
    // Predicated region
    $region70: #{autoencoder_forward.1} parent=1 // pred_check
      _
    $region71: #{autoencoder_forward.1} parent=1 // pred_check_branch
      %64 = sbr.rel (0) target = $region73
    $region72: #{autoencoder_forward.1} parent=1 // pred_region
      _
    $region73: #{autoencoder_forward.1} parent=1 // pred_fallthru
      _
    // Predicated region
    $region74: #{autoencoder_forward.1} parent=1 // pred_check
      _
    $region75: #{autoencoder_forward.1} parent=1 // pred_check_branch
      %66 = sbr.rel (0) target = $region77
    $region76: #{autoencoder_forward.1} parent=1 // pred_region
      _
    $region77: #{autoencoder_forward.1} parent=1 // pred_fallthru
      _
    // Predicated region
    $region78: #{autoencoder_forward.1} parent=1 // pred_check
      _
    $region79: #{autoencoder_forward.1} parent=1 // pred_check_branch
      %68 = sbr.rel (0) target = $region81
    $region80: #{autoencoder_forward.1} parent=1 // pred_region
      _
    $region81: #{autoencoder_forward.1} parent=1 // pred_fallthru
      _
    // Predicated region
    $region82: #{autoencoder_forward.1} parent=1 // pred_check
      _
    $region83: #{autoencoder_forward.1} parent=1 // pred_check_branch
      %70 = sbr.rel (0) target = $region85
    $region84: #{autoencoder_forward.1} parent=1 // pred_region
      _
    $region85: #{autoencoder_forward.1} parent=1 // pred_fallthru
      _
    %v72 = vld [vmem:[%s0] sm:$0xff]
    %v73 = vld [vmem:[%s0 + $0x8] sm:$0xff]
    %v74 = vld [vmem:[%s0 + $0x10] sm:$0xff]
    %v75 = vld [vmem:[%s0 + $0x18] sm:$0xff]
    %v76 = vld [vmem:[%s0 + $0x20] sm:$0xff]
    %v77 = vld [vmem:[%s0 + $0x28] sm:$0xff]
    %v78 = vpack.c.bf16 %v75, %v72
    %v79 = vpack.c.bf16 %v76, %v73
    %v80 = vpack.c.bf16 %v77, %v74
    %v81 = vld [vmem:[%s1] sm:$0xff]
    %v82 = vld [vmem:[%s1 + $0x8] sm:$0xff]
    %v83 = vld [vmem:[%s1 + $0x10] sm:$0xff]
    %v84 = vld [vmem:[%s1 + $0x18] sm:$0xff]
    %v85 = vld [vmem:[%s1 + $0x20] sm:$0xff]
    %v86 = vld [vmem:[%s1 + $0x28] sm:$0xff]
    %v87 = vld [vmem:[%s1 + $0x30] sm:$0xff]
    %v88 = vld [vmem:[%s1 + $0x38] sm:$0xff]
    %v89 = vld [vmem:[%s1 + $0x40] sm:$0xff]
    %v90 = vld [vmem:[%s1 + $0x48] sm:$0xff]
    %v91 = vld [vmem:[%s1 + $0x50] sm:$0xff]
    %v92 = vld [vmem:[%s1 + $0x58] sm:$0xff]
    %v93 = vld [vmem:[%s1 + $0x60] sm:$0xff]
    %v94 = vld [vmem:[%s1 + $0x68] sm:$0xff]
    %v95 = vld [vmem:[%s1 + $0x70] sm:$0xff]
    %v96 = vld [vmem:[%s1 + $0x78] sm:$0xff]
    %v97 = vld [vmem:[%s1 + $0x80] sm:$0xff]
    %v98 = vld [vmem:[%s1 + $0x88] sm:$0xff]
    %v99 = vld [vmem:[%s1 + $0x90] sm:$0xff]
    %v100 = vld [vmem:[%s1 + $0x98] sm:$0xff]
    %v101 = vld [vmem:[%s1 + $0xa0] sm:$0xff]
    %v102 = vld [vmem:[%s1 + $0xa8] sm:$0xff]
    %v103 = vld [vmem:[%s1 + $0xb0] sm:$0xff]
    %v104 = vld [vmem:[%s1 + $0xb8] sm:$0xff]
    %v105 = vld [vmem:[%s1 + $0xc0] sm:$0xff]
    %v106 = vld [vmem:[%s1 + $0xc8] sm:$0xff]
    %v107 = vld [vmem:[%s1 + $0xd0] sm:$0xff]
    %v108 = vld [vmem:[%s1 + $0xd8] sm:$0xff]
    %v109 = vld [vmem:[%s1 + $0xe0] sm:$0xff]
    %v110 = vld [vmem:[%s1 + $0xe8] sm:$0xff]
    %v111 = vld [vmem:[%s1 + $0xf0] sm:$0xff]
    %v112 = vld [vmem:[%s1 + $0xf8] sm:$0xff]
    %v113 = vld [vmem:[%s1 + $0x100] sm:$0xff]
    %v114 = vld [vmem:[%s1 + $0x108] sm:$0xff]
    %v115 = vld [vmem:[%s1 + $0x110] sm:$0xff]
    %v116 = vld [vmem:[%s1 + $0x118] sm:$0xff]
    %v117 = vld [vmem:[%s1 + $0x120] sm:$0xff]
    %v118 = vld [vmem:[%s1 + $0x128] sm:$0xff]
    %v119 = vld [vmem:[%s1 + $0x130] sm:$0xff]
    %v120 = vld [vmem:[%s1 + $0x138] sm:$0xff]
    %v121 = vld [vmem:[%s1 + $0x140] sm:$0xff]
    %v122 = vld [vmem:[%s1 + $0x148] sm:$0xff]
    %v123 = vld [vmem:[%s1 + $0x150] sm:$0xff]
    %v124 = vld [vmem:[%s1 + $0x158] sm:$0xff]
    %v125 = vld [vmem:[%s1 + $0x160] sm:$0xff]
    %v126 = vld [vmem:[%s1 + $0x168] sm:$0xff]
    %v127 = vld [vmem:[%s1 + $0x170] sm:$0xff]
    %v128 = vld [vmem:[%s1 + $0x178] sm:$0xff]
    %v129 = vld [vmem:[%s1 + $0x180] sm:$0xff]
    %v130 = vld [vmem:[%s1 + $0x188] sm:$0xff]
    %v131 = vld [vmem:[%s1 + $0x190] sm:$0xff]
    %v132 = vld [vmem:[%s1 + $0x198] sm:$0xff]
    %v133 = vld [vmem:[%s1 + $0x1a0] sm:$0xff]
    %v134 = vld [vmem:[%s1 + $0x1a8] sm:$0xff]
    %v135 = vld [vmem:[%s1 + $0x1b0] sm:$0xff]
    %v136 = vld [vmem:[%s1 + $0x1b8] sm:$0xff]
    %v137 = vld [vmem:[%s1 + $0x1c0] sm:$0xff]
    %v138 = vld [vmem:[%s1 + $0x1c8] sm:$0xff]
    %v139 = vld [vmem:[%s1 + $0x1d0] sm:$0xff]
    %v140 = vld [vmem:[%s1 + $0x1d8] sm:$0xff]
    %v141 = vld [vmem:[%s1 + $0x1e0] sm:$0xff]
    %v142 = vld [vmem:[%s1 + $0x1e8] sm:$0xff]
    %v143 = vld [vmem:[%s1 + $0x1f0] sm:$0xff]
    %v144 = vld [vmem:[%s1 + $0x1f8] sm:$0xff]
    %v145 = vld [vmem:[%s1 + $0x200] sm:$0xff]
    %v146 = vld [vmem:[%s1 + $0x208] sm:$0xff]
    %v147 = vld [vmem:[%s1 + $0x210] sm:$0xff]
    %v148 = vld [vmem:[%s1 + $0x218] sm:$0xff]
    %v149 = vld [vmem:[%s1 + $0x220] sm:$0xff]
    %v150 = vld [vmem:[%s1 + $0x228] sm:$0xff]
    %v151 = vld [vmem:[%s1 + $0x230] sm:$0xff]
    %v152 = vld [vmem:[%s1 + $0x238] sm:$0xff]
    %v153 = vld [vmem:[%s1 + $0x240] sm:$0xff]
    %v154 = vld [vmem:[%s1 + $0x248] sm:$0xff]
    %v155 = vld [vmem:[%s1 + $0x250] sm:$0xff]
    %v156 = vld [vmem:[%s1 + $0x258] sm:$0xff]
    %v157 = vld [vmem:[%s1 + $0x260] sm:$0xff]
    %v158 = vld [vmem:[%s1 + $0x268] sm:$0xff]
    %v159 = vld [vmem:[%s1 + $0x270] sm:$0xff]
    %v160 = vld [vmem:[%s1 + $0x278] sm:$0xff]
    %v161 = vld [vmem:[%s1 + $0x280] sm:$0xff]
    %v162 = vld [vmem:[%s1 + $0x288] sm:$0xff]
    %v163 = vld [vmem:[%s1 + $0x290] sm:$0xff]
    %v164 = vld [vmem:[%s1 + $0x298] sm:$0xff]
    %v165 = vld [vmem:[%s1 + $0x2a0] sm:$0xff]
    %v166 = vld [vmem:[%s1 + $0x2a8] sm:$0xff]
    %v167 = vld [vmem:[%s1 + $0x2b0] sm:$0xff]
    %v168 = vld [vmem:[%s1 + $0x2b8] sm:$0xff]
    %v169 = vld [vmem:[%s1 + $0x2c0] sm:$0xff]
    %v170 = vld [vmem:[%s1 + $0x2c8] sm:$0xff]
    %v171 = vld [vmem:[%s1 + $0x2d0] sm:$0xff]
    %v172 = vld [vmem:[%s1 + $0x2d8] sm:$0xff]
    %v173 = vld [vmem:[%s1 + $0x2e0] sm:$0xff]
    %v174 = vld [vmem:[%s1 + $0x2e8] sm:$0xff]
    %v175 = vld [vmem:[%s1 + $0x2f0] sm:$0xff]
    %v176 = vld [vmem:[%s1 + $0x2f8] sm:$0xff]
    %v177 = vld [vmem:[%s11] sm:$0xf]
    %v179 = vlaneseq
    %v180 = vshrl.u32 %v179, 7
    %v181 = vsub.s32 0, %v180
    %v182 = vrot.slane %v177, %v181
    %v183 = vlaneseq
    %v184 = vshrl.u32 %v183, 7
    %v185 = vsub.s32 1, %v184
    %v186 = vrot.slane %v177, %v185
    %v187 = vlaneseq
    %v188 = vshrl.u32 %v187, 7
    %v189 = vsub.s32 2, %v188
    %v190 = vrot.slane %v177, %v189
    %v191 = vlaneseq
    %v192 = vshrl.u32 %v191, 7
    %v193 = vsub.s32 3, %v192
    %v194 = vrot.slane %v177, %v193
    %v295 = vunpack.c.l.b16 %v81
    %v296 = vunpack.c.h.b16 %v81
    %v297 = vunpack.c.l.b16 %v82
    %v298 = vunpack.c.h.b16 %v82
    %v299 = vunpack.c.l.b16 %v83
    %v300 = vunpack.c.h.b16 %v83
    %v301 = vunpack.c.l.b16 %v84
    %v302 = vunpack.c.h.b16 %v84
    %v303 = vunpack.c.l.b16 %v85
    %v304 = vunpack.c.h.b16 %v85
    %v305 = vunpack.c.l.b16 %v86
    %v306 = vunpack.c.h.b16 %v86
    %v307 = vunpack.c.l.b16 %v87
    %v308 = vunpack.c.h.b16 %v87
    %v309 = vunpack.c.l.b16 %v88
    %v310 = vunpack.c.h.b16 %v88
    %v311 = vunpack.c.l.b16 %v89
    %v312 = vunpack.c.h.b16 %v89
    %v313 = vunpack.c.l.b16 %v90
    %v314 = vunpack.c.h.b16 %v90
    %v315 = vunpack.c.l.b16 %v91
    %v316 = vunpack.c.h.b16 %v91
    %v317 = vunpack.c.l.b16 %v92
    %v318 = vunpack.c.h.b16 %v92
    %v319 = vunpack.c.l.b16 %v93
    %v320 = vunpack.c.h.b16 %v93
    %v321 = vunpack.c.l.b16 %v94
    %v322 = vunpack.c.h.b16 %v94
    %v323 = vunpack.c.l.b16 %v95
    %v324 = vunpack.c.h.b16 %v95
    %v325 = vunpack.c.l.b16 %v96
    %v326 = vunpack.c.h.b16 %v96
    %v327 = vunpack.c.l.b16 %v97
    %v328 = vunpack.c.h.b16 %v97
    %v329 = vunpack.c.l.b16 %v98
    %v330 = vunpack.c.h.b16 %v98
    %v331 = vunpack.c.l.b16 %v99
    %v332 = vunpack.c.h.b16 %v99
    %v333 = vunpack.c.l.b16 %v100
    %v334 = vunpack.c.h.b16 %v100
    %v335 = vunpack.c.l.b16 %v101
    %v336 = vunpack.c.h.b16 %v101
    %v337 = vunpack.c.l.b16 %v102
    %v338 = vunpack.c.h.b16 %v102
    %v339 = vunpack.c.l.b16 %v103
    %v340 = vunpack.c.h.b16 %v103
    %v341 = vunpack.c.l.b16 %v104
    %v342 = vunpack.c.h.b16 %v104
    %v343 = vunpack.c.l.b16 %v105
    %v344 = vunpack.c.h.b16 %v105
    %v345 = vunpack.c.l.b16 %v106
    %v346 = vunpack.c.h.b16 %v106
    %v347 = vunpack.c.l.b16 %v107
    %v348 = vunpack.c.h.b16 %v107
    %v349 = vunpack.c.l.b16 %v108
    %v350 = vunpack.c.h.b16 %v108
    %v351 = vunpack.c.l.b16 %v109
    %v352 = vunpack.c.h.b16 %v109
    %v353 = vunpack.c.l.b16 %v110
    %v354 = vunpack.c.h.b16 %v110
    %v355 = vunpack.c.l.b16 %v111
    %v356 = vunpack.c.h.b16 %v111
    %v357 = vunpack.c.l.b16 %v112
    %v358 = vunpack.c.h.b16 %v112
    %v359 = vunpack.c.l.b16 %v113
    %v360 = vunpack.c.h.b16 %v113
    %v361 = vunpack.c.l.b16 %v114
    %v362 = vunpack.c.h.b16 %v114
    %v363 = vunpack.c.l.b16 %v115
    %v364 = vunpack.c.h.b16 %v115
    %v365 = vunpack.c.l.b16 %v116
    %v366 = vunpack.c.h.b16 %v116
    %v367 = vunpack.c.l.b16 %v117
    %v368 = vunpack.c.h.b16 %v117
    %v369 = vunpack.c.l.b16 %v118
    %v370 = vunpack.c.h.b16 %v118
    %v371 = vunpack.c.l.b16 %v119
    %v372 = vunpack.c.h.b16 %v119
    %v373 = vunpack.c.l.b16 %v120
    %v374 = vunpack.c.h.b16 %v120
    %v375 = vunpack.c.l.b16 %v121
    %v376 = vunpack.c.h.b16 %v121
    %v377 = vunpack.c.l.b16 %v122
    %v378 = vunpack.c.h.b16 %v122
    %v379 = vunpack.c.l.b16 %v123
    %v380 = vunpack.c.h.b16 %v123
    %v381 = vunpack.c.l.b16 %v124
    %v382 = vunpack.c.h.b16 %v124
    %v383 = vunpack.c.l.b16 %v125
    %v384 = vunpack.c.h.b16 %v125
    %v385 = vunpack.c.l.b16 %v126
    %v386 = vunpack.c.h.b16 %v126
    %v387 = vunpack.c.l.b16 %v127
    %v388 = vunpack.c.h.b16 %v127
    %v389 = vunpack.c.l.b16 %v128
    %v390 = vunpack.c.h.b16 %v128
    %v391 = vunpack.c.l.b16 %v129
    %v392 = vunpack.c.h.b16 %v129
    %v393 = vunpack.c.l.b16 %v130
    %v394 = vunpack.c.h.b16 %v130
    %v395 = vunpack.c.l.b16 %v131
    %v396 = vunpack.c.h.b16 %v131
    %v397 = vunpack.c.l.b16 %v132
    %v398 = vunpack.c.h.b16 %v132
    %v399 = vunpack.c.l.b16 %v133
    %v400 = vunpack.c.h.b16 %v133
    %v401 = vunpack.c.l.b16 %v134
    %v402 = vunpack.c.h.b16 %v134
    %v403 = vunpack.c.l.b16 %v135
    %v404 = vunpack.c.h.b16 %v135
    %v405 = vunpack.c.l.b16 %v136
    %v406 = vunpack.c.h.b16 %v136
    %v407 = vunpack.c.l.b16 %v137
    %v408 = vunpack.c.h.b16 %v137
    %v409 = vunpack.c.l.b16 %v138
    %v410 = vunpack.c.h.b16 %v138
    %v411 = vunpack.c.l.b16 %v139
    %v412 = vunpack.c.h.b16 %v139
    %v413 = vunpack.c.l.b16 %v140
    %v414 = vunpack.c.h.b16 %v140
    %v415 = vunpack.c.l.b16 %v141
    %v416 = vunpack.c.h.b16 %v141
    %v417 = vunpack.c.l.b16 %v142
    %v418 = vunpack.c.h.b16 %v142
    %v419 = vunpack.c.l.b16 %v143
    %v420 = vunpack.c.h.b16 %v143
    %v421 = vunpack.c.l.b16 %v144
    %v422 = vunpack.c.h.b16 %v144
    %v423 = vunpack.c.l.b16 %v145
    %v424 = vunpack.c.h.b16 %v145
    %v425 = vunpack.c.l.b16 %v146
    %v426 = vunpack.c.h.b16 %v146
    %v427 = vunpack.c.l.b16 %v147
    %v428 = vunpack.c.h.b16 %v147
    %v429 = vunpack.c.l.b16 %v148
    %v430 = vunpack.c.h.b16 %v148
    %v431 = vunpack.c.l.b16 %v149
    %v432 = vunpack.c.h.b16 %v149
    %v433 = vunpack.c.l.b16 %v150
    %v434 = vunpack.c.h.b16 %v150
    %v435 = vunpack.c.l.b16 %v151
    %v436 = vunpack.c.h.b16 %v151
    %v437 = vunpack.c.l.b16 %v152
    %v438 = vunpack.c.h.b16 %v152
    %v439 = vunpack.c.l.b16 %v153
    %v440 = vunpack.c.h.b16 %v153
    %v441 = vunpack.c.l.b16 %v154
    %v442 = vunpack.c.h.b16 %v154
    %v443 = vunpack.c.l.b16 %v155
    %v444 = vunpack.c.h.b16 %v155
    %v445 = vunpack.c.l.b16 %v156
    %v446 = vunpack.c.h.b16 %v156
    %v447 = vunpack.c.l.b16 %v157
    %v448 = vunpack.c.h.b16 %v157
    %v449 = vunpack.c.l.b16 %v158
    %v450 = vunpack.c.h.b16 %v158
    %v451 = vunpack.c.l.b16 %v159
    %v452 = vunpack.c.h.b16 %v159
    %v453 = vunpack.c.l.b16 %v160
    %v454 = vunpack.c.h.b16 %v160
    %v455 = vunpack.c.l.b16 %v161
    %v456 = vunpack.c.h.b16 %v161
    %v457 = vunpack.c.l.b16 %v162
    %v458 = vunpack.c.h.b16 %v162
    %v459 = vunpack.c.l.b16 %v163
    %v460 = vunpack.c.h.b16 %v163
    %v461 = vunpack.c.l.b16 %v164
    %v462 = vunpack.c.h.b16 %v164
    %v463 = vunpack.c.l.b16 %v165
    %v464 = vunpack.c.h.b16 %v165
    %v465 = vunpack.c.l.b16 %v166
    %v466 = vunpack.c.h.b16 %v166
    %v467 = vunpack.c.l.b16 %v167
    %v468 = vunpack.c.h.b16 %v167
    %v469 = vunpack.c.l.b16 %v168
    %v470 = vunpack.c.h.b16 %v168
    %v471 = vunpack.c.l.b16 %v169
    %v472 = vunpack.c.h.b16 %v169
    %v473 = vunpack.c.l.b16 %v170
    %v474 = vunpack.c.h.b16 %v170
    %v475 = vunpack.c.l.b16 %v171
    %v476 = vunpack.c.h.b16 %v171
    %v477 = vunpack.c.l.b16 %v172
    %v478 = vunpack.c.h.b16 %v172
    %v479 = vunpack.c.l.b16 %v173
    %v480 = vunpack.c.h.b16 %v173
    %v481 = vunpack.c.l.b16 %v174
    %v482 = vunpack.c.h.b16 %v174
    %v483 = vunpack.c.l.b16 %v175
    %v484 = vunpack.c.h.b16 %v175
    %v485 = vunpack.c.l.b16 %v176
    %v486 = vunpack.c.h.b16 %v176
    %v487 = vpack.c.b16 %v299, %v295
    %v488 = vpack.c.b16 %v300, %v296
    %v489 = vpack.c.b16 %v301, %v297
    %v490 = vpack.c.b16 %v302, %v298
    %v491 = vpack.c.b16 %v307, %v303
    %v492 = vpack.c.b16 %v308, %v304
    %v493 = vpack.c.b16 %v309, %v305
    %v494 = vpack.c.b16 %v310, %v306
    %v495 = vpack.c.b16 %v315, %v311
    %v496 = vpack.c.b16 %v316, %v312
    %v497 = vpack.c.b16 %v317, %v313
    %v498 = vpack.c.b16 %v318, %v314
    %v499 = vpack.c.b16 %v323, %v319
    %v500 = vpack.c.b16 %v324, %v320
    %v501 = vpack.c.b16 %v325, %v321
    %v502 = vpack.c.b16 %v326, %v322
    %v503 = vpack.c.b16 %v331, %v327
    %v504 = vpack.c.b16 %v332, %v328
    %v505 = vpack.c.b16 %v333, %v329
    %v506 = vpack.c.b16 %v334, %v330
    %v507 = vpack.c.b16 %v339, %v335
    %v508 = vpack.c.b16 %v340, %v336
    %v509 = vpack.c.b16 %v341, %v337
    %v510 = vpack.c.b16 %v342, %v338
    %v511 = vpack.c.b16 %v347, %v343
    %v512 = vpack.c.b16 %v348, %v344
    %v513 = vpack.c.b16 %v349, %v345
    %v514 = vpack.c.b16 %v350, %v346
    %v515 = vpack.c.b16 %v355, %v351
    %v516 = vpack.c.b16 %v356, %v352
    %v517 = vpack.c.b16 %v357, %v353
    %v518 = vpack.c.b16 %v358, %v354
    %v519 = vpack.c.b16 %v363, %v359
    %v520 = vpack.c.b16 %v364, %v360
    %v521 = vpack.c.b16 %v365, %v361
    %v522 = vpack.c.b16 %v366, %v362
    %v523 = vpack.c.b16 %v371, %v367
    %v524 = vpack.c.b16 %v372, %v368
    %v525 = vpack.c.b16 %v373, %v369
    %v526 = vpack.c.b16 %v374, %v370
    %v527 = vpack.c.b16 %v379, %v375
    %v528 = vpack.c.b16 %v380, %v376
    %v529 = vpack.c.b16 %v381, %v377
    %v530 = vpack.c.b16 %v382, %v378
    %v531 = vpack.c.b16 %v387, %v383
    %v532 = vpack.c.b16 %v388, %v384
    %v533 = vpack.c.b16 %v389, %v385
    %v534 = vpack.c.b16 %v390, %v386
    %v535 = vpack.c.b16 %v395, %v391
    %v536 = vpack.c.b16 %v396, %v392
    %v537 = vpack.c.b16 %v397, %v393
    %v538 = vpack.c.b16 %v398, %v394
    %v539 = vpack.c.b16 %v403, %v399
    %v540 = vpack.c.b16 %v404, %v400
    %v541 = vpack.c.b16 %v405, %v401
    %v542 = vpack.c.b16 %v406, %v402
    %v543 = vpack.c.b16 %v411, %v407
    %v544 = vpack.c.b16 %v412, %v408
    %v545 = vpack.c.b16 %v413, %v409
    %v546 = vpack.c.b16 %v414, %v410
    %v547 = vpack.c.b16 %v419, %v415
    %v548 = vpack.c.b16 %v420, %v416
    %v549 = vpack.c.b16 %v421, %v417
    %v550 = vpack.c.b16 %v422, %v418
    %v551 = vpack.c.b16 %v427, %v423
    %v552 = vpack.c.b16 %v428, %v424
    %v553 = vpack.c.b16 %v429, %v425
    %v554 = vpack.c.b16 %v430, %v426
    %v555 = vpack.c.b16 %v435, %v431
    %v556 = vpack.c.b16 %v436, %v432
    %v557 = vpack.c.b16 %v437, %v433
    %v558 = vpack.c.b16 %v438, %v434
    %v559 = vpack.c.b16 %v443, %v439
    %v560 = vpack.c.b16 %v444, %v440
    %v561 = vpack.c.b16 %v445, %v441
    %v562 = vpack.c.b16 %v446, %v442
    %v563 = vpack.c.b16 %v451, %v447
    %v564 = vpack.c.b16 %v452, %v448
    %v565 = vpack.c.b16 %v453, %v449
    %v566 = vpack.c.b16 %v454, %v450
    %v567 = vpack.c.b16 %v459, %v455
    %v568 = vpack.c.b16 %v460, %v456
    %v569 = vpack.c.b16 %v461, %v457
    %v570 = vpack.c.b16 %v462, %v458
    %v571 = vpack.c.b16 %v467, %v463
    %v572 = vpack.c.b16 %v468, %v464
    %v573 = vpack.c.b16 %v469, %v465
    %v574 = vpack.c.b16 %v470, %v466
    %v575 = vpack.c.b16 %v475, %v471
    %v576 = vpack.c.b16 %v476, %v472
    %v577 = vpack.c.b16 %v477, %v473
    %v578 = vpack.c.b16 %v478, %v474
    %v579 = vpack.c.b16 %v483, %v479
    %v580 = vpack.c.b16 %v484, %v480
    %v581 = vpack.c.b16 %v485, %v481
    %v582 = vpack.c.b16 %v486, %v482
    %679 = vmatprep.subr.bf16.mxu0 %v488
    %680 = vmatpush1.bf16.msra.mxu0 %v487
    %681 = vmatprep.subr.bf16.mxu0 %v492
    %682 = vmatpush1.bf16.msra.mxu0 %v491
    %683 = vmatprep.subr.bf16.mxu0 %v496
    %684 = vmatpush1.bf16.msra.mxu0 %v495
    %685 = vmatprep.subr.bf16.mxu0 %v500
    %686 = vmatpush1.bf16.msra.mxu0 %v499
    %687 = vmatprep.subr.bf16.mxu0 %v504
    %688 = vmatpush1.bf16.msra.mxu0 %v503
    %689 = vmatprep.subr.bf16.mxu0 %v508
    %690 = vmatpush1.bf16.msra.mxu0 %v507
    %691 = vmatprep.subr.bf16.mxu0 %v512
    %692 = vmatpush1.bf16.msra.mxu0 %v511
    %693 = vmatprep.subr.bf16.mxu0 %v516
    %694 = vmatpush1.bf16.msra.mxu0 %v515
    %695 = vmatprep.subr.bf16.mxu0 %v520
    %696 = vmatpush1.bf16.msra.mxu0 %v519
    %697 = vmatprep.subr.bf16.mxu0 %v524
    %698 = vmatpush1.bf16.msra.mxu0 %v523
    %699 = vmatprep.subr.bf16.mxu0 %v528
    %700 = vmatpush1.bf16.msra.mxu0 %v527
    %701 = vmatprep.subr.bf16.mxu0 %v532
    %702 = vmatpush1.bf16.msra.mxu0 %v531
    %703 = vmatprep.subr.bf16.mxu0 %v536
    %704 = vmatpush1.bf16.msra.mxu0 %v535
    %705 = vmatprep.subr.bf16.mxu0 %v540
    %706 = vmatpush1.bf16.msra.mxu0 %v539
    %707 = vmatprep.subr.bf16.mxu0 %v544
    %708 = vmatpush1.bf16.msra.mxu0 %v543
    %709 = vmatprep.subr.bf16.mxu0 %v548
    %710 = vmatpush1.bf16.msra.mxu0 %v547
    %711 = vmatprep.mubr.bf16.mxu0 %v79
    %712 = vmatmul.mubr.bf16.gmra.mrb[0].mxu0 %v78
    %v713 = vpop.f32.mrb[0].mxu0
    %v714 = vadd.f32 %v182, %v713
    %v715 = vpop.f32.mrb[0].mxu0
    %v716 = vadd.f32 %v186, %v715
    %v717 = vpop.f32.mrb[0].mxu0
    %v718 = vadd.f32 %v182, %v717
    %v719 = vpop.f32.mrb[0].mxu0
    %v720 = vadd.f32 %v186, %v719
    %721 = vdwg.mxu0
    %722 = vmatprep.subr.bf16.mxu0 %v552
    %723 = vmatpush1.bf16.msra.mxu0 %v551
    %724 = vmatprep.subr.bf16.mxu0 %v556
    %725 = vmatpush1.bf16.msra.mxu0 %v555
    %726 = vmatprep.subr.bf16.mxu0 %v560
    %727 = vmatpush1.bf16.msra.mxu0 %v559
    %728 = vmatprep.subr.bf16.mxu0 %v564
    %729 = vmatpush1.bf16.msra.mxu0 %v563
    %730 = vmatprep.subr.bf16.mxu0 %v568
    %731 = vmatpush1.bf16.msra.mxu0 %v567
    %732 = vmatprep.subr.bf16.mxu0 %v572
    %733 = vmatpush1.bf16.msra.mxu0 %v571
    %734 = vmatprep.subr.bf16.mxu0 %v576
    %735 = vmatpush1.bf16.msra.mxu0 %v575
    %736 = vmatprep.subr.bf16.mxu0 %v580
    %737 = vmatpush1.bf16.msra.mxu0 %v579
    %738 = vmatprep.subr.bf16.mxu0 0
    %739 = vmatpush1.bf16.msra.mxu0 0
    %740 = vmatprep.subr.bf16.mxu0 0
    %741 = vmatpush1.bf16.msra.mxu0 0
    %742 = vmatprep.subr.bf16.mxu0 0
    %743 = vmatpush1.bf16.msra.mxu0 0
    %744 = vmatprep.subr.bf16.mxu0 0
    %745 = vmatpush1.bf16.msra.mxu0 0
    %746 = vmatprep.subr.bf16.mxu0 0
    %747 = vmatpush1.bf16.msra.mxu0 0
    %748 = vmatprep.subr.bf16.mxu0 0
    %749 = vmatpush1.bf16.msra.mxu0 0
    %750 = vmatprep.subr.bf16.mxu0 0
    %751 = vmatpush1.bf16.msra.mxu0 0
    %752 = vmatprep.subr.bf16.mxu0 0
    %753 = vmatpush1.bf16.msra.mxu0 0
    %754 = vmatprep.mubr.bf16.mxu0 0
    %755 = vmatmul.mubr.bf16.gmra.mrb[0].mxu0 %v80
    %v756 = vpop.f32.mrb[0].mxu0
    %v757 = vadd.f32 %v714, %v756
    %v758 = vpop.f32.mrb[0].mxu0
    %v759 = vadd.f32 %v716, %v758
    %v760 = vpop.f32.mrb[0].mxu0
    %v761 = vadd.f32 %v718, %v760
    %v762 = vpop.f32.mrb[0].mxu0
    %v763 = vadd.f32 %v720, %v762
    %764 = vdwg.mxu0
    %765 = vmatprep.subr.bf16.mxu0 %v490
    %766 = vmatpush1.bf16.msra.mxu0 %v489
    %767 = vmatprep.subr.bf16.mxu0 %v494
    %768 = vmatpush1.bf16.msra.mxu0 %v493
    %769 = vmatprep.subr.bf16.mxu0 %v498
    %770 = vmatpush1.bf16.msra.mxu0 %v497
    %771 = vmatprep.subr.bf16.mxu0 %v502
    %772 = vmatpush1.bf16.msra.mxu0 %v501
    %773 = vmatprep.subr.bf16.mxu0 %v506
    %774 = vmatpush1.bf16.msra.mxu0 %v505
    %775 = vmatprep.subr.bf16.mxu0 %v510
    %776 = vmatpush1.bf16.msra.mxu0 %v509
    %777 = vmatprep.subr.bf16.mxu0 %v514
    %778 = vmatpush1.bf16.msra.mxu0 %v513
    %779 = vmatprep.subr.bf16.mxu0 %v518
    %780 = vmatpush1.bf16.msra.mxu0 %v517
    %781 = vmatprep.subr.bf16.mxu0 %v522
    %782 = vmatpush1.bf16.msra.mxu0 %v521
    %783 = vmatprep.subr.bf16.mxu0 %v526
    %784 = vmatpush1.bf16.msra.mxu0 %v525
    %785 = vmatprep.subr.bf16.mxu0 %v530
    %786 = vmatpush1.bf16.msra.mxu0 %v529
    %787 = vmatprep.subr.bf16.mxu0 %v534
    %788 = vmatpush1.bf16.msra.mxu0 %v533
    %789 = vmatprep.subr.bf16.mxu0 %v538
    %790 = vmatpush1.bf16.msra.mxu0 %v537
    %791 = vmatprep.subr.bf16.mxu0 %v542
    %792 = vmatpush1.bf16.msra.mxu0 %v541
    %793 = vmatprep.subr.bf16.mxu0 %v546
    %794 = vmatpush1.bf16.msra.mxu0 %v545
    %795 = vmatprep.subr.bf16.mxu0 %v550
    %796 = vmatpush1.bf16.msra.mxu0 %v549
    %797 = vmatprep.mubr.bf16.mxu0 %v79
    %798 = vmatmul.mubr.bf16.gmra.mrb[0].mxu0 %v78
    %v799 = vpop.f32.mrb[0].mxu0
    %v800 = vadd.f32 %v190, %v799
    %v801 = vpop.f32.mrb[0].mxu0
    %v802 = vadd.f32 %v194, %v801
    %v803 = vpop.f32.mrb[0].mxu0
    %v804 = vadd.f32 %v190, %v803
    %v805 = vpop.f32.mrb[0].mxu0
    %v806 = vadd.f32 %v194, %v805
    %807 = vdwg.mxu0
    %808 = vmatprep.subr.bf16.mxu0 %v554
    %809 = vmatpush1.bf16.msra.mxu0 %v553
    %810 = vmatprep.subr.bf16.mxu0 %v558
    %811 = vmatpush1.bf16.msra.mxu0 %v557
    %812 = vmatprep.subr.bf16.mxu0 %v562
    %813 = vmatpush1.bf16.msra.mxu0 %v561
    %814 = vmatprep.subr.bf16.mxu0 %v566
    %815 = vmatpush1.bf16.msra.mxu0 %v565
    %816 = vmatprep.subr.bf16.mxu0 %v570
    %817 = vmatpush1.bf16.msra.mxu0 %v569
    %818 = vmatprep.subr.bf16.mxu0 %v574
    %819 = vmatpush1.bf16.msra.mxu0 %v573
    %820 = vmatprep.subr.bf16.mxu0 %v578
    %821 = vmatpush1.bf16.msra.mxu0 %v577
    %822 = vmatprep.subr.bf16.mxu0 %v582
    %823 = vmatpush1.bf16.msra.mxu0 %v581
    %824 = vmatprep.subr.bf16.mxu0 0
    %825 = vmatpush1.bf16.msra.mxu0 0
    %826 = vmatprep.subr.bf16.mxu0 0
    %827 = vmatpush1.bf16.msra.mxu0 0
    %828 = vmatprep.subr.bf16.mxu0 0
    %829 = vmatpush1.bf16.msra.mxu0 0
    %830 = vmatprep.subr.bf16.mxu0 0
    %831 = vmatpush1.bf16.msra.mxu0 0
    %832 = vmatprep.subr.bf16.mxu0 0
    %833 = vmatpush1.bf16.msra.mxu0 0
    %834 = vmatprep.subr.bf16.mxu0 0
    %835 = vmatpush1.bf16.msra.mxu0 0
    %836 = vmatprep.subr.bf16.mxu0 0
    %837 = vmatpush1.bf16.msra.mxu0 0
    %838 = vmatprep.subr.bf16.mxu0 0
    %839 = vmatpush1.bf16.msra.mxu0 0
    %840 = vmatprep.mubr.bf16.mxu0 0
    %841 = vmatmul.mubr.bf16.gmra.mrb[0].mxu0 %v80
    %v842 = vpop.f32.mrb[0].mxu0
    %v843 = vadd.f32 %v800, %v842
    %v844 = vpop.f32.mrb[0].mxu0
    %v845 = vadd.f32 %v802, %v844
    %v846 = vpop.f32.mrb[0].mxu0
    %v847 = vadd.f32 %v804, %v846
    %v848 = vpop.f32.mrb[0].mxu0
    %v849 = vadd.f32 %v806, %v848
    %850 = vdwg.mxu0
    %v851 = vmax.f32 %v757, 0.0
    %v852 = vmax.f32 %v759, 0.0
    %v853 = vmax.f32 %v843, 0.0
    %v854 = vmax.f32 %v845, 0.0
    %v855 = vmax.f32 %v761, 0.0
    %v856 = vmax.f32 %v763, 0.0
    %v857 = vmax.f32 %v847, 0.0
    %v858 = vmax.f32 %v849, 0.0
    %v859 = vpack.c.bf16 %v855, %v851
    %v860 = vpack.c.bf16 %v856, %v852
    %v861 = vpack.c.bf16 %v857, %v853
    %v862 = vpack.c.bf16 %v858, %v854
    %v863 = vld [vmem:[%s2] sm:$0xff]
    %v864 = vld [vmem:[%s2 + $0x8] sm:$0xff]
    %v865 = vld [vmem:[%s2 + $0x10] sm:$0xff]
    %v866 = vld [vmem:[%s2 + $0x18] sm:$0xff]
    %v867 = vld [vmem:[%s2 + $0x20] sm:$0xff]
    %v868 = vld [vmem:[%s2 + $0x28] sm:$0xff]
    %v869 = vld [vmem:[%s2 + $0x30] sm:$0xff]
    %v870 = vld [vmem:[%s2 + $0x38] sm:$0xff]
    %v871 = vld [vmem:[%s2 + $0x40] sm:$0xff]
    %v872 = vld [vmem:[%s2 + $0x48] sm:$0xff]
    %v873 = vld [vmem:[%s2 + $0x50] sm:$0xff]
    %v874 = vld [vmem:[%s2 + $0x58] sm:$0xff]
    %v875 = vld [vmem:[%s2 + $0x60] sm:$0xff]
    %v876 = vld [vmem:[%s2 + $0x68] sm:$0xff]
    %v877 = vld [vmem:[%s2 + $0x70] sm:$0xff]
    %v878 = vld [vmem:[%s2 + $0x78] sm:$0xff]
    %v879 = vld [vmem:[%s2 + $0x80] sm:$0xff]
    %v880 = vld [vmem:[%s2 + $0x88] sm:$0xff]
    %v881 = vld [vmem:[%s2 + $0x90] sm:$0xff]
    %v882 = vld [vmem:[%s2 + $0x98] sm:$0xff]
    %v883 = vld [vmem:[%s2 + $0xa0] sm:$0xff]
    %v884 = vld [vmem:[%s2 + $0xa8] sm:$0xff]
    %v885 = vld [vmem:[%s2 + $0xb0] sm:$0xff]
    %v886 = vld [vmem:[%s2 + $0xb8] sm:$0xff]
    %v887 = vld [vmem:[%s2 + $0xc0] sm:$0xff]
    %v888 = vld [vmem:[%s2 + $0xc8] sm:$0xff]
    %v889 = vld [vmem:[%s2 + $0xd0] sm:$0xff]
    %v890 = vld [vmem:[%s2 + $0xd8] sm:$0xff]
    %v891 = vld [vmem:[%s2 + $0xe0] sm:$0xff]
    %v892 = vld [vmem:[%s2 + $0xe8] sm:$0xff]
    %v893 = vld [vmem:[%s2 + $0xf0] sm:$0xff]
    %v894 = vld [vmem:[%s2 + $0xf8] sm:$0xff]
    %v895 = vld [vmem:[%s2 + $0x100] sm:$0xff]
    %v896 = vld [vmem:[%s2 + $0x108] sm:$0xff]
    %v897 = vld [vmem:[%s2 + $0x110] sm:$0xff]
    %v898 = vld [vmem:[%s2 + $0x118] sm:$0xff]
    %v899 = vld [vmem:[%s2 + $0x120] sm:$0xff]
    %v900 = vld [vmem:[%s2 + $0x128] sm:$0xff]
    %v901 = vld [vmem:[%s2 + $0x130] sm:$0xff]
    %v902 = vld [vmem:[%s2 + $0x138] sm:$0xff]
    %v903 = vld [vmem:[%s2 + $0x140] sm:$0xff]
    %v904 = vld [vmem:[%s2 + $0x148] sm:$0xff]
    %v905 = vld [vmem:[%s2 + $0x150] sm:$0xff]
    %v906 = vld [vmem:[%s2 + $0x158] sm:$0xff]
    %v907 = vld [vmem:[%s2 + $0x160] sm:$0xff]
    %v908 = vld [vmem:[%s2 + $0x168] sm:$0xff]
    %v909 = vld [vmem:[%s2 + $0x170] sm:$0xff]
    %v910 = vld [vmem:[%s2 + $0x178] sm:$0xff]
    %v911 = vld [vmem:[%s2 + $0x180] sm:$0xff]
    %v912 = vld [vmem:[%s2 + $0x188] sm:$0xff]
    %v913 = vld [vmem:[%s2 + $0x190] sm:$0xff]
    %v914 = vld [vmem:[%s2 + $0x198] sm:$0xff]
    %v915 = vld [vmem:[%s2 + $0x1a0] sm:$0xff]
    %v916 = vld [vmem:[%s2 + $0x1a8] sm:$0xff]
    %v917 = vld [vmem:[%s2 + $0x1b0] sm:$0xff]
    %v918 = vld [vmem:[%s2 + $0x1b8] sm:$0xff]
    %v919 = vld [vmem:[%s2 + $0x1c0] sm:$0xff]
    %v920 = vld [vmem:[%s2 + $0x1c8] sm:$0xff]
    %v921 = vld [vmem:[%s2 + $0x1d0] sm:$0xff]
    %v922 = vld [vmem:[%s2 + $0x1d8] sm:$0xff]
    %v923 = vld [vmem:[%s2 + $0x1e0] sm:$0xff]
    %v924 = vld [vmem:[%s2 + $0x1e8] sm:$0xff]
    %v925 = vld [vmem:[%s2 + $0x1f0] sm:$0xff]
    %v926 = vld [vmem:[%s2 + $0x1f8] sm:$0xff]
    %v927 = vld [vmem:[%s12] sm:$0x3]
    %v929 = vlaneseq
    %v930 = vshrl.u32 %v929, 7
    %v931 = vsub.s32 0, %v930
    %v932 = vrot.slane %v927, %v931
    %v933 = vlaneseq
    %v934 = vshrl.u32 %v933, 7
    %v935 = vsub.s32 1, %v934
    %v936 = vrot.slane %v927, %v935
    %v1003 = vunpack.c.l.b16 %v863
    %v1004 = vunpack.c.h.b16 %v863
    %v1005 = vunpack.c.l.b16 %v864
    %v1006 = vunpack.c.h.b16 %v864
    %v1007 = vunpack.c.l.b16 %v865
    %v1008 = vunpack.c.h.b16 %v865
    %v1009 = vunpack.c.l.b16 %v866
    %v1010 = vunpack.c.h.b16 %v866
    %v1011 = vunpack.c.l.b16 %v867
    %v1012 = vunpack.c.h.b16 %v867
    %v1013 = vunpack.c.l.b16 %v868
    %v1014 = vunpack.c.h.b16 %v868
    %v1015 = vunpack.c.l.b16 %v869
    %v1016 = vunpack.c.h.b16 %v869
    %v1017 = vunpack.c.l.b16 %v870
    %v1018 = vunpack.c.h.b16 %v870
    %v1019 = vunpack.c.l.b16 %v871
    %v1020 = vunpack.c.h.b16 %v871
    %v1021 = vunpack.c.l.b16 %v872
    %v1022 = vunpack.c.h.b16 %v872
    %v1023 = vunpack.c.l.b16 %v873
    %v1024 = vunpack.c.h.b16 %v873
    %v1025 = vunpack.c.l.b16 %v874
    %v1026 = vunpack.c.h.b16 %v874
    %v1027 = vunpack.c.l.b16 %v875
    %v1028 = vunpack.c.h.b16 %v875
    %v1029 = vunpack.c.l.b16 %v876
    %v1030 = vunpack.c.h.b16 %v876
    %v1031 = vunpack.c.l.b16 %v877
    %v1032 = vunpack.c.h.b16 %v877
    %v1033 = vunpack.c.l.b16 %v878
    %v1034 = vunpack.c.h.b16 %v878
    %v1035 = vunpack.c.l.b16 %v879
    %v1036 = vunpack.c.h.b16 %v879
    %v1037 = vunpack.c.l.b16 %v880
    %v1038 = vunpack.c.h.b16 %v880
    %v1039 = vunpack.c.l.b16 %v881
    %v1040 = vunpack.c.h.b16 %v881
    %v1041 = vunpack.c.l.b16 %v882
    %v1042 = vunpack.c.h.b16 %v882
    %v1043 = vunpack.c.l.b16 %v883
    %v1044 = vunpack.c.h.b16 %v883
    %v1045 = vunpack.c.l.b16 %v884
    %v1046 = vunpack.c.h.b16 %v884
    %v1047 = vunpack.c.l.b16 %v885
    %v1048 = vunpack.c.h.b16 %v885
    %v1049 = vunpack.c.l.b16 %v886
    %v1050 = vunpack.c.h.b16 %v886
    %v1051 = vunpack.c.l.b16 %v887
    %v1052 = vunpack.c.h.b16 %v887
    %v1053 = vunpack.c.l.b16 %v888
    %v1054 = vunpack.c.h.b16 %v888
    %v1055 = vunpack.c.l.b16 %v889
    %v1056 = vunpack.c.h.b16 %v889
    %v1057 = vunpack.c.l.b16 %v890
    %v1058 = vunpack.c.h.b16 %v890
    %v1059 = vunpack.c.l.b16 %v891
    %v1060 = vunpack.c.h.b16 %v891
    %v1061 = vunpack.c.l.b16 %v892
    %v1062 = vunpack.c.h.b16 %v892
    %v1063 = vunpack.c.l.b16 %v893
    %v1064 = vunpack.c.h.b16 %v893
    %v1065 = vunpack.c.l.b16 %v894
    %v1066 = vunpack.c.h.b16 %v894
    %v1067 = vunpack.c.l.b16 %v895
    %v1068 = vunpack.c.h.b16 %v895
    %v1069 = vunpack.c.l.b16 %v896
    %v1070 = vunpack.c.h.b16 %v896
    %v1071 = vunpack.c.l.b16 %v897
    %v1072 = vunpack.c.h.b16 %v897
    %v1073 = vunpack.c.l.b16 %v898
    %v1074 = vunpack.c.h.b16 %v898
    %v1075 = vunpack.c.l.b16 %v899
    %v1076 = vunpack.c.h.b16 %v899
    %v1077 = vunpack.c.l.b16 %v900
    %v1078 = vunpack.c.h.b16 %v900
    %v1079 = vunpack.c.l.b16 %v901
    %v1080 = vunpack.c.h.b16 %v901
    %v1081 = vunpack.c.l.b16 %v902
    %v1082 = vunpack.c.h.b16 %v902
    %v1083 = vunpack.c.l.b16 %v903
    %v1084 = vunpack.c.h.b16 %v903
    %v1085 = vunpack.c.l.b16 %v904
    %v1086 = vunpack.c.h.b16 %v904
    %v1087 = vunpack.c.l.b16 %v905
    %v1088 = vunpack.c.h.b16 %v905
    %v1089 = vunpack.c.l.b16 %v906
    %v1090 = vunpack.c.h.b16 %v906
    %v1091 = vunpack.c.l.b16 %v907
    %v1092 = vunpack.c.h.b16 %v907
    %v1093 = vunpack.c.l.b16 %v908
    %v1094 = vunpack.c.h.b16 %v908
    %v1095 = vunpack.c.l.b16 %v909
    %v1096 = vunpack.c.h.b16 %v909
    %v1097 = vunpack.c.l.b16 %v910
    %v1098 = vunpack.c.h.b16 %v910
    %v1099 = vunpack.c.l.b16 %v911
    %v1100 = vunpack.c.h.b16 %v911
    %v1101 = vunpack.c.l.b16 %v912
    %v1102 = vunpack.c.h.b16 %v912
    %v1103 = vunpack.c.l.b16 %v913
    %v1104 = vunpack.c.h.b16 %v913
    %v1105 = vunpack.c.l.b16 %v914
    %v1106 = vunpack.c.h.b16 %v914
    %v1107 = vunpack.c.l.b16 %v915
    %v1108 = vunpack.c.h.b16 %v915
    %v1109 = vunpack.c.l.b16 %v916
    %v1110 = vunpack.c.h.b16 %v916
    %v1111 = vunpack.c.l.b16 %v917
    %v1112 = vunpack.c.h.b16 %v917
    %v1113 = vunpack.c.l.b16 %v918
    %v1114 = vunpack.c.h.b16 %v918
    %v1115 = vunpack.c.l.b16 %v919
    %v1116 = vunpack.c.h.b16 %v919
    %v1117 = vunpack.c.l.b16 %v920
    %v1118 = vunpack.c.h.b16 %v920
    %v1119 = vunpack.c.l.b16 %v921
    %v1120 = vunpack.c.h.b16 %v921
    %v1121 = vunpack.c.l.b16 %v922
    %v1122 = vunpack.c.h.b16 %v922
    %v1123 = vunpack.c.l.b16 %v923
    %v1124 = vunpack.c.h.b16 %v923
    %v1125 = vunpack.c.l.b16 %v924
    %v1126 = vunpack.c.h.b16 %v924
    %v1127 = vunpack.c.l.b16 %v925
    %v1128 = vunpack.c.h.b16 %v925
    %v1129 = vunpack.c.l.b16 %v926
    %v1130 = vunpack.c.h.b16 %v926
    %v1131 = vpack.c.b16 %v1005, %v1003
    %v1132 = vpack.c.b16 %v1006, %v1004
    %v1133 = vpack.c.b16 %v1009, %v1007
    %v1134 = vpack.c.b16 %v1010, %v1008
    %v1135 = vpack.c.b16 %v1013, %v1011
    %v1136 = vpack.c.b16 %v1014, %v1012
    %v1137 = vpack.c.b16 %v1017, %v1015
    %v1138 = vpack.c.b16 %v1018, %v1016
    %v1139 = vpack.c.b16 %v1021, %v1019
    %v1140 = vpack.c.b16 %v1022, %v1020
    %v1141 = vpack.c.b16 %v1025, %v1023
    %v1142 = vpack.c.b16 %v1026, %v1024
    %v1143 = vpack.c.b16 %v1029, %v1027
    %v1144 = vpack.c.b16 %v1030, %v1028
    %v1145 = vpack.c.b16 %v1033, %v1031
    %v1146 = vpack.c.b16 %v1034, %v1032
    %v1147 = vpack.c.b16 %v1037, %v1035
    %v1148 = vpack.c.b16 %v1038, %v1036
    %v1149 = vpack.c.b16 %v1041, %v1039
    %v1150 = vpack.c.b16 %v1042, %v1040
    %v1151 = vpack.c.b16 %v1045, %v1043
    %v1152 = vpack.c.b16 %v1046, %v1044
    %v1153 = vpack.c.b16 %v1049, %v1047
    %v1154 = vpack.c.b16 %v1050, %v1048
    %v1155 = vpack.c.b16 %v1053, %v1051
    %v1156 = vpack.c.b16 %v1054, %v1052
    %v1157 = vpack.c.b16 %v1057, %v1055
    %v1158 = vpack.c.b16 %v1058, %v1056
    %v1159 = vpack.c.b16 %v1061, %v1059
    %v1160 = vpack.c.b16 %v1062, %v1060
    %v1161 = vpack.c.b16 %v1065, %v1063
    %v1162 = vpack.c.b16 %v1066, %v1064
    %v1163 = vpack.c.b16 %v1069, %v1067
    %v1164 = vpack.c.b16 %v1070, %v1068
    %v1165 = vpack.c.b16 %v1073, %v1071
    %v1166 = vpack.c.b16 %v1074, %v1072
    %v1167 = vpack.c.b16 %v1077, %v1075
    %v1168 = vpack.c.b16 %v1078, %v1076
    %v1169 = vpack.c.b16 %v1081, %v1079
    %v1170 = vpack.c.b16 %v1082, %v1080
    %v1171 = vpack.c.b16 %v1085, %v1083
    %v1172 = vpack.c.b16 %v1086, %v1084
    %v1173 = vpack.c.b16 %v1089, %v1087
    %v1174 = vpack.c.b16 %v1090, %v1088
    %v1175 = vpack.c.b16 %v1093, %v1091
    %v1176 = vpack.c.b16 %v1094, %v1092
    %v1177 = vpack.c.b16 %v1097, %v1095
    %v1178 = vpack.c.b16 %v1098, %v1096
    %v1179 = vpack.c.b16 %v1101, %v1099
    %v1180 = vpack.c.b16 %v1102, %v1100
    %v1181 = vpack.c.b16 %v1105, %v1103
    %v1182 = vpack.c.b16 %v1106, %v1104
    %v1183 = vpack.c.b16 %v1109, %v1107
    %v1184 = vpack.c.b16 %v1110, %v1108
    %v1185 = vpack.c.b16 %v1113, %v1111
    %v1186 = vpack.c.b16 %v1114, %v1112
    %v1187 = vpack.c.b16 %v1117, %v1115
    %v1188 = vpack.c.b16 %v1118, %v1116
    %v1189 = vpack.c.b16 %v1121, %v1119
    %v1190 = vpack.c.b16 %v1122, %v1120
    %v1191 = vpack.c.b16 %v1125, %v1123
    %v1192 = vpack.c.b16 %v1126, %v1124
    %v1193 = vpack.c.b16 %v1129, %v1127
    %v1194 = vpack.c.b16 %v1130, %v1128
    %1259 = vmatprep.subr.bf16.mxu0 %v1132
    %1260 = vmatpush1.bf16.msra.mxu0 %v1131
    %1261 = vmatprep.subr.bf16.mxu0 %v1134
    %1262 = vmatpush1.bf16.msra.mxu0 %v1133
    %1263 = vmatprep.subr.bf16.mxu0 %v1136
    %1264 = vmatpush1.bf16.msra.mxu0 %v1135
    %1265 = vmatprep.subr.bf16.mxu0 %v1138
    %1266 = vmatpush1.bf16.msra.mxu0 %v1137
    %1267 = vmatprep.subr.bf16.mxu0 %v1140
    %1268 = vmatpush1.bf16.msra.mxu0 %v1139
    %1269 = vmatprep.subr.bf16.mxu0 %v1142
    %1270 = vmatpush1.bf16.msra.mxu0 %v1141
    %1271 = vmatprep.subr.bf16.mxu0 %v1144
    %1272 = vmatpush1.bf16.msra.mxu0 %v1143
    %1273 = vmatprep.subr.bf16.mxu0 %v1146
    %1274 = vmatpush1.bf16.msra.mxu0 %v1145
    %1275 = vmatprep.subr.bf16.mxu0 %v1148
    %1276 = vmatpush1.bf16.msra.mxu0 %v1147
    %1277 = vmatprep.subr.bf16.mxu0 %v1150
    %1278 = vmatpush1.bf16.msra.mxu0 %v1149
    %1279 = vmatprep.subr.bf16.mxu0 %v1152
    %1280 = vmatpush1.bf16.msra.mxu0 %v1151
    %1281 = vmatprep.subr.bf16.mxu0 %v1154
    %1282 = vmatpush1.bf16.msra.mxu0 %v1153
    %1283 = vmatprep.subr.bf16.mxu0 %v1156
    %1284 = vmatpush1.bf16.msra.mxu0 %v1155
    %1285 = vmatprep.subr.bf16.mxu0 %v1158
    %1286 = vmatpush1.bf16.msra.mxu0 %v1157
    %1287 = vmatprep.subr.bf16.mxu0 %v1160
    %1288 = vmatpush1.bf16.msra.mxu0 %v1159
    %1289 = vmatprep.subr.bf16.mxu0 %v1162
    %1290 = vmatpush1.bf16.msra.mxu0 %v1161
    %1291 = vmatprep.mubr.bf16.mxu0 %v860
    %1292 = vmatmul.mubr.bf16.gmra.mrb[0].mxu0 %v859
    %v1293 = vpop.f32.mrb[0].mxu0
    %v1294 = vadd.f32 %v932, %v1293
    %v1295 = vpop.f32.mrb[0].mxu0
    %v1296 = vadd.f32 %v936, %v1295
    %v1297 = vpop.f32.mrb[0].mxu0
    %v1298 = vadd.f32 %v932, %v1297
    %v1299 = vpop.f32.mrb[0].mxu0
    %v1300 = vadd.f32 %v936, %v1299
    %1301 = vdwg.mxu0
    %1302 = vmatprep.subr.bf16.mxu0 %v1164
    %1303 = vmatpush1.bf16.msra.mxu0 %v1163
    %1304 = vmatprep.subr.bf16.mxu0 %v1166
    %1305 = vmatpush1.bf16.msra.mxu0 %v1165
    %1306 = vmatprep.subr.bf16.mxu0 %v1168
    %1307 = vmatpush1.bf16.msra.mxu0 %v1167
    %1308 = vmatprep.subr.bf16.mxu0 %v1170
    %1309 = vmatpush1.bf16.msra.mxu0 %v1169
    %1310 = vmatprep.subr.bf16.mxu0 %v1172
    %1311 = vmatpush1.bf16.msra.mxu0 %v1171
    %1312 = vmatprep.subr.bf16.mxu0 %v1174
    %1313 = vmatpush1.bf16.msra.mxu0 %v1173
    %1314 = vmatprep.subr.bf16.mxu0 %v1176
    %1315 = vmatpush1.bf16.msra.mxu0 %v1175
    %1316 = vmatprep.subr.bf16.mxu0 %v1178
    %1317 = vmatpush1.bf16.msra.mxu0 %v1177
    %1318 = vmatprep.subr.bf16.mxu0 %v1180
    %1319 = vmatpush1.bf16.msra.mxu0 %v1179
    %1320 = vmatprep.subr.bf16.mxu0 %v1182
    %1321 = vmatpush1.bf16.msra.mxu0 %v1181
    %1322 = vmatprep.subr.bf16.mxu0 %v1184
    %1323 = vmatpush1.bf16.msra.mxu0 %v1183
    %1324 = vmatprep.subr.bf16.mxu0 %v1186
    %1325 = vmatpush1.bf16.msra.mxu0 %v1185
    %1326 = vmatprep.subr.bf16.mxu0 %v1188
    %1327 = vmatpush1.bf16.msra.mxu0 %v1187
    %1328 = vmatprep.subr.bf16.mxu0 %v1190
    %1329 = vmatpush1.bf16.msra.mxu0 %v1189
    %1330 = vmatprep.subr.bf16.mxu0 %v1192
    %1331 = vmatpush1.bf16.msra.mxu0 %v1191
    %1332 = vmatprep.subr.bf16.mxu0 %v1194
    %1333 = vmatpush1.bf16.msra.mxu0 %v1193
    %1334 = vmatprep.mubr.bf16.mxu0 %v862
    %1335 = vmatmul.mubr.bf16.gmra.mrb[0].mxu0 %v861
    %v1336 = vpop.f32.mrb[0].mxu0
    %v1337 = vadd.f32 %v1294, %v1336
    %v1338 = vpop.f32.mrb[0].mxu0
    %v1339 = vadd.f32 %v1296, %v1338
    %v1340 = vpop.f32.mrb[0].mxu0
    %v1341 = vadd.f32 %v1298, %v1340
    %v1342 = vpop.f32.mrb[0].mxu0
    %v1343 = vadd.f32 %v1300, %v1342
    %1344 = vdwg.mxu0
    %v1345 = vmax.f32 %v1337, 0.0
    %v1346 = vmax.f32 %v1339, 0.0
    %v1347 = vmax.f32 %v1341, 0.0
    %v1348 = vmax.f32 %v1343, 0.0
    %v1349 = vpack.c.bf16 %v1347, %v1345
    %v1350 = vpack.c.bf16 %v1348, %v1346
    %v1351 = vld [vmem:[%s3] sm:$0xf]
    %v1352 = vld [vmem:[%s3 + $0x4] sm:$0xf]
    %v1353 = vld [vmem:[%s3 + $0x8] sm:$0xf]
    %v1354 = vld [vmem:[%s3 + $0xc] sm:$0xf]
    %v1355 = vld [vmem:[%s3 + $0x10] sm:$0xf]
    %v1356 = vld [vmem:[%s3 + $0x14] sm:$0xf]
    %v1357 = vld [vmem:[%s3 + $0x18] sm:$0xf]
    %v1358 = vld [vmem:[%s3 + $0x1c] sm:$0xf]
    %v1359 = vld [vmem:[%s3 + $0x20] sm:$0xf]
    %v1360 = vld [vmem:[%s3 + $0x24] sm:$0xf]
    %v1361 = vld [vmem:[%s3 + $0x28] sm:$0xf]
    %v1362 = vld [vmem:[%s3 + $0x2c] sm:$0xf]
    %v1363 = vld [vmem:[%s3 + $0x30] sm:$0xf]
    %v1364 = vld [vmem:[%s3 + $0x34] sm:$0xf]
    %v1365 = vld [vmem:[%s3 + $0x38] sm:$0xf]
    %v1366 = vld [vmem:[%s3 + $0x3c] sm:$0xf]
    %v1367 = vld [vmem:[%s3 + $0x40] sm:$0xf]
    %v1368 = vld [vmem:[%s3 + $0x44] sm:$0xf]
    %v1369 = vld [vmem:[%s3 + $0x48] sm:$0xf]
    %v1370 = vld [vmem:[%s3 + $0x4c] sm:$0xf]
    %v1371 = vld [vmem:[%s3 + $0x50] sm:$0xf]
    %v1372 = vld [vmem:[%s3 + $0x54] sm:$0xf]
    %v1373 = vld [vmem:[%s3 + $0x58] sm:$0xf]
    %v1374 = vld [vmem:[%s3 + $0x5c] sm:$0xf]
    %v1375 = vld [vmem:[%s3 + $0x60] sm:$0xf]
    %v1376 = vld [vmem:[%s3 + $0x64] sm:$0xf]
    %v1377 = vld [vmem:[%s3 + $0x68] sm:$0xf]
    %v1378 = vld [vmem:[%s3 + $0x6c] sm:$0xf]
    %v1379 = vld [vmem:[%s3 + $0x70] sm:$0xf]
    %v1380 = vld [vmem:[%s3 + $0x74] sm:$0xf]
    %v1381 = vld [vmem:[%s3 + $0x78] sm:$0xf]
    %v1382 = vld [vmem:[%s3 + $0x7c] sm:$0xf]
    %v1383 = vld [vmem:[%s13] sm:$0x1]
    %v1385 = vlaneseq
    %v1386 = vshrl.u32 %v1385, 7
    %v1387 = vsub.s32 0, %v1386
    %v1388 = vrot.slane %v1383, %v1387
    %v1422 = vunpack.c.l.b16 %v1351
    %v1423 = vunpack.c.l.b16 %v1352
    %v1424 = vunpack.c.l.b16 %v1353
    %v1425 = vunpack.c.l.b16 %v1354
    %v1426 = vunpack.c.l.b16 %v1355
    %v1427 = vunpack.c.l.b16 %v1356
    %v1428 = vunpack.c.l.b16 %v1357
    %v1429 = vunpack.c.l.b16 %v1358
    %v1430 = vunpack.c.l.b16 %v1359
    %v1431 = vunpack.c.l.b16 %v1360
    %v1432 = vunpack.c.l.b16 %v1361
    %v1433 = vunpack.c.l.b16 %v1362
    %v1434 = vunpack.c.l.b16 %v1363
    %v1435 = vunpack.c.l.b16 %v1364
    %v1436 = vunpack.c.l.b16 %v1365
    %v1437 = vunpack.c.l.b16 %v1366
    %v1438 = vunpack.c.l.b16 %v1367
    %v1439 = vunpack.c.l.b16 %v1368
    %v1440 = vunpack.c.l.b16 %v1369
    %v1441 = vunpack.c.l.b16 %v1370
    %v1442 = vunpack.c.l.b16 %v1371
    %v1443 = vunpack.c.l.b16 %v1372
    %v1444 = vunpack.c.l.b16 %v1373
    %v1445 = vunpack.c.l.b16 %v1374
    %v1446 = vunpack.c.l.b16 %v1375
    %v1447 = vunpack.c.l.b16 %v1376
    %v1448 = vunpack.c.l.b16 %v1377
    %v1449 = vunpack.c.l.b16 %v1378
    %v1450 = vunpack.c.l.b16 %v1379
    %v1451 = vunpack.c.l.b16 %v1380
    %v1452 = vunpack.c.l.b16 %v1381
    %v1453 = vunpack.c.l.b16 %v1382
    %v1454 = vpack.c.b16 %v1423, %v1422
    %v1455 = vpack.c.b16 %v1425, %v1424
    %v1456 = vpack.c.b16 %v1427, %v1426
    %v1457 = vpack.c.b16 %v1429, %v1428
    %v1458 = vpack.c.b16 %v1431, %v1430
    %v1459 = vpack.c.b16 %v1433, %v1432
    %v1460 = vpack.c.b16 %v1435, %v1434
    %v1461 = vpack.c.b16 %v1437, %v1436
    %v1462 = vpack.c.b16 %v1439, %v1438
    %v1463 = vpack.c.b16 %v1441, %v1440
    %v1464 = vpack.c.b16 %v1443, %v1442
    %v1465 = vpack.c.b16 %v1445, %v1444
    %v1466 = vpack.c.b16 %v1447, %v1446
    %v1467 = vpack.c.b16 %v1449, %v1448
    %v1468 = vpack.c.b16 %v1451, %v1450
    %v1469 = vpack.c.b16 %v1453, %v1452
    %1486 = vmatprep.subr.bf16.mxu0 0
    %1487 = vmatpush1.bf16.msra.mxu0 %v1454
    %1488 = vmatprep.subr.bf16.mxu0 0
    %1489 = vmatpush1.bf16.msra.mxu0 %v1455
    %1490 = vmatprep.subr.bf16.mxu0 0
    %1491 = vmatpush1.bf16.msra.mxu0 %v1456
    %1492 = vmatprep.subr.bf16.mxu0 0
    %1493 = vmatpush1.bf16.msra.mxu0 %v1457
    %1494 = vmatprep.subr.bf16.mxu0 0
    %1495 = vmatpush1.bf16.msra.mxu0 %v1458
    %1496 = vmatprep.subr.bf16.mxu0 0
    %1497 = vmatpush1.bf16.msra.mxu0 %v1459
    %1498 = vmatprep.subr.bf16.mxu0 0
    %1499 = vmatpush1.bf16.msra.mxu0 %v1460
    %1500 = vmatprep.subr.bf16.mxu0 0
    %1501 = vmatpush1.bf16.msra.mxu0 %v1461
    %1502 = vmatprep.subr.bf16.mxu0 0
    %1503 = vmatpush1.bf16.msra.mxu0 %v1462
    %1504 = vmatprep.subr.bf16.mxu0 0
    %1505 = vmatpush1.bf16.msra.mxu0 %v1463
    %1506 = vmatprep.subr.bf16.mxu0 0
    %1507 = vmatpush1.bf16.msra.mxu0 %v1464
    %1508 = vmatprep.subr.bf16.mxu0 0
    %1509 = vmatpush1.bf16.msra.mxu0 %v1465
    %1510 = vmatprep.subr.bf16.mxu0 0
    %1511 = vmatpush1.bf16.msra.mxu0 %v1466
    %1512 = vmatprep.subr.bf16.mxu0 0
    %1513 = vmatpush1.bf16.msra.mxu0 %v1467
    %1514 = vmatprep.subr.bf16.mxu0 0
    %1515 = vmatpush1.bf16.msra.mxu0 %v1468
    %1516 = vmatprep.subr.bf16.mxu0 0
    %1517 = vmatpush1.bf16.msra.mxu0 %v1469
    %1518 = vmatprep.mubr.bf16.mxu0 %v1350
    %1519 = vmatmul.mubr.bf16.gmra.mrb[0].mxu0 %v1349
    %v1520 = vpop.f32.mrb[0].mxu0
    %v1521 = vadd.f32 %v1388, %v1520
    %v1522 = vpop.f32.mrb[0].mxu0
    %v1523 = vpop.f32.mrb[0].mxu0
    %v1524 = vadd.f32 %v1388, %v1523
    %v1525 = vpop.f32.mrb[0].mxu0
    %1526 = vdwg.mxu0
    %v1527 = vmax.f32 %v1521, 0.0
    %v1528 = vmax.f32 %v1524, 0.0
    %v1529 = vpack.c.bf16 %v1528, %v1527
    %v1530 = vld [vmem:[%s4] sm:$0xf]
    %v1531 = vld [vmem:[%s4 + $0x4] sm:$0xf]
    %v1532 = vld [vmem:[%s4 + $0x8] sm:$0xf]
    %v1533 = vld [vmem:[%s4 + $0xc] sm:$0xf]
    %v1534 = vld [vmem:[%s4 + $0x10] sm:$0xf]
    %v1535 = vld [vmem:[%s4 + $0x14] sm:$0xf]
    %v1536 = vld [vmem:[%s4 + $0x18] sm:$0xf]
    %v1537 = vld [vmem:[%s4 + $0x1c] sm:$0xf]
    %v1538 = vld [vmem:[%s4 + $0x20] sm:$0xf]
    %v1539 = vld [vmem:[%s4 + $0x24] sm:$0xf]
    %v1540 = vld [vmem:[%s4 + $0x28] sm:$0xf]
    %v1541 = vld [vmem:[%s4 + $0x2c] sm:$0xf]
    %v1542 = vld [vmem:[%s4 + $0x30] sm:$0xf]
    %v1543 = vld [vmem:[%s4 + $0x34] sm:$0xf]
    %v1544 = vld [vmem:[%s4 + $0x38] sm:$0xf]
    %v1545 = vld [vmem:[%s4 + $0x3c] sm:$0xf]
    %v1546 = vld [vmem:[%s14] sm:$0x1]
    %v1548 = vlaneseq
    %v1549 = vshrl.u32 %v1548, 7
    %v1550 = vsub.s32 0, %v1549
    %v1551 = vrot.slane %v1546, %v1550
    %v1569 = vunpack.c.l.b16 %v1530
    %v1570 = vunpack.c.l.b16 %v1531
    %v1571 = vunpack.c.l.b16 %v1532
    %v1572 = vunpack.c.l.b16 %v1533
    %v1573 = vunpack.c.l.b16 %v1534
    %v1574 = vunpack.c.l.b16 %v1535
    %v1575 = vunpack.c.l.b16 %v1536
    %v1576 = vunpack.c.l.b16 %v1537
    %v1577 = vunpack.c.l.b16 %v1538
    %v1578 = vunpack.c.l.b16 %v1539
    %v1579 = vunpack.c.l.b16 %v1540
    %v1580 = vunpack.c.l.b16 %v1541
    %v1581 = vunpack.c.l.b16 %v1542
    %v1582 = vunpack.c.l.b16 %v1543
    %v1583 = vunpack.c.l.b16 %v1544
    %v1584 = vunpack.c.l.b16 %v1545
    %v1585 = vpack.c.b16 %v1570, %v1569
    %v1586 = vpack.c.b16 %v1572, %v1571
    %v1587 = vpack.c.b16 %v1574, %v1573
    %v1588 = vpack.c.b16 %v1576, %v1575
    %v1589 = vpack.c.b16 %v1578, %v1577
    %v1590 = vpack.c.b16 %v1580, %v1579
    %v1591 = vpack.c.b16 %v1582, %v1581
    %v1592 = vpack.c.b16 %v1584, %v1583
    %1601 = vmatprep.subr.bf16.mxu0 0
    %1602 = vmatpush1.bf16.msra.mxu0 %v1585
    %1603 = vmatprep.subr.bf16.mxu0 0
    %1604 = vmatpush1.bf16.msra.mxu0 %v1586
    %1605 = vmatprep.subr.bf16.mxu0 0
    %1606 = vmatpush1.bf16.msra.mxu0 %v1587
    %1607 = vmatprep.subr.bf16.mxu0 0
    %1608 = vmatpush1.bf16.msra.mxu0 %v1588
    %1609 = vmatprep.subr.bf16.mxu0 0
    %1610 = vmatpush1.bf16.msra.mxu0 %v1589
    %1611 = vmatprep.subr.bf16.mxu0 0
    %1612 = vmatpush1.bf16.msra.mxu0 %v1590
    %1613 = vmatprep.subr.bf16.mxu0 0
    %1614 = vmatpush1.bf16.msra.mxu0 %v1591
    %1615 = vmatprep.subr.bf16.mxu0 0
    %1616 = vmatpush1.bf16.msra.mxu0 %v1592
    %1617 = vmatprep.subr.bf16.mxu0 0
    %1618 = vmatpush1.bf16.msra.mxu0 0
    %1619 = vmatprep.subr.bf16.mxu0 0
    %1620 = vmatpush1.bf16.msra.mxu0 0
    %1621 = vmatprep.subr.bf16.mxu0 0
    %1622 = vmatpush1.bf16.msra.mxu0 0
    %1623 = vmatprep.subr.bf16.mxu0 0
    %1624 = vmatpush1.bf16.msra.mxu0 0
    %1625 = vmatprep.subr.bf16.mxu0 0
    %1626 = vmatpush1.bf16.msra.mxu0 0
    %1627 = vmatprep.subr.bf16.mxu0 0
    %1628 = vmatpush1.bf16.msra.mxu0 0
    %1629 = vmatprep.subr.bf16.mxu0 0
    %1630 = vmatpush1.bf16.msra.mxu0 0
    %1631 = vmatprep.subr.bf16.mxu0 0
    %1632 = vmatpush1.bf16.msra.mxu0 0
    %1633 = vmatprep.mubr.bf16.mxu0 0
    %1634 = vmatmul.mubr.bf16.gmra.mrb[0].mxu0 %v1529
    %v1635 = vpop.f32.mrb[0].mxu0
    %v1636 = vadd.f32 %v1551, %v1635
    %v1637 = vpop.f32.mrb[0].mxu0
    %v1638 = vpop.f32.mrb[0].mxu0
    %v1639 = vadd.f32 %v1551, %v1638
    %v1640 = vpop.f32.mrb[0].mxu0
    %1641 = vdwg.mxu0
    %v1642 = vmax.f32 %v1636, 0.0
    %v1643 = vmax.f32 %v1639, 0.0
    %v1644 = vpack.c.bf16 %v1643, %v1642
    %v1645 = vld [vmem:[%s5] sm:$0xf]
    %v1646 = vld [vmem:[%s5 + $0x4] sm:$0xf]
    %v1647 = vld [vmem:[%s5 + $0x8] sm:$0xf]
    %v1648 = vld [vmem:[%s5 + $0xc] sm:$0xf]
    %v1649 = vld [vmem:[%s5 + $0x10] sm:$0xf]
    %v1650 = vld [vmem:[%s5 + $0x14] sm:$0xf]
    %v1651 = vld [vmem:[%s5 + $0x18] sm:$0xf]
    %v1652 = vld [vmem:[%s5 + $0x1c] sm:$0xf]
    %v1653 = vld [vmem:[%s15] sm:$0x1]
    %v1655 = vlaneseq
    %v1656 = vshrl.u32 %v1655, 7
    %v1657 = vsub.s32 0, %v1656
    %v1658 = vrot.slane %v1653, %v1657
    %v1668 = vunpack.c.l.b16 %v1645
    %v1669 = vunpack.c.l.b16 %v1646
    %v1670 = vunpack.c.l.b16 %v1647
    %v1671 = vunpack.c.l.b16 %v1648
    %v1672 = vunpack.c.l.b16 %v1649
    %v1673 = vunpack.c.l.b16 %v1650
    %v1674 = vunpack.c.l.b16 %v1651
    %v1675 = vunpack.c.l.b16 %v1652
    %v1676 = vpack.c.b16 %v1669, %v1668
    %v1677 = vpack.c.b16 %v1671, %v1670
    %v1678 = vpack.c.b16 %v1673, %v1672
    %v1679 = vpack.c.b16 %v1675, %v1674
    %vm1684 = vcmask 523264
    %v1686 = vsel %vm1684, %v1644, 0
    %1688 = vmatprep.subr.bf16.mxu0 0
    %1689 = vmatpush1.bf16.msra.mxu0 %v1676
    %1690 = vmatprep.subr.bf16.mxu0 0
    %1691 = vmatpush1.bf16.msra.mxu0 %v1677
    %1692 = vmatprep.subr.bf16.mxu0 0
    %1693 = vmatpush1.bf16.msra.mxu0 %v1678
    %1694 = vmatprep.subr.bf16.mxu0 0
    %1695 = vmatpush1.bf16.msra.mxu0 %v1679
    %1696 = vmatprep.subr.bf16.mxu0 0
    %1697 = vmatpush1.bf16.msra.mxu0 0
    %1698 = vmatprep.subr.bf16.mxu0 0
    %1699 = vmatpush1.bf16.msra.mxu0 0
    %1700 = vmatprep.subr.bf16.mxu0 0
    %1701 = vmatpush1.bf16.msra.mxu0 0
    %1702 = vmatprep.subr.bf16.mxu0 0
    %1703 = vmatpush1.bf16.msra.mxu0 0
    %1704 = vmatprep.subr.bf16.mxu0 0
    %1705 = vmatpush1.bf16.msra.mxu0 0
    %1706 = vmatprep.subr.bf16.mxu0 0
    %1707 = vmatpush1.bf16.msra.mxu0 0
    %1708 = vmatprep.subr.bf16.mxu0 0
    %1709 = vmatpush1.bf16.msra.mxu0 0
    %1710 = vmatprep.subr.bf16.mxu0 0
    %1711 = vmatpush1.bf16.msra.mxu0 0
    %1712 = vmatprep.subr.bf16.mxu0 0
    %1713 = vmatpush1.bf16.msra.mxu0 0
    %1714 = vmatprep.subr.bf16.mxu0 0
    %1715 = vmatpush1.bf16.msra.mxu0 0
    %1716 = vmatprep.subr.bf16.mxu0 0
    %1717 = vmatpush1.bf16.msra.mxu0 0
    %1718 = vmatprep.subr.bf16.mxu0 0
    %1719 = vmatpush1.bf16.msra.mxu0 0
    %1720 = vmatprep.mubr.bf16.mxu0 0
    %1721 = vmatmul.mubr.bf16.gmra.mrb[0].mxu0 %v1686
    %v1722 = vpop.f32.mrb[0].mxu0
    %v1723 = vadd.f32 %v1658, %v1722
    %v1724 = vpop.f32.mrb[0].mxu0
    %v1725 = vpop.f32.mrb[0].mxu0
    %v1726 = vadd.f32 %v1658, %v1725
    %v1727 = vpop.f32.mrb[0].mxu0
    %1728 = vdwg.mxu0
    %v1729 = vpack.c.bf16 %v1726, %v1723
    %v1731 = vunpack.c.l.b16 %v1729
    %v1732 = vunpack.c.h.b16 %v1729
    %v1733 = vpack.c.b16 %v1731, %v1731
    %v1734 = vpack.c.b16 %v1732, %v1732
    %1737 = vst [vmem:[%s21] sm:$0xf] %v1733
    %1738 = vst [vmem:[%s21 + $0x4] sm:$0xf] %v1734
    %v1739 = vld [vmem:[%s6] sm:$0xf]
    %v1740 = vld [vmem:[%s6 + $0x4] sm:$0xf]
    %v1741 = vld [vmem:[%s6 + $0x8] sm:$0xf]
    %v1742 = vld [vmem:[%s6 + $0xc] sm:$0xf]
    %v1743 = vld [vmem:[%s6 + $0x10] sm:$0xf]
    %v1744 = vld [vmem:[%s6 + $0x14] sm:$0xf]
    %v1745 = vld [vmem:[%s6 + $0x18] sm:$0xf]
    %v1746 = vld [vmem:[%s6 + $0x1c] sm:$0xf]
    %v1747 = vld [vmem:[%s16] sm:$0x1]
    %v1749 = vlaneseq
    %v1750 = vshrl.u32 %v1749, 7
    %v1751 = vsub.s32 0, %v1750
    %v1752 = vrot.slane %v1747, %v1751
    %v1762 = vunpack.c.l.b16 %v1739
    %v1763 = vunpack.c.l.b16 %v1740
    %v1764 = vunpack.c.l.b16 %v1741
    %v1765 = vunpack.c.l.b16 %v1742
    %v1766 = vunpack.c.l.b16 %v1743
    %v1767 = vunpack.c.l.b16 %v1744
    %v1768 = vunpack.c.l.b16 %v1745
    %v1769 = vunpack.c.l.b16 %v1746
    %v1770 = vpack.c.b16 %v1763, %v1762
    %v1771 = vpack.c.b16 %v1765, %v1764
    %v1772 = vpack.c.b16 %v1767, %v1766
    %v1773 = vpack.c.b16 %v1769, %v1768
    %1778 = vmatprep.subr.bf16.mxu0 0
    %1779 = vmatpush1.bf16.msra.mxu0 %v1770
    %1780 = vmatprep.subr.bf16.mxu0 0
    %1781 = vmatpush1.bf16.msra.mxu0 %v1771
    %1782 = vmatprep.subr.bf16.mxu0 0
    %1783 = vmatpush1.bf16.msra.mxu0 %v1772
    %1784 = vmatprep.subr.bf16.mxu0 0
    %1785 = vmatpush1.bf16.msra.mxu0 %v1773
    %1786 = vmatprep.subr.bf16.mxu0 0
    %1787 = vmatpush1.bf16.msra.mxu0 0
    %1788 = vmatprep.subr.bf16.mxu0 0
    %1789 = vmatpush1.bf16.msra.mxu0 0
    %1790 = vmatprep.subr.bf16.mxu0 0
    %1791 = vmatpush1.bf16.msra.mxu0 0
    %1792 = vmatprep.subr.bf16.mxu0 0
    %1793 = vmatpush1.bf16.msra.mxu0 0
    %1794 = vmatprep.subr.bf16.mxu0 0
    %1795 = vmatpush1.bf16.msra.mxu0 0
    %1796 = vmatprep.subr.bf16.mxu0 0
    %1797 = vmatpush1.bf16.msra.mxu0 0
    %1798 = vmatprep.subr.bf16.mxu0 0
    %1799 = vmatpush1.bf16.msra.mxu0 0
    %1800 = vmatprep.subr.bf16.mxu0 0
    %1801 = vmatpush1.bf16.msra.mxu0 0
    %1802 = vmatprep.subr.bf16.mxu0 0
    %1803 = vmatpush1.bf16.msra.mxu0 0
    %1804 = vmatprep.subr.bf16.mxu0 0
    %1805 = vmatpush1.bf16.msra.mxu0 0
    %1806 = vmatprep.subr.bf16.mxu0 0
    %1807 = vmatpush1.bf16.msra.mxu0 0
    %1808 = vmatprep.subr.bf16.mxu0 0
    %1809 = vmatpush1.bf16.msra.mxu0 0
    %1810 = vmatprep.mubr.bf16.mxu0 0
    %1811 = vmatmul.mubr.bf16.gmra.mrb[0].mxu0 %v1686
    %v1812 = vpop.f32.mrb[0].mxu0
    %v1813 = vadd.f32 %v1752, %v1812
    %v1814 = vpop.f32.mrb[0].mxu0
    %v1815 = vpop.f32.mrb[0].mxu0
    %v1816 = vadd.f32 %v1752, %v1815
    %v1817 = vpop.f32.mrb[0].mxu0
    %1818 = vdwg.mxu0
    %v1819 = vmax.f32 %v1813, 0.0
    %v1820 = vmax.f32 %v1816, 0.0
    %v1821 = vpack.c.bf16 %v1820, %v1819
    %v1822 = vld [vmem:[%s7] sm:$0xf]
    %v1823 = vld [vmem:[%s7 + $0x4] sm:$0xf]
    %v1824 = vld [vmem:[%s7 + $0x8] sm:$0xf]
    %v1825 = vld [vmem:[%s7 + $0xc] sm:$0xf]
    %v1826 = vld [vmem:[%s7 + $0x10] sm:$0xf]
    %v1827 = vld [vmem:[%s7 + $0x14] sm:$0xf]
    %v1828 = vld [vmem:[%s7 + $0x18] sm:$0xf]
    %v1829 = vld [vmem:[%s7 + $0x1c] sm:$0xf]
    %v1830 = vld [vmem:[%s17] sm:$0x1]
    %v1832 = vlaneseq
    %v1833 = vshrl.u32 %v1832, 7
    %v1834 = vsub.s32 0, %v1833
    %v1835 = vrot.slane %v1830, %v1834
    %v1845 = vunpack.c.l.b16 %v1822
    %v1846 = vunpack.c.l.b16 %v1823
    %v1847 = vunpack.c.l.b16 %v1824
    %v1848 = vunpack.c.l.b16 %v1825
    %v1849 = vunpack.c.l.b16 %v1826
    %v1850 = vunpack.c.l.b16 %v1827
    %v1851 = vunpack.c.l.b16 %v1828
    %v1852 = vunpack.c.l.b16 %v1829
    %v1853 = vpack.c.b16 %v1846, %v1845
    %v1854 = vpack.c.b16 %v1848, %v1847
    %v1855 = vpack.c.b16 %v1850, %v1849
    %v1856 = vpack.c.b16 %v1852, %v1851
    %v1862 = vsel %vm1684, %v1821, 0
    %1864 = vmatprep.subr.bf16.mxu0 0
    %1865 = vmatpush1.bf16.msra.mxu0 %v1853
    %1866 = vmatprep.subr.bf16.mxu0 0
    %1867 = vmatpush1.bf16.msra.mxu0 %v1854
    %1868 = vmatprep.subr.bf16.mxu0 0
    %1869 = vmatpush1.bf16.msra.mxu0 %v1855
    %1870 = vmatprep.subr.bf16.mxu0 0
    %1871 = vmatpush1.bf16.msra.mxu0 %v1856
    %1872 = vmatprep.subr.bf16.mxu0 0
    %1873 = vmatpush1.bf16.msra.mxu0 0
    %1874 = vmatprep.subr.bf16.mxu0 0
    %1875 = vmatpush1.bf16.msra.mxu0 0
    %1876 = vmatprep.subr.bf16.mxu0 0
    %1877 = vmatpush1.bf16.msra.mxu0 0
    %1878 = vmatprep.subr.bf16.mxu0 0
    %1879 = vmatpush1.bf16.msra.mxu0 0
    %1880 = vmatprep.subr.bf16.mxu0 0
    %1881 = vmatpush1.bf16.msra.mxu0 0
    %1882 = vmatprep.subr.bf16.mxu0 0
    %1883 = vmatpush1.bf16.msra.mxu0 0
    %1884 = vmatprep.subr.bf16.mxu0 0
    %1885 = vmatpush1.bf16.msra.mxu0 0
    %1886 = vmatprep.subr.bf16.mxu0 0
    %1887 = vmatpush1.bf16.msra.mxu0 0
    %1888 = vmatprep.subr.bf16.mxu0 0
    %1889 = vmatpush1.bf16.msra.mxu0 0
    %1890 = vmatprep.subr.bf16.mxu0 0
    %1891 = vmatpush1.bf16.msra.mxu0 0
    %1892 = vmatprep.subr.bf16.mxu0 0
    %1893 = vmatpush1.bf16.msra.mxu0 0
    %1894 = vmatprep.subr.bf16.mxu0 0
    %1895 = vmatpush1.bf16.msra.mxu0 0
    %1896 = vmatprep.mubr.bf16.mxu0 0
    %1897 = vmatmul.mubr.bf16.gmra.mrb[0].mxu0 %v1862
    %v1898 = vpop.f32.mrb[0].mxu0
    %v1899 = vadd.f32 %v1835, %v1898
    %v1900 = vpop.f32.mrb[0].mxu0
    %v1901 = vpop.f32.mrb[0].mxu0
    %v1902 = vadd.f32 %v1835, %v1901
    %v1903 = vpop.f32.mrb[0].mxu0
    %1904 = vdwg.mxu0
    %v1905 = vmax.f32 %v1899, 0.0
    %v1906 = vmax.f32 %v1902, 0.0
    %v1907 = vpack.c.bf16 %v1906, %v1905
    %v1908 = vld [vmem:[%s8] sm:$0xff]
    %v1909 = vld [vmem:[%s8 + $0x8] sm:$0xff]
    %v1910 = vld [vmem:[%s8 + $0x10] sm:$0xff]
    %v1911 = vld [vmem:[%s8 + $0x18] sm:$0xff]
    %v1912 = vld [vmem:[%s8 + $0x20] sm:$0xff]
    %v1913 = vld [vmem:[%s8 + $0x28] sm:$0xff]
    %v1914 = vld [vmem:[%s8 + $0x30] sm:$0xff]
    %v1915 = vld [vmem:[%s8 + $0x38] sm:$0xff]
    %v1916 = vld [vmem:[%s8 + $0x40] sm:$0xff]
    %v1917 = vld [vmem:[%s8 + $0x48] sm:$0xff]
    %v1918 = vld [vmem:[%s8 + $0x50] sm:$0xff]
    %v1919 = vld [vmem:[%s8 + $0x58] sm:$0xff]
    %v1920 = vld [vmem:[%s8 + $0x60] sm:$0xff]
    %v1921 = vld [vmem:[%s8 + $0x68] sm:$0xff]
    %v1922 = vld [vmem:[%s8 + $0x70] sm:$0xff]
    %v1923 = vld [vmem:[%s8 + $0x78] sm:$0xff]
    %v1924 = vld [vmem:[%s18] sm:$0x3]
    %v1926 = vlaneseq
    %v1927 = vshrl.u32 %v1926, 7
    %v1928 = vsub.s32 0, %v1927
    %v1929 = vrot.slane %v1924, %v1928
    %v1930 = vlaneseq
    %v1931 = vshrl.u32 %v1930, 7
    %v1932 = vsub.s32 1, %v1931
    %v1933 = vrot.slane %v1924, %v1932
    %v1952 = vunpack.c.l.b16 %v1908
    %v1953 = vunpack.c.h.b16 %v1908
    %v1954 = vunpack.c.l.b16 %v1909
    %v1955 = vunpack.c.h.b16 %v1909
    %v1956 = vunpack.c.l.b16 %v1910
    %v1957 = vunpack.c.h.b16 %v1910
    %v1958 = vunpack.c.l.b16 %v1911
    %v1959 = vunpack.c.h.b16 %v1911
    %v1960 = vunpack.c.l.b16 %v1912
    %v1961 = vunpack.c.h.b16 %v1912
    %v1962 = vunpack.c.l.b16 %v1913
    %v1963 = vunpack.c.h.b16 %v1913
    %v1964 = vunpack.c.l.b16 %v1914
    %v1965 = vunpack.c.h.b16 %v1914
    %v1966 = vunpack.c.l.b16 %v1915
    %v1967 = vunpack.c.h.b16 %v1915
    %v1968 = vunpack.c.l.b16 %v1916
    %v1969 = vunpack.c.h.b16 %v1916
    %v1970 = vunpack.c.l.b16 %v1917
    %v1971 = vunpack.c.h.b16 %v1917
    %v1972 = vunpack.c.l.b16 %v1918
    %v1973 = vunpack.c.h.b16 %v1918
    %v1974 = vunpack.c.l.b16 %v1919
    %v1975 = vunpack.c.h.b16 %v1919
    %v1976 = vunpack.c.l.b16 %v1920
    %v1977 = vunpack.c.h.b16 %v1920
    %v1978 = vunpack.c.l.b16 %v1921
    %v1979 = vunpack.c.h.b16 %v1921
    %v1980 = vunpack.c.l.b16 %v1922
    %v1981 = vunpack.c.h.b16 %v1922
    %v1982 = vunpack.c.l.b16 %v1923
    %v1983 = vunpack.c.h.b16 %v1923
    %v1984 = vpack.c.b16 %v1954, %v1952
    %v1985 = vpack.c.b16 %v1955, %v1953
    %v1986 = vpack.c.b16 %v1958, %v1956
    %v1987 = vpack.c.b16 %v1959, %v1957
    %v1988 = vpack.c.b16 %v1962, %v1960
    %v1989 = vpack.c.b16 %v1963, %v1961
    %v1990 = vpack.c.b16 %v1966, %v1964
    %v1991 = vpack.c.b16 %v1967, %v1965
    %v1992 = vpack.c.b16 %v1970, %v1968
    %v1993 = vpack.c.b16 %v1971, %v1969
    %v1994 = vpack.c.b16 %v1974, %v1972
    %v1995 = vpack.c.b16 %v1975, %v1973
    %v1996 = vpack.c.b16 %v1978, %v1976
    %v1997 = vpack.c.b16 %v1979, %v1977
    %v1998 = vpack.c.b16 %v1982, %v1980
    %v1999 = vpack.c.b16 %v1983, %v1981
    %2016 = vmatprep.subr.bf16.mxu0 %v1985
    %2017 = vmatpush1.bf16.msra.mxu0 %v1984
    %2018 = vmatprep.subr.bf16.mxu0 %v1987
    %2019 = vmatpush1.bf16.msra.mxu0 %v1986
    %2020 = vmatprep.subr.bf16.mxu0 %v1989
    %2021 = vmatpush1.bf16.msra.mxu0 %v1988
    %2022 = vmatprep.subr.bf16.mxu0 %v1991
    %2023 = vmatpush1.bf16.msra.mxu0 %v1990
    %2024 = vmatprep.subr.bf16.mxu0 %v1993
    %2025 = vmatpush1.bf16.msra.mxu0 %v1992
    %2026 = vmatprep.subr.bf16.mxu0 %v1995
    %2027 = vmatpush1.bf16.msra.mxu0 %v1994
    %2028 = vmatprep.subr.bf16.mxu0 %v1997
    %2029 = vmatpush1.bf16.msra.mxu0 %v1996
    %2030 = vmatprep.subr.bf16.mxu0 %v1999
    %2031 = vmatpush1.bf16.msra.mxu0 %v1998
    %2032 = vmatprep.subr.bf16.mxu0 0
    %2033 = vmatpush1.bf16.msra.mxu0 0
    %2034 = vmatprep.subr.bf16.mxu0 0
    %2035 = vmatpush1.bf16.msra.mxu0 0
    %2036 = vmatprep.subr.bf16.mxu0 0
    %2037 = vmatpush1.bf16.msra.mxu0 0
    %2038 = vmatprep.subr.bf16.mxu0 0
    %2039 = vmatpush1.bf16.msra.mxu0 0
    %2040 = vmatprep.subr.bf16.mxu0 0
    %2041 = vmatpush1.bf16.msra.mxu0 0
    %2042 = vmatprep.subr.bf16.mxu0 0
    %2043 = vmatpush1.bf16.msra.mxu0 0
    %2044 = vmatprep.subr.bf16.mxu0 0
    %2045 = vmatpush1.bf16.msra.mxu0 0
    %2046 = vmatprep.subr.bf16.mxu0 0
    %2047 = vmatpush1.bf16.msra.mxu0 0
    %2048 = vmatprep.mubr.bf16.mxu0 0
    %2049 = vmatmul.mubr.bf16.gmra.mrb[0].mxu0 %v1907
    %v2050 = vpop.f32.mrb[0].mxu0
    %v2051 = vadd.f32 %v1929, %v2050
    %v2052 = vpop.f32.mrb[0].mxu0
    %v2053 = vadd.f32 %v1933, %v2052
    %v2054 = vpop.f32.mrb[0].mxu0
    %v2055 = vadd.f32 %v1929, %v2054
    %v2056 = vpop.f32.mrb[0].mxu0
    %v2057 = vadd.f32 %v1933, %v2056
    %2058 = vdwg.mxu0
    %v2059 = vmax.f32 %v2051, 0.0
    %v2060 = vmax.f32 %v2053, 0.0
    %v2061 = vmax.f32 %v2055, 0.0
    %v2062 = vmax.f32 %v2057, 0.0
    %v2063 = vpack.c.bf16 %v2061, %v2059
    %v2064 = vpack.c.bf16 %v2062, %v2060
    %v2065 = vld [vmem:[%s9] sm:$0xff]
    %v2066 = vld [vmem:[%s9 + $0x8] sm:$0xff]
    %v2067 = vld [vmem:[%s9 + $0x10] sm:$0xff]
    %v2068 = vld [vmem:[%s9 + $0x18] sm:$0xff]
    %v2069 = vld [vmem:[%s9 + $0x20] sm:$0xff]
    %v2070 = vld [vmem:[%s9 + $0x28] sm:$0xff]
    %v2071 = vld [vmem:[%s9 + $0x30] sm:$0xff]
    %v2072 = vld [vmem:[%s9 + $0x38] sm:$0xff]
    %v2073 = vld [vmem:[%s9 + $0x40] sm:$0xff]
    %v2074 = vld [vmem:[%s9 + $0x48] sm:$0xff]
    %v2075 = vld [vmem:[%s9 + $0x50] sm:$0xff]
    %v2076 = vld [vmem:[%s9 + $0x58] sm:$0xff]
    %v2077 = vld [vmem:[%s9 + $0x60] sm:$0xff]
    %v2078 = vld [vmem:[%s9 + $0x68] sm:$0xff]
    %v2079 = vld [vmem:[%s9 + $0x70] sm:$0xff]
    %v2080 = vld [vmem:[%s9 + $0x78] sm:$0xff]
    %v2081 = vld [vmem:[%s9 + $0x80] sm:$0xff]
    %v2082 = vld [vmem:[%s9 + $0x88] sm:$0xff]
    %v2083 = vld [vmem:[%s9 + $0x90] sm:$0xff]
    %v2084 = vld [vmem:[%s9 + $0x98] sm:$0xff]
    %v2085 = vld [vmem:[%s9 + $0xa0] sm:$0xff]
    %v2086 = vld [vmem:[%s9 + $0xa8] sm:$0xff]
    %v2087 = vld [vmem:[%s9 + $0xb0] sm:$0xff]
    %v2088 = vld [vmem:[%s9 + $0xb8] sm:$0xff]
    %v2089 = vld [vmem:[%s9 + $0xc0] sm:$0xff]
    %v2090 = vld [vmem:[%s9 + $0xc8] sm:$0xff]
    %v2091 = vld [vmem:[%s9 + $0xd0] sm:$0xff]
    %v2092 = vld [vmem:[%s9 + $0xd8] sm:$0xff]
    %v2093 = vld [vmem:[%s9 + $0xe0] sm:$0xff]
    %v2094 = vld [vmem:[%s9 + $0xe8] sm:$0xff]
    %v2095 = vld [vmem:[%s9 + $0xf0] sm:$0xff]
    %v2096 = vld [vmem:[%s9 + $0xf8] sm:$0xff]
    %v2097 = vld [vmem:[%s9 + $0x100] sm:$0xff]
    %v2098 = vld [vmem:[%s9 + $0x108] sm:$0xff]
    %v2099 = vld [vmem:[%s9 + $0x110] sm:$0xff]
    %v2100 = vld [vmem:[%s9 + $0x118] sm:$0xff]
    %v2101 = vld [vmem:[%s9 + $0x120] sm:$0xff]
    %v2102 = vld [vmem:[%s9 + $0x128] sm:$0xff]
    %v2103 = vld [vmem:[%s9 + $0x130] sm:$0xff]
    %v2104 = vld [vmem:[%s9 + $0x138] sm:$0xff]
    %v2105 = vld [vmem:[%s9 + $0x140] sm:$0xff]
    %v2106 = vld [vmem:[%s9 + $0x148] sm:$0xff]
    %v2107 = vld [vmem:[%s9 + $0x150] sm:$0xff]
    %v2108 = vld [vmem:[%s9 + $0x158] sm:$0xff]
    %v2109 = vld [vmem:[%s9 + $0x160] sm:$0xff]
    %v2110 = vld [vmem:[%s9 + $0x168] sm:$0xff]
    %v2111 = vld [vmem:[%s9 + $0x170] sm:$0xff]
    %v2112 = vld [vmem:[%s9 + $0x178] sm:$0xff]
    %v2113 = vld [vmem:[%s9 + $0x180] sm:$0xff]
    %v2114 = vld [vmem:[%s9 + $0x188] sm:$0xff]
    %v2115 = vld [vmem:[%s9 + $0x190] sm:$0xff]
    %v2116 = vld [vmem:[%s9 + $0x198] sm:$0xff]
    %v2117 = vld [vmem:[%s9 + $0x1a0] sm:$0xff]
    %v2118 = vld [vmem:[%s9 + $0x1a8] sm:$0xff]
    %v2119 = vld [vmem:[%s9 + $0x1b0] sm:$0xff]
    %v2120 = vld [vmem:[%s9 + $0x1b8] sm:$0xff]
    %v2121 = vld [vmem:[%s9 + $0x1c0] sm:$0xff]
    %v2122 = vld [vmem:[%s9 + $0x1c8] sm:$0xff]
    %v2123 = vld [vmem:[%s9 + $0x1d0] sm:$0xff]
    %v2124 = vld [vmem:[%s9 + $0x1d8] sm:$0xff]
    %v2125 = vld [vmem:[%s9 + $0x1e0] sm:$0xff]
    %v2126 = vld [vmem:[%s9 + $0x1e8] sm:$0xff]
    %v2127 = vld [vmem:[%s9 + $0x1f0] sm:$0xff]
    %v2128 = vld [vmem:[%s9 + $0x1f8] sm:$0xff]
    %v2129 = vld [vmem:[%s19] sm:$0xf]
    %v2131 = vlaneseq
    %v2132 = vshrl.u32 %v2131, 7
    %v2133 = vsub.s32 0, %v2132
    %v2134 = vrot.slane %v2129, %v2133
    %v2135 = vlaneseq
    %v2136 = vshrl.u32 %v2135, 7
    %v2137 = vsub.s32 1, %v2136
    %v2138 = vrot.slane %v2129, %v2137
    %v2139 = vlaneseq
    %v2140 = vshrl.u32 %v2139, 7
    %v2141 = vsub.s32 2, %v2140
    %v2142 = vrot.slane %v2129, %v2141
    %v2143 = vlaneseq
    %v2144 = vshrl.u32 %v2143, 7
    %v2145 = vsub.s32 3, %v2144
    %v2146 = vrot.slane %v2129, %v2145
    %v2215 = vunpack.c.l.b16 %v2065
    %v2216 = vunpack.c.h.b16 %v2065
    %v2217 = vunpack.c.l.b16 %v2066
    %v2218 = vunpack.c.h.b16 %v2066
    %v2219 = vunpack.c.l.b16 %v2067
    %v2220 = vunpack.c.h.b16 %v2067
    %v2221 = vunpack.c.l.b16 %v2068
    %v2222 = vunpack.c.h.b16 %v2068
    %v2223 = vunpack.c.l.b16 %v2069
    %v2224 = vunpack.c.h.b16 %v2069
    %v2225 = vunpack.c.l.b16 %v2070
    %v2226 = vunpack.c.h.b16 %v2070
    %v2227 = vunpack.c.l.b16 %v2071
    %v2228 = vunpack.c.h.b16 %v2071
    %v2229 = vunpack.c.l.b16 %v2072
    %v2230 = vunpack.c.h.b16 %v2072
    %v2231 = vunpack.c.l.b16 %v2073
    %v2232 = vunpack.c.h.b16 %v2073
    %v2233 = vunpack.c.l.b16 %v2074
    %v2234 = vunpack.c.h.b16 %v2074
    %v2235 = vunpack.c.l.b16 %v2075
    %v2236 = vunpack.c.h.b16 %v2075
    %v2237 = vunpack.c.l.b16 %v2076
    %v2238 = vunpack.c.h.b16 %v2076
    %v2239 = vunpack.c.l.b16 %v2077
    %v2240 = vunpack.c.h.b16 %v2077
    %v2241 = vunpack.c.l.b16 %v2078
    %v2242 = vunpack.c.h.b16 %v2078
    %v2243 = vunpack.c.l.b16 %v2079
    %v2244 = vunpack.c.h.b16 %v2079
    %v2245 = vunpack.c.l.b16 %v2080
    %v2246 = vunpack.c.h.b16 %v2080
    %v2247 = vunpack.c.l.b16 %v2081
    %v2248 = vunpack.c.h.b16 %v2081
    %v2249 = vunpack.c.l.b16 %v2082
    %v2250 = vunpack.c.h.b16 %v2082
    %v2251 = vunpack.c.l.b16 %v2083
    %v2252 = vunpack.c.h.b16 %v2083
    %v2253 = vunpack.c.l.b16 %v2084
    %v2254 = vunpack.c.h.b16 %v2084
    %v2255 = vunpack.c.l.b16 %v2085
    %v2256 = vunpack.c.h.b16 %v2085
    %v2257 = vunpack.c.l.b16 %v2086
    %v2258 = vunpack.c.h.b16 %v2086
    %v2259 = vunpack.c.l.b16 %v2087
    %v2260 = vunpack.c.h.b16 %v2087
    %v2261 = vunpack.c.l.b16 %v2088
    %v2262 = vunpack.c.h.b16 %v2088
    %v2263 = vunpack.c.l.b16 %v2089
    %v2264 = vunpack.c.h.b16 %v2089
    %v2265 = vunpack.c.l.b16 %v2090
    %v2266 = vunpack.c.h.b16 %v2090
    %v2267 = vunpack.c.l.b16 %v2091
    %v2268 = vunpack.c.h.b16 %v2091
    %v2269 = vunpack.c.l.b16 %v2092
    %v2270 = vunpack.c.h.b16 %v2092
    %v2271 = vunpack.c.l.b16 %v2093
    %v2272 = vunpack.c.h.b16 %v2093
    %v2273 = vunpack.c.l.b16 %v2094
    %v2274 = vunpack.c.h.b16 %v2094
    %v2275 = vunpack.c.l.b16 %v2095
    %v2276 = vunpack.c.h.b16 %v2095
    %v2277 = vunpack.c.l.b16 %v2096
    %v2278 = vunpack.c.h.b16 %v2096
    %v2279 = vunpack.c.l.b16 %v2097
    %v2280 = vunpack.c.h.b16 %v2097
    %v2281 = vunpack.c.l.b16 %v2098
    %v2282 = vunpack.c.h.b16 %v2098
    %v2283 = vunpack.c.l.b16 %v2099
    %v2284 = vunpack.c.h.b16 %v2099
    %v2285 = vunpack.c.l.b16 %v2100
    %v2286 = vunpack.c.h.b16 %v2100
    %v2287 = vunpack.c.l.b16 %v2101
    %v2288 = vunpack.c.h.b16 %v2101
    %v2289 = vunpack.c.l.b16 %v2102
    %v2290 = vunpack.c.h.b16 %v2102
    %v2291 = vunpack.c.l.b16 %v2103
    %v2292 = vunpack.c.h.b16 %v2103
    %v2293 = vunpack.c.l.b16 %v2104
    %v2294 = vunpack.c.h.b16 %v2104
    %v2295 = vunpack.c.l.b16 %v2105
    %v2296 = vunpack.c.h.b16 %v2105
    %v2297 = vunpack.c.l.b16 %v2106
    %v2298 = vunpack.c.h.b16 %v2106
    %v2299 = vunpack.c.l.b16 %v2107
    %v2300 = vunpack.c.h.b16 %v2107
    %v2301 = vunpack.c.l.b16 %v2108
    %v2302 = vunpack.c.h.b16 %v2108
    %v2303 = vunpack.c.l.b16 %v2109
    %v2304 = vunpack.c.h.b16 %v2109
    %v2305 = vunpack.c.l.b16 %v2110
    %v2306 = vunpack.c.h.b16 %v2110
    %v2307 = vunpack.c.l.b16 %v2111
    %v2308 = vunpack.c.h.b16 %v2111
    %v2309 = vunpack.c.l.b16 %v2112
    %v2310 = vunpack.c.h.b16 %v2112
    %v2311 = vunpack.c.l.b16 %v2113
    %v2312 = vunpack.c.h.b16 %v2113
    %v2313 = vunpack.c.l.b16 %v2114
    %v2314 = vunpack.c.h.b16 %v2114
    %v2315 = vunpack.c.l.b16 %v2115
    %v2316 = vunpack.c.h.b16 %v2115
    %v2317 = vunpack.c.l.b16 %v2116
    %v2318 = vunpack.c.h.b16 %v2116
    %v2319 = vunpack.c.l.b16 %v2117
    %v2320 = vunpack.c.h.b16 %v2117
    %v2321 = vunpack.c.l.b16 %v2118
    %v2322 = vunpack.c.h.b16 %v2118
    %v2323 = vunpack.c.l.b16 %v2119
    %v2324 = vunpack.c.h.b16 %v2119
    %v2325 = vunpack.c.l.b16 %v2120
    %v2326 = vunpack.c.h.b16 %v2120
    %v2327 = vunpack.c.l.b16 %v2121
    %v2328 = vunpack.c.h.b16 %v2121
    %v2329 = vunpack.c.l.b16 %v2122
    %v2330 = vunpack.c.h.b16 %v2122
    %v2331 = vunpack.c.l.b16 %v2123
    %v2332 = vunpack.c.h.b16 %v2123
    %v2333 = vunpack.c.l.b16 %v2124
    %v2334 = vunpack.c.h.b16 %v2124
    %v2335 = vunpack.c.l.b16 %v2125
    %v2336 = vunpack.c.h.b16 %v2125
    %v2337 = vunpack.c.l.b16 %v2126
    %v2338 = vunpack.c.h.b16 %v2126
    %v2339 = vunpack.c.l.b16 %v2127
    %v2340 = vunpack.c.h.b16 %v2127
    %v2341 = vunpack.c.l.b16 %v2128
    %v2342 = vunpack.c.h.b16 %v2128
    %v2343 = vpack.c.b16 %v2219, %v2215
    %v2344 = vpack.c.b16 %v2220, %v2216
    %v2345 = vpack.c.b16 %v2221, %v2217
    %v2346 = vpack.c.b16 %v2222, %v2218
    %v2347 = vpack.c.b16 %v2227, %v2223
    %v2348 = vpack.c.b16 %v2228, %v2224
    %v2349 = vpack.c.b16 %v2229, %v2225
    %v2350 = vpack.c.b16 %v2230, %v2226
    %v2351 = vpack.c.b16 %v2235, %v2231
    %v2352 = vpack.c.b16 %v2236, %v2232
    %v2353 = vpack.c.b16 %v2237, %v2233
    %v2354 = vpack.c.b16 %v2238, %v2234
    %v2355 = vpack.c.b16 %v2243, %v2239
    %v2356 = vpack.c.b16 %v2244, %v2240
    %v2357 = vpack.c.b16 %v2245, %v2241
    %v2358 = vpack.c.b16 %v2246, %v2242
    %v2359 = vpack.c.b16 %v2251, %v2247
    %v2360 = vpack.c.b16 %v2252, %v2248
    %v2361 = vpack.c.b16 %v2253, %v2249
    %v2362 = vpack.c.b16 %v2254, %v2250
    %v2363 = vpack.c.b16 %v2259, %v2255
    %v2364 = vpack.c.b16 %v2260, %v2256
    %v2365 = vpack.c.b16 %v2261, %v2257
    %v2366 = vpack.c.b16 %v2262, %v2258
    %v2367 = vpack.c.b16 %v2267, %v2263
    %v2368 = vpack.c.b16 %v2268, %v2264
    %v2369 = vpack.c.b16 %v2269, %v2265
    %v2370 = vpack.c.b16 %v2270, %v2266
    %v2371 = vpack.c.b16 %v2275, %v2271
    %v2372 = vpack.c.b16 %v2276, %v2272
    %v2373 = vpack.c.b16 %v2277, %v2273
    %v2374 = vpack.c.b16 %v2278, %v2274
    %v2375 = vpack.c.b16 %v2283, %v2279
    %v2376 = vpack.c.b16 %v2284, %v2280
    %v2377 = vpack.c.b16 %v2285, %v2281
    %v2378 = vpack.c.b16 %v2286, %v2282
    %v2379 = vpack.c.b16 %v2291, %v2287
    %v2380 = vpack.c.b16 %v2292, %v2288
    %v2381 = vpack.c.b16 %v2293, %v2289
    %v2382 = vpack.c.b16 %v2294, %v2290
    %v2383 = vpack.c.b16 %v2299, %v2295
    %v2384 = vpack.c.b16 %v2300, %v2296
    %v2385 = vpack.c.b16 %v2301, %v2297
    %v2386 = vpack.c.b16 %v2302, %v2298
    %v2387 = vpack.c.b16 %v2307, %v2303
    %v2388 = vpack.c.b16 %v2308, %v2304
    %v2389 = vpack.c.b16 %v2309, %v2305
    %v2390 = vpack.c.b16 %v2310, %v2306
    %v2391 = vpack.c.b16 %v2315, %v2311
    %v2392 = vpack.c.b16 %v2316, %v2312
    %v2393 = vpack.c.b16 %v2317, %v2313
    %v2394 = vpack.c.b16 %v2318, %v2314
    %v2395 = vpack.c.b16 %v2323, %v2319
    %v2396 = vpack.c.b16 %v2324, %v2320
    %v2397 = vpack.c.b16 %v2325, %v2321
    %v2398 = vpack.c.b16 %v2326, %v2322
    %v2399 = vpack.c.b16 %v2331, %v2327
    %v2400 = vpack.c.b16 %v2332, %v2328
    %v2401 = vpack.c.b16 %v2333, %v2329
    %v2402 = vpack.c.b16 %v2334, %v2330
    %v2403 = vpack.c.b16 %v2339, %v2335
    %v2404 = vpack.c.b16 %v2340, %v2336
    %v2405 = vpack.c.b16 %v2341, %v2337
    %v2406 = vpack.c.b16 %v2342, %v2338
    %2471 = vmatprep.subr.bf16.mxu0 %v2344
    %2472 = vmatpush1.bf16.msra.mxu0 %v2343
    %2473 = vmatprep.subr.bf16.mxu0 %v2348
    %2474 = vmatpush1.bf16.msra.mxu0 %v2347
    %2475 = vmatprep.subr.bf16.mxu0 %v2352
    %2476 = vmatpush1.bf16.msra.mxu0 %v2351
    %2477 = vmatprep.subr.bf16.mxu0 %v2356
    %2478 = vmatpush1.bf16.msra.mxu0 %v2355
    %2479 = vmatprep.subr.bf16.mxu0 %v2360
    %2480 = vmatpush1.bf16.msra.mxu0 %v2359
    %2481 = vmatprep.subr.bf16.mxu0 %v2364
    %2482 = vmatpush1.bf16.msra.mxu0 %v2363
    %2483 = vmatprep.subr.bf16.mxu0 %v2368
    %2484 = vmatpush1.bf16.msra.mxu0 %v2367
    %2485 = vmatprep.subr.bf16.mxu0 %v2372
    %2486 = vmatpush1.bf16.msra.mxu0 %v2371
    %2487 = vmatprep.subr.bf16.mxu0 %v2376
    %2488 = vmatpush1.bf16.msra.mxu0 %v2375
    %2489 = vmatprep.subr.bf16.mxu0 %v2380
    %2490 = vmatpush1.bf16.msra.mxu0 %v2379
    %2491 = vmatprep.subr.bf16.mxu0 %v2384
    %2492 = vmatpush1.bf16.msra.mxu0 %v2383
    %2493 = vmatprep.subr.bf16.mxu0 %v2388
    %2494 = vmatpush1.bf16.msra.mxu0 %v2387
    %2495 = vmatprep.subr.bf16.mxu0 %v2392
    %2496 = vmatpush1.bf16.msra.mxu0 %v2391
    %2497 = vmatprep.subr.bf16.mxu0 %v2396
    %2498 = vmatpush1.bf16.msra.mxu0 %v2395
    %2499 = vmatprep.subr.bf16.mxu0 %v2400
    %2500 = vmatpush1.bf16.msra.mxu0 %v2399
    %2501 = vmatprep.subr.bf16.mxu0 %v2404
    %2502 = vmatpush1.bf16.msra.mxu0 %v2403
    %2503 = vmatprep.mubr.bf16.mxu0 %v2064
    %2504 = vmatmul.mubr.bf16.gmra.mrb[0].mxu0 %v2063
    %v2505 = vpop.f32.mrb[0].mxu0
    %v2506 = vadd.f32 %v2134, %v2505
    %v2507 = vpop.f32.mrb[0].mxu0
    %v2508 = vadd.f32 %v2138, %v2507
    %v2509 = vpop.f32.mrb[0].mxu0
    %v2510 = vadd.f32 %v2134, %v2509
    %v2511 = vpop.f32.mrb[0].mxu0
    %v2512 = vadd.f32 %v2138, %v2511
    %2513 = vdwg.mxu0
    %2514 = vmatprep.subr.bf16.mxu0 %v2346
    %2515 = vmatpush1.bf16.msra.mxu0 %v2345
    %2516 = vmatprep.subr.bf16.mxu0 %v2350
    %2517 = vmatpush1.bf16.msra.mxu0 %v2349
    %2518 = vmatprep.subr.bf16.mxu0 %v2354
    %2519 = vmatpush1.bf16.msra.mxu0 %v2353
    %2520 = vmatprep.subr.bf16.mxu0 %v2358
    %2521 = vmatpush1.bf16.msra.mxu0 %v2357
    %2522 = vmatprep.subr.bf16.mxu0 %v2362
    %2523 = vmatpush1.bf16.msra.mxu0 %v2361
    %2524 = vmatprep.subr.bf16.mxu0 %v2366
    %2525 = vmatpush1.bf16.msra.mxu0 %v2365
    %2526 = vmatprep.subr.bf16.mxu0 %v2370
    %2527 = vmatpush1.bf16.msra.mxu0 %v2369
    %2528 = vmatprep.subr.bf16.mxu0 %v2374
    %2529 = vmatpush1.bf16.msra.mxu0 %v2373
    %2530 = vmatprep.subr.bf16.mxu0 %v2378
    %2531 = vmatpush1.bf16.msra.mxu0 %v2377
    %2532 = vmatprep.subr.bf16.mxu0 %v2382
    %2533 = vmatpush1.bf16.msra.mxu0 %v2381
    %2534 = vmatprep.subr.bf16.mxu0 %v2386
    %2535 = vmatpush1.bf16.msra.mxu0 %v2385
    %2536 = vmatprep.subr.bf16.mxu0 %v2390
    %2537 = vmatpush1.bf16.msra.mxu0 %v2389
    %2538 = vmatprep.subr.bf16.mxu0 %v2394
    %2539 = vmatpush1.bf16.msra.mxu0 %v2393
    %2540 = vmatprep.subr.bf16.mxu0 %v2398
    %2541 = vmatpush1.bf16.msra.mxu0 %v2397
    %2542 = vmatprep.subr.bf16.mxu0 %v2402
    %2543 = vmatpush1.bf16.msra.mxu0 %v2401
    %2544 = vmatprep.subr.bf16.mxu0 %v2406
    %2545 = vmatpush1.bf16.msra.mxu0 %v2405
    %2546 = vmatprep.mubr.bf16.mxu0 %v2064
    %2547 = vmatmul.mubr.bf16.gmra.mrb[0].mxu0 %v2063
    %v2548 = vpop.f32.mrb[0].mxu0
    %v2549 = vadd.f32 %v2142, %v2548
    %v2550 = vpop.f32.mrb[0].mxu0
    %v2551 = vadd.f32 %v2146, %v2550
    %v2552 = vpop.f32.mrb[0].mxu0
    %v2553 = vadd.f32 %v2142, %v2552
    %v2554 = vpop.f32.mrb[0].mxu0
    %v2555 = vadd.f32 %v2146, %v2554
    %2556 = vdwg.mxu0
    %v2557 = vmax.f32 %v2506, 0.0
    %v2558 = vmax.f32 %v2508, 0.0
    %v2559 = vmax.f32 %v2549, 0.0
    %v2560 = vmax.f32 %v2551, 0.0
    %v2561 = vmax.f32 %v2510, 0.0
    %v2562 = vmax.f32 %v2512, 0.0
    %v2563 = vmax.f32 %v2553, 0.0
    %v2564 = vmax.f32 %v2555, 0.0
    %v2565 = vpack.c.bf16 %v2561, %v2557
    %v2566 = vpack.c.bf16 %v2562, %v2558
    %v2567 = vpack.c.bf16 %v2563, %v2559
    %v2568 = vpack.c.bf16 %v2564, %v2560
    %v2569 = vld [vmem:[%s10] sm:$0xff]
    %v2570 = vld [vmem:[%s10 + $0x8] sm:$0xf]
    %v2571 = vld [vmem:[%s10 + $0xc] sm:$0xff]
    %v2572 = vld [vmem:[%s10 + $0x14] sm:$0xf]
    %v2573 = vld [vmem:[%s10 + $0x18] sm:$0xff]
    %v2574 = vld [vmem:[%s10 + $0x20] sm:$0xf]
    %v2575 = vld [vmem:[%s10 + $0x24] sm:$0xff]
    %v2576 = vld [vmem:[%s10 + $0x2c] sm:$0xf]
    %v2577 = vld [vmem:[%s10 + $0x30] sm:$0xff]
    %v2578 = vld [vmem:[%s10 + $0x38] sm:$0xf]
    %v2579 = vld [vmem:[%s10 + $0x3c] sm:$0xff]
    %v2580 = vld [vmem:[%s10 + $0x44] sm:$0xf]
    %v2581 = vld [vmem:[%s10 + $0x48] sm:$0xff]
    %v2582 = vld [vmem:[%s10 + $0x50] sm:$0xf]
    %v2583 = vld [vmem:[%s10 + $0x54] sm:$0xff]
    %v2584 = vld [vmem:[%s10 + $0x5c] sm:$0xf]
    %v2585 = vld [vmem:[%s10 + $0x60] sm:$0xff]
    %v2586 = vld [vmem:[%s10 + $0x68] sm:$0xf]
    %v2587 = vld [vmem:[%s10 + $0x6c] sm:$0xff]
    %v2588 = vld [vmem:[%s10 + $0x74] sm:$0xf]
    %v2589 = vld [vmem:[%s10 + $0x78] sm:$0xff]
    %v2590 = vld [vmem:[%s10 + $0x80] sm:$0xf]
    %v2591 = vld [vmem:[%s10 + $0x84] sm:$0xff]
    %v2592 = vld [vmem:[%s10 + $0x8c] sm:$0xf]
    %v2593 = vld [vmem:[%s10 + $0x90] sm:$0xff]
    %v2594 = vld [vmem:[%s10 + $0x98] sm:$0xf]
    %v2595 = vld [vmem:[%s10 + $0x9c] sm:$0xff]
    %v2596 = vld [vmem:[%s10 + $0xa4] sm:$0xf]
    %v2597 = vld [vmem:[%s10 + $0xa8] sm:$0xff]
    %v2598 = vld [vmem:[%s10 + $0xb0] sm:$0xf]
    %v2599 = vld [vmem:[%s10 + $0xb4] sm:$0xff]
    %v2600 = vld [vmem:[%s10 + $0xbc] sm:$0xf]
    %v2601 = vld [vmem:[%s10 + $0xc0] sm:$0xff]
    %v2602 = vld [vmem:[%s10 + $0xc8] sm:$0xf]
    %v2603 = vld [vmem:[%s10 + $0xcc] sm:$0xff]
    %v2604 = vld [vmem:[%s10 + $0xd4] sm:$0xf]
    %v2605 = vld [vmem:[%s10 + $0xd8] sm:$0xff]
    %v2606 = vld [vmem:[%s10 + $0xe0] sm:$0xf]
    %v2607 = vld [vmem:[%s10 + $0xe4] sm:$0xff]
    %v2608 = vld [vmem:[%s10 + $0xec] sm:$0xf]
    %v2609 = vld [vmem:[%s10 + $0xf0] sm:$0xff]
    %v2610 = vld [vmem:[%s10 + $0xf8] sm:$0xf]
    %v2611 = vld [vmem:[%s10 + $0xfc] sm:$0xff]
    %v2612 = vld [vmem:[%s10 + $0x104] sm:$0xf]
    %v2613 = vld [vmem:[%s10 + $0x108] sm:$0xff]
    %v2614 = vld [vmem:[%s10 + $0x110] sm:$0xf]
    %v2615 = vld [vmem:[%s10 + $0x114] sm:$0xff]
    %v2616 = vld [vmem:[%s10 + $0x11c] sm:$0xf]
    %v2617 = vld [vmem:[%s10 + $0x120] sm:$0xff]
    %v2618 = vld [vmem:[%s10 + $0x128] sm:$0xf]
    %v2619 = vld [vmem:[%s10 + $0x12c] sm:$0xff]
    %v2620 = vld [vmem:[%s10 + $0x134] sm:$0xf]
    %v2621 = vld [vmem:[%s10 + $0x138] sm:$0xff]
    %v2622 = vld [vmem:[%s10 + $0x140] sm:$0xf]
    %v2623 = vld [vmem:[%s10 + $0x144] sm:$0xff]
    %v2624 = vld [vmem:[%s10 + $0x14c] sm:$0xf]
    %v2625 = vld [vmem:[%s10 + $0x150] sm:$0xff]
    %v2626 = vld [vmem:[%s10 + $0x158] sm:$0xf]
    %v2627 = vld [vmem:[%s10 + $0x15c] sm:$0xff]
    %v2628 = vld [vmem:[%s10 + $0x164] sm:$0xf]
    %v2629 = vld [vmem:[%s10 + $0x168] sm:$0xff]
    %v2630 = vld [vmem:[%s10 + $0x170] sm:$0xf]
    %v2631 = vld [vmem:[%s10 + $0x174] sm:$0xff]
    %v2632 = vld [vmem:[%s10 + $0x17c] sm:$0xf]
    %v2633 = vld [vmem:[%s10 + $0x180] sm:$0xff]
    %v2634 = vld [vmem:[%s10 + $0x188] sm:$0xf]
    %v2635 = vld [vmem:[%s10 + $0x18c] sm:$0xff]
    %v2636 = vld [vmem:[%s10 + $0x194] sm:$0xf]
    %v2637 = vld [vmem:[%s10 + $0x198] sm:$0xff]
    %v2638 = vld [vmem:[%s10 + $0x1a0] sm:$0xf]
    %v2639 = vld [vmem:[%s10 + $0x1a4] sm:$0xff]
    %v2640 = vld [vmem:[%s10 + $0x1ac] sm:$0xf]
    %v2641 = vld [vmem:[%s10 + $0x1b0] sm:$0xff]
    %v2642 = vld [vmem:[%s10 + $0x1b8] sm:$0xf]
    %v2643 = vld [vmem:[%s10 + $0x1bc] sm:$0xff]
    %v2644 = vld [vmem:[%s10 + $0x1c4] sm:$0xf]
    %v2645 = vld [vmem:[%s10 + $0x1c8] sm:$0xff]
    %v2646 = vld [vmem:[%s10 + $0x1d0] sm:$0xf]
    %v2647 = vld [vmem:[%s10 + $0x1d4] sm:$0xff]
    %v2648 = vld [vmem:[%s10 + $0x1dc] sm:$0xf]
    %v2649 = vld [vmem:[%s10 + $0x1e0] sm:$0xff]
    %v2650 = vld [vmem:[%s10 + $0x1e8] sm:$0xf]
    %v2651 = vld [vmem:[%s10 + $0x1ec] sm:$0xff]
    %v2652 = vld [vmem:[%s10 + $0x1f4] sm:$0xf]
    %v2653 = vld [vmem:[%s10 + $0x1f8] sm:$0xff]
    %v2654 = vld [vmem:[%s10 + $0x200] sm:$0xf]
    %v2655 = vld [vmem:[%s10 + $0x204] sm:$0xff]
    %v2656 = vld [vmem:[%s10 + $0x20c] sm:$0xf]
    %v2657 = vld [vmem:[%s10 + $0x210] sm:$0xff]
    %v2658 = vld [vmem:[%s10 + $0x218] sm:$0xf]
    %v2659 = vld [vmem:[%s10 + $0x21c] sm:$0xff]
    %v2660 = vld [vmem:[%s10 + $0x224] sm:$0xf]
    %v2661 = vld [vmem:[%s10 + $0x228] sm:$0xff]
    %v2662 = vld [vmem:[%s10 + $0x230] sm:$0xf]
    %v2663 = vld [vmem:[%s10 + $0x234] sm:$0xff]
    %v2664 = vld [vmem:[%s10 + $0x23c] sm:$0xf]
    %v2665 = vld [vmem:[%s10 + $0x240] sm:$0xff]
    %v2666 = vld [vmem:[%s10 + $0x248] sm:$0xf]
    %v2667 = vld [vmem:[%s10 + $0x24c] sm:$0xff]
    %v2668 = vld [vmem:[%s10 + $0x254] sm:$0xf]
    %v2669 = vld [vmem:[%s10 + $0x258] sm:$0xff]
    %v2670 = vld [vmem:[%s10 + $0x260] sm:$0xf]
    %v2671 = vld [vmem:[%s10 + $0x264] sm:$0xff]
    %v2672 = vld [vmem:[%s10 + $0x26c] sm:$0xf]
    %v2673 = vld [vmem:[%s10 + $0x270] sm:$0xff]
    %v2674 = vld [vmem:[%s10 + $0x278] sm:$0xf]
    %v2675 = vld [vmem:[%s10 + $0x27c] sm:$0xff]
    %v2676 = vld [vmem:[%s10 + $0x284] sm:$0xf]
    %v2677 = vld [vmem:[%s10 + $0x288] sm:$0xff]
    %v2678 = vld [vmem:[%s10 + $0x290] sm:$0xf]
    %v2679 = vld [vmem:[%s10 + $0x294] sm:$0xff]
    %v2680 = vld [vmem:[%s10 + $0x29c] sm:$0xf]
    %v2681 = vld [vmem:[%s10 + $0x2a0] sm:$0xff]
    %v2682 = vld [vmem:[%s10 + $0x2a8] sm:$0xf]
    %v2683 = vld [vmem:[%s10 + $0x2ac] sm:$0xff]
    %v2684 = vld [vmem:[%s10 + $0x2b4] sm:$0xf]
    %v2685 = vld [vmem:[%s10 + $0x2b8] sm:$0xff]
    %v2686 = vld [vmem:[%s10 + $0x2c0] sm:$0xf]
    %v2687 = vld [vmem:[%s10 + $0x2c4] sm:$0xff]
    %v2688 = vld [vmem:[%s10 + $0x2cc] sm:$0xf]
    %v2689 = vld [vmem:[%s10 + $0x2d0] sm:$0xff]
    %v2690 = vld [vmem:[%s10 + $0x2d8] sm:$0xf]
    %v2691 = vld [vmem:[%s10 + $0x2dc] sm:$0xff]
    %v2692 = vld [vmem:[%s10 + $0x2e4] sm:$0xf]
    %v2693 = vld [vmem:[%s10 + $0x2e8] sm:$0xff]
    %v2694 = vld [vmem:[%s10 + $0x2f0] sm:$0xf]
    %v2695 = vld [vmem:[%s10 + $0x2f4] sm:$0xff]
    %v2696 = vld [vmem:[%s10 + $0x2fc] sm:$0xf]
    %v2697 = vld [vmem:[%s20] sm:$0x7]
    %v2699 = vlaneseq
    %v2700 = vshrl.u32 %v2699, 7
    %v2701 = vsub.s32 0, %v2700
    %v2702 = vrot.slane %v2697, %v2701
    %v2703 = vlaneseq
    %v2704 = vshrl.u32 %v2703, 7
    %v2705 = vsub.s32 1, %v2704
    %v2706 = vrot.slane %v2697, %v2705
    %v2707 = vlaneseq
    %v2708 = vshrl.u32 %v2707, 7
    %v2709 = vsub.s32 2, %v2708
    %v2710 = vrot.slane %v2697, %v2709
    %v2842 = vunpack.c.l.b16 %v2569
    %v2843 = vunpack.c.h.b16 %v2569
    %v2844 = vunpack.c.l.b16 %v2570
    %v2845 = vunpack.c.l.b16 %v2571
    %v2846 = vunpack.c.h.b16 %v2571
    %v2847 = vunpack.c.l.b16 %v2572
    %v2848 = vunpack.c.l.b16 %v2573
    %v2849 = vunpack.c.h.b16 %v2573
    %v2850 = vunpack.c.l.b16 %v2574
    %v2851 = vunpack.c.l.b16 %v2575
    %v2852 = vunpack.c.h.b16 %v2575
    %v2853 = vunpack.c.l.b16 %v2576
    %v2854 = vunpack.c.l.b16 %v2577
    %v2855 = vunpack.c.h.b16 %v2577
    %v2856 = vunpack.c.l.b16 %v2578
    %v2857 = vunpack.c.l.b16 %v2579
    %v2858 = vunpack.c.h.b16 %v2579
    %v2859 = vunpack.c.l.b16 %v2580
    %v2860 = vunpack.c.l.b16 %v2581
    %v2861 = vunpack.c.h.b16 %v2581
    %v2862 = vunpack.c.l.b16 %v2582
    %v2863 = vunpack.c.l.b16 %v2583
    %v2864 = vunpack.c.h.b16 %v2583
    %v2865 = vunpack.c.l.b16 %v2584
    %v2866 = vunpack.c.l.b16 %v2585
    %v2867 = vunpack.c.h.b16 %v2585
    %v2868 = vunpack.c.l.b16 %v2586
    %v2869 = vunpack.c.l.b16 %v2587
    %v2870 = vunpack.c.h.b16 %v2587
    %v2871 = vunpack.c.l.b16 %v2588
    %v2872 = vunpack.c.l.b16 %v2589
    %v2873 = vunpack.c.h.b16 %v2589
    %v2874 = vunpack.c.l.b16 %v2590
    %v2875 = vunpack.c.l.b16 %v2591
    %v2876 = vunpack.c.h.b16 %v2591
    %v2877 = vunpack.c.l.b16 %v2592
    %v2878 = vunpack.c.l.b16 %v2593
    %v2879 = vunpack.c.h.b16 %v2593
    %v2880 = vunpack.c.l.b16 %v2594
    %v2881 = vunpack.c.l.b16 %v2595
    %v2882 = vunpack.c.h.b16 %v2595
    %v2883 = vunpack.c.l.b16 %v2596
    %v2884 = vunpack.c.l.b16 %v2597
    %v2885 = vunpack.c.h.b16 %v2597
    %v2886 = vunpack.c.l.b16 %v2598
    %v2887 = vunpack.c.l.b16 %v2599
    %v2888 = vunpack.c.h.b16 %v2599
    %v2889 = vunpack.c.l.b16 %v2600
    %v2890 = vunpack.c.l.b16 %v2601
    %v2891 = vunpack.c.h.b16 %v2601
    %v2892 = vunpack.c.l.b16 %v2602
    %v2893 = vunpack.c.l.b16 %v2603
    %v2894 = vunpack.c.h.b16 %v2603
    %v2895 = vunpack.c.l.b16 %v2604
    %v2896 = vunpack.c.l.b16 %v2605
    %v2897 = vunpack.c.h.b16 %v2605
    %v2898 = vunpack.c.l.b16 %v2606
    %v2899 = vunpack.c.l.b16 %v2607
    %v2900 = vunpack.c.h.b16 %v2607
    %v2901 = vunpack.c.l.b16 %v2608
    %v2902 = vunpack.c.l.b16 %v2609
    %v2903 = vunpack.c.h.b16 %v2609
    %v2904 = vunpack.c.l.b16 %v2610
    %v2905 = vunpack.c.l.b16 %v2611
    %v2906 = vunpack.c.h.b16 %v2611
    %v2907 = vunpack.c.l.b16 %v2612
    %v2908 = vunpack.c.l.b16 %v2613
    %v2909 = vunpack.c.h.b16 %v2613
    %v2910 = vunpack.c.l.b16 %v2614
    %v2911 = vunpack.c.l.b16 %v2615
    %v2912 = vunpack.c.h.b16 %v2615
    %v2913 = vunpack.c.l.b16 %v2616
    %v2914 = vunpack.c.l.b16 %v2617
    %v2915 = vunpack.c.h.b16 %v2617
    %v2916 = vunpack.c.l.b16 %v2618
    %v2917 = vunpack.c.l.b16 %v2619
    %v2918 = vunpack.c.h.b16 %v2619
    %v2919 = vunpack.c.l.b16 %v2620
    %v2920 = vunpack.c.l.b16 %v2621
    %v2921 = vunpack.c.h.b16 %v2621
    %v2922 = vunpack.c.l.b16 %v2622
    %v2923 = vunpack.c.l.b16 %v2623
    %v2924 = vunpack.c.h.b16 %v2623
    %v2925 = vunpack.c.l.b16 %v2624
    %v2926 = vunpack.c.l.b16 %v2625
    %v2927 = vunpack.c.h.b16 %v2625
    %v2928 = vunpack.c.l.b16 %v2626
    %v2929 = vunpack.c.l.b16 %v2627
    %v2930 = vunpack.c.h.b16 %v2627
    %v2931 = vunpack.c.l.b16 %v2628
    %v2932 = vunpack.c.l.b16 %v2629
    %v2933 = vunpack.c.h.b16 %v2629
    %v2934 = vunpack.c.l.b16 %v2630
    %v2935 = vunpack.c.l.b16 %v2631
    %v2936 = vunpack.c.h.b16 %v2631
    %v2937 = vunpack.c.l.b16 %v2632
    %v2938 = vunpack.c.l.b16 %v2633
    %v2939 = vunpack.c.h.b16 %v2633
    %v2940 = vunpack.c.l.b16 %v2634
    %v2941 = vunpack.c.l.b16 %v2635
    %v2942 = vunpack.c.h.b16 %v2635
    %v2943 = vunpack.c.l.b16 %v2636
    %v2944 = vunpack.c.l.b16 %v2637
    %v2945 = vunpack.c.h.b16 %v2637
    %v2946 = vunpack.c.l.b16 %v2638
    %v2947 = vunpack.c.l.b16 %v2639
    %v2948 = vunpack.c.h.b16 %v2639
    %v2949 = vunpack.c.l.b16 %v2640
    %v2950 = vunpack.c.l.b16 %v2641
    %v2951 = vunpack.c.h.b16 %v2641
    %v2952 = vunpack.c.l.b16 %v2642
    %v2953 = vunpack.c.l.b16 %v2643
    %v2954 = vunpack.c.h.b16 %v2643
    %v2955 = vunpack.c.l.b16 %v2644
    %v2956 = vunpack.c.l.b16 %v2645
    %v2957 = vunpack.c.h.b16 %v2645
    %v2958 = vunpack.c.l.b16 %v2646
    %v2959 = vunpack.c.l.b16 %v2647
    %v2960 = vunpack.c.h.b16 %v2647
    %v2961 = vunpack.c.l.b16 %v2648
    %v2962 = vunpack.c.l.b16 %v2649
    %v2963 = vunpack.c.h.b16 %v2649
    %v2964 = vunpack.c.l.b16 %v2650
    %v2965 = vunpack.c.l.b16 %v2651
    %v2966 = vunpack.c.h.b16 %v2651
    %v2967 = vunpack.c.l.b16 %v2652
    %v2968 = vunpack.c.l.b16 %v2653
    %v2969 = vunpack.c.h.b16 %v2653
    %v2970 = vunpack.c.l.b16 %v2654
    %v2971 = vunpack.c.l.b16 %v2655
    %v2972 = vunpack.c.h.b16 %v2655
    %v2973 = vunpack.c.l.b16 %v2656
    %v2974 = vunpack.c.l.b16 %v2657
    %v2975 = vunpack.c.h.b16 %v2657
    %v2976 = vunpack.c.l.b16 %v2658
    %v2977 = vunpack.c.l.b16 %v2659
    %v2978 = vunpack.c.h.b16 %v2659
    %v2979 = vunpack.c.l.b16 %v2660
    %v2980 = vunpack.c.l.b16 %v2661
    %v2981 = vunpack.c.h.b16 %v2661
    %v2982 = vunpack.c.l.b16 %v2662
    %v2983 = vunpack.c.l.b16 %v2663
    %v2984 = vunpack.c.h.b16 %v2663
    %v2985 = vunpack.c.l.b16 %v2664
    %v2986 = vunpack.c.l.b16 %v2665
    %v2987 = vunpack.c.h.b16 %v2665
    %v2988 = vunpack.c.l.b16 %v2666
    %v2989 = vunpack.c.l.b16 %v2667
    %v2990 = vunpack.c.h.b16 %v2667
    %v2991 = vunpack.c.l.b16 %v2668
    %v2992 = vunpack.c.l.b16 %v2669
    %v2993 = vunpack.c.h.b16 %v2669
    %v2994 = vunpack.c.l.b16 %v2670
    %v2995 = vunpack.c.l.b16 %v2671
    %v2996 = vunpack.c.h.b16 %v2671
    %v2997 = vunpack.c.l.b16 %v2672
    %v2998 = vunpack.c.l.b16 %v2673
    %v2999 = vunpack.c.h.b16 %v2673
    %v3000 = vunpack.c.l.b16 %v2674
    %v3001 = vunpack.c.l.b16 %v2675
    %v3002 = vunpack.c.h.b16 %v2675
    %v3003 = vunpack.c.l.b16 %v2676
    %v3004 = vunpack.c.l.b16 %v2677
    %v3005 = vunpack.c.h.b16 %v2677
    %v3006 = vunpack.c.l.b16 %v2678
    %v3007 = vunpack.c.l.b16 %v2679
    %v3008 = vunpack.c.h.b16 %v2679
    %v3009 = vunpack.c.l.b16 %v2680
    %v3010 = vunpack.c.l.b16 %v2681
    %v3011 = vunpack.c.h.b16 %v2681
    %v3012 = vunpack.c.l.b16 %v2682
    %v3013 = vunpack.c.l.b16 %v2683
    %v3014 = vunpack.c.h.b16 %v2683
    %v3015 = vunpack.c.l.b16 %v2684
    %v3016 = vunpack.c.l.b16 %v2685
    %v3017 = vunpack.c.h.b16 %v2685
    %v3018 = vunpack.c.l.b16 %v2686
    %v3019 = vunpack.c.l.b16 %v2687
    %v3020 = vunpack.c.h.b16 %v2687
    %v3021 = vunpack.c.l.b16 %v2688
    %v3022 = vunpack.c.l.b16 %v2689
    %v3023 = vunpack.c.h.b16 %v2689
    %v3024 = vunpack.c.l.b16 %v2690
    %v3025 = vunpack.c.l.b16 %v2691
    %v3026 = vunpack.c.h.b16 %v2691
    %v3027 = vunpack.c.l.b16 %v2692
    %v3028 = vunpack.c.l.b16 %v2693
    %v3029 = vunpack.c.h.b16 %v2693
    %v3030 = vunpack.c.l.b16 %v2694
    %v3031 = vunpack.c.l.b16 %v2695
    %v3032 = vunpack.c.h.b16 %v2695
    %v3033 = vunpack.c.l.b16 %v2696
    %v3034 = vpack.c.b16 %v2845, %v2842
    %v3035 = vpack.c.b16 %v2846, %v2843
    %v3036 = vpack.c.b16 %v2847, %v2844
    %v3037 = vpack.c.b16 %v2851, %v2848
    %v3038 = vpack.c.b16 %v2852, %v2849
    %v3039 = vpack.c.b16 %v2853, %v2850
    %v3040 = vpack.c.b16 %v2857, %v2854
    %v3041 = vpack.c.b16 %v2858, %v2855
    %v3042 = vpack.c.b16 %v2859, %v2856
    %v3043 = vpack.c.b16 %v2863, %v2860
    %v3044 = vpack.c.b16 %v2864, %v2861
    %v3045 = vpack.c.b16 %v2865, %v2862
    %v3046 = vpack.c.b16 %v2869, %v2866
    %v3047 = vpack.c.b16 %v2870, %v2867
    %v3048 = vpack.c.b16 %v2871, %v2868
    %v3049 = vpack.c.b16 %v2875, %v2872
    %v3050 = vpack.c.b16 %v2876, %v2873
    %v3051 = vpack.c.b16 %v2877, %v2874
    %v3052 = vpack.c.b16 %v2881, %v2878
    %v3053 = vpack.c.b16 %v2882, %v2879
    %v3054 = vpack.c.b16 %v2883, %v2880
    %v3055 = vpack.c.b16 %v2887, %v2884
    %v3056 = vpack.c.b16 %v2888, %v2885
    %v3057 = vpack.c.b16 %v2889, %v2886
    %v3058 = vpack.c.b16 %v2893, %v2890
    %v3059 = vpack.c.b16 %v2894, %v2891
    %v3060 = vpack.c.b16 %v2895, %v2892
    %v3061 = vpack.c.b16 %v2899, %v2896
    %v3062 = vpack.c.b16 %v2900, %v2897
    %v3063 = vpack.c.b16 %v2901, %v2898
    %v3064 = vpack.c.b16 %v2905, %v2902
    %v3065 = vpack.c.b16 %v2906, %v2903
    %v3066 = vpack.c.b16 %v2907, %v2904
    %v3067 = vpack.c.b16 %v2911, %v2908
    %v3068 = vpack.c.b16 %v2912, %v2909
    %v3069 = vpack.c.b16 %v2913, %v2910
    %v3070 = vpack.c.b16 %v2917, %v2914
    %v3071 = vpack.c.b16 %v2918, %v2915
    %v3072 = vpack.c.b16 %v2919, %v2916
    %v3073 = vpack.c.b16 %v2923, %v2920
    %v3074 = vpack.c.b16 %v2924, %v2921
    %v3075 = vpack.c.b16 %v2925, %v2922
    %v3076 = vpack.c.b16 %v2929, %v2926
    %v3077 = vpack.c.b16 %v2930, %v2927
    %v3078 = vpack.c.b16 %v2931, %v2928
    %v3079 = vpack.c.b16 %v2935, %v2932
    %v3080 = vpack.c.b16 %v2936, %v2933
    %v3081 = vpack.c.b16 %v2937, %v2934
    %v3082 = vpack.c.b16 %v2941, %v2938
    %v3083 = vpack.c.b16 %v2942, %v2939
    %v3084 = vpack.c.b16 %v2943, %v2940
    %v3085 = vpack.c.b16 %v2947, %v2944
    %v3086 = vpack.c.b16 %v2948, %v2945
    %v3087 = vpack.c.b16 %v2949, %v2946
    %v3088 = vpack.c.b16 %v2953, %v2950
    %v3089 = vpack.c.b16 %v2954, %v2951
    %v3090 = vpack.c.b16 %v2955, %v2952
    %v3091 = vpack.c.b16 %v2959, %v2956
    %v3092 = vpack.c.b16 %v2960, %v2957
    %v3093 = vpack.c.b16 %v2961, %v2958
    %v3094 = vpack.c.b16 %v2965, %v2962
    %v3095 = vpack.c.b16 %v2966, %v2963
    %v3096 = vpack.c.b16 %v2967, %v2964
    %v3097 = vpack.c.b16 %v2971, %v2968
    %v3098 = vpack.c.b16 %v2972, %v2969
    %v3099 = vpack.c.b16 %v2973, %v2970
    %v3100 = vpack.c.b16 %v2977, %v2974
    %v3101 = vpack.c.b16 %v2978, %v2975
    %v3102 = vpack.c.b16 %v2979, %v2976
    %v3103 = vpack.c.b16 %v2983, %v2980
    %v3104 = vpack.c.b16 %v2984, %v2981
    %v3105 = vpack.c.b16 %v2985, %v2982
    %v3106 = vpack.c.b16 %v2989, %v2986
    %v3107 = vpack.c.b16 %v2990, %v2987
    %v3108 = vpack.c.b16 %v2991, %v2988
    %v3109 = vpack.c.b16 %v2995, %v2992
    %v3110 = vpack.c.b16 %v2996, %v2993
    %v3111 = vpack.c.b16 %v2997, %v2994
    %v3112 = vpack.c.b16 %v3001, %v2998
    %v3113 = vpack.c.b16 %v3002, %v2999
    %v3114 = vpack.c.b16 %v3003, %v3000
    %v3115 = vpack.c.b16 %v3007, %v3004
    %v3116 = vpack.c.b16 %v3008, %v3005
    %v3117 = vpack.c.b16 %v3009, %v3006
    %v3118 = vpack.c.b16 %v3013, %v3010
    %v3119 = vpack.c.b16 %v3014, %v3011
    %v3120 = vpack.c.b16 %v3015, %v3012
    %v3121 = vpack.c.b16 %v3019, %v3016
    %v3122 = vpack.c.b16 %v3020, %v3017
    %v3123 = vpack.c.b16 %v3021, %v3018
    %v3124 = vpack.c.b16 %v3025, %v3022
    %v3125 = vpack.c.b16 %v3026, %v3023
    %v3126 = vpack.c.b16 %v3027, %v3024
    %v3127 = vpack.c.b16 %v3031, %v3028
    %v3128 = vpack.c.b16 %v3032, %v3029
    %v3129 = vpack.c.b16 %v3033, %v3030
    %3226 = vmatprep.subr.bf16.mxu0 %v3035
    %3227 = vmatpush1.bf16.msra.mxu0 %v3034
    %3228 = vmatprep.subr.bf16.mxu0 %v3038
    %3229 = vmatpush1.bf16.msra.mxu0 %v3037
    %3230 = vmatprep.subr.bf16.mxu0 %v3041
    %3231 = vmatpush1.bf16.msra.mxu0 %v3040
    %3232 = vmatprep.subr.bf16.mxu0 %v3044
    %3233 = vmatpush1.bf16.msra.mxu0 %v3043
    %3234 = vmatprep.subr.bf16.mxu0 %v3047
    %3235 = vmatpush1.bf16.msra.mxu0 %v3046
    %3236 = vmatprep.subr.bf16.mxu0 %v3050
    %3237 = vmatpush1.bf16.msra.mxu0 %v3049
    %3238 = vmatprep.subr.bf16.mxu0 %v3053
    %3239 = vmatpush1.bf16.msra.mxu0 %v3052
    %3240 = vmatprep.subr.bf16.mxu0 %v3056
    %3241 = vmatpush1.bf16.msra.mxu0 %v3055
    %3242 = vmatprep.subr.bf16.mxu0 %v3059
    %3243 = vmatpush1.bf16.msra.mxu0 %v3058
    %3244 = vmatprep.subr.bf16.mxu0 %v3062
    %3245 = vmatpush1.bf16.msra.mxu0 %v3061
    %3246 = vmatprep.subr.bf16.mxu0 %v3065
    %3247 = vmatpush1.bf16.msra.mxu0 %v3064
    %3248 = vmatprep.subr.bf16.mxu0 %v3068
    %3249 = vmatpush1.bf16.msra.mxu0 %v3067
    %3250 = vmatprep.subr.bf16.mxu0 %v3071
    %3251 = vmatpush1.bf16.msra.mxu0 %v3070
    %3252 = vmatprep.subr.bf16.mxu0 %v3074
    %3253 = vmatpush1.bf16.msra.mxu0 %v3073
    %3254 = vmatprep.subr.bf16.mxu0 %v3077
    %3255 = vmatpush1.bf16.msra.mxu0 %v3076
    %3256 = vmatprep.subr.bf16.mxu0 %v3080
    %3257 = vmatpush1.bf16.msra.mxu0 %v3079
    %3258 = vmatprep.mubr.bf16.mxu0 %v2566
    %3259 = vmatmul.mubr.bf16.gmra.mrb[0].mxu0 %v2565
    %v3260 = vpop.f32.mrb[0].mxu0
    %v3261 = vadd.f32 %v2702, %v3260
    %v3262 = vpop.f32.mrb[0].mxu0
    %v3263 = vadd.f32 %v2706, %v3262
    %v3264 = vpop.f32.mrb[0].mxu0
    %v3265 = vadd.f32 %v2702, %v3264
    %v3266 = vpop.f32.mrb[0].mxu0
    %v3267 = vadd.f32 %v2706, %v3266
    %3268 = vdwg.mxu0
    %3269 = vmatprep.subr.bf16.mxu0 %v3083
    %3270 = vmatpush1.bf16.msra.mxu0 %v3082
    %3271 = vmatprep.subr.bf16.mxu0 %v3086
    %3272 = vmatpush1.bf16.msra.mxu0 %v3085
    %3273 = vmatprep.subr.bf16.mxu0 %v3089
    %3274 = vmatpush1.bf16.msra.mxu0 %v3088
    %3275 = vmatprep.subr.bf16.mxu0 %v3092
    %3276 = vmatpush1.bf16.msra.mxu0 %v3091
    %3277 = vmatprep.subr.bf16.mxu0 %v3095
    %3278 = vmatpush1.bf16.msra.mxu0 %v3094
    %3279 = vmatprep.subr.bf16.mxu0 %v3098
    %3280 = vmatpush1.bf16.msra.mxu0 %v3097
    %3281 = vmatprep.subr.bf16.mxu0 %v3101
    %3282 = vmatpush1.bf16.msra.mxu0 %v3100
    %3283 = vmatprep.subr.bf16.mxu0 %v3104
    %3284 = vmatpush1.bf16.msra.mxu0 %v3103
    %3285 = vmatprep.subr.bf16.mxu0 %v3107
    %3286 = vmatpush1.bf16.msra.mxu0 %v3106
    %3287 = vmatprep.subr.bf16.mxu0 %v3110
    %3288 = vmatpush1.bf16.msra.mxu0 %v3109
    %3289 = vmatprep.subr.bf16.mxu0 %v3113
    %3290 = vmatpush1.bf16.msra.mxu0 %v3112
    %3291 = vmatprep.subr.bf16.mxu0 %v3116
    %3292 = vmatpush1.bf16.msra.mxu0 %v3115
    %3293 = vmatprep.subr.bf16.mxu0 %v3119
    %3294 = vmatpush1.bf16.msra.mxu0 %v3118
    %3295 = vmatprep.subr.bf16.mxu0 %v3122
    %3296 = vmatpush1.bf16.msra.mxu0 %v3121
    %3297 = vmatprep.subr.bf16.mxu0 %v3125
    %3298 = vmatpush1.bf16.msra.mxu0 %v3124
    %3299 = vmatprep.subr.bf16.mxu0 %v3128
    %3300 = vmatpush1.bf16.msra.mxu0 %v3127
    %3301 = vmatprep.mubr.bf16.mxu0 %v2568
    %3302 = vmatmul.mubr.bf16.gmra.mrb[0].mxu0 %v2567
    %v3303 = vpop.f32.mrb[0].mxu0
    %v3304 = vadd.f32 %v3261, %v3303
    %v3305 = vpop.f32.mrb[0].mxu0
    %v3306 = vadd.f32 %v3263, %v3305
    %v3307 = vpop.f32.mrb[0].mxu0
    %v3308 = vadd.f32 %v3265, %v3307
    %v3309 = vpop.f32.mrb[0].mxu0
    %v3310 = vadd.f32 %v3267, %v3309
    %3311 = vdwg.mxu0
    %3312 = vmatprep.subr.bf16.mxu0 0
    %3313 = vmatpush1.bf16.msra.mxu0 %v3036
    %3314 = vmatprep.subr.bf16.mxu0 0
    %3315 = vmatpush1.bf16.msra.mxu0 %v3039
    %3316 = vmatprep.subr.bf16.mxu0 0
    %3317 = vmatpush1.bf16.msra.mxu0 %v3042
    %3318 = vmatprep.subr.bf16.mxu0 0
    %3319 = vmatpush1.bf16.msra.mxu0 %v3045
    %3320 = vmatprep.subr.bf16.mxu0 0
    %3321 = vmatpush1.bf16.msra.mxu0 %v3048
    %3322 = vmatprep.subr.bf16.mxu0 0
    %3323 = vmatpush1.bf16.msra.mxu0 %v3051
    %3324 = vmatprep.subr.bf16.mxu0 0
    %3325 = vmatpush1.bf16.msra.mxu0 %v3054
    %3326 = vmatprep.subr.bf16.mxu0 0
    %3327 = vmatpush1.bf16.msra.mxu0 %v3057
    %3328 = vmatprep.subr.bf16.mxu0 0
    %3329 = vmatpush1.bf16.msra.mxu0 %v3060
    %3330 = vmatprep.subr.bf16.mxu0 0
    %3331 = vmatpush1.bf16.msra.mxu0 %v3063
    %3332 = vmatprep.subr.bf16.mxu0 0
    %3333 = vmatpush1.bf16.msra.mxu0 %v3066
    %3334 = vmatprep.subr.bf16.mxu0 0
    %3335 = vmatpush1.bf16.msra.mxu0 %v3069
    %3336 = vmatprep.subr.bf16.mxu0 0
    %3337 = vmatpush1.bf16.msra.mxu0 %v3072
    %3338 = vmatprep.subr.bf16.mxu0 0
    %3339 = vmatpush1.bf16.msra.mxu0 %v3075
    %3340 = vmatprep.subr.bf16.mxu0 0
    %3341 = vmatpush1.bf16.msra.mxu0 %v3078
    %3342 = vmatprep.subr.bf16.mxu0 0
    %3343 = vmatpush1.bf16.msra.mxu0 %v3081
    %3344 = vmatprep.mubr.bf16.mxu0 %v2566
    %3345 = vmatmul.mubr.bf16.gmra.mrb[0].mxu0 %v2565
    %v3346 = vpop.f32.mrb[0].mxu0
    %v3347 = vadd.f32 %v2710, %v3346
    %v3348 = vpop.f32.mrb[0].mxu0
    %v3349 = vpop.f32.mrb[0].mxu0
    %v3350 = vadd.f32 %v2710, %v3349
    %v3351 = vpop.f32.mrb[0].mxu0
    %3352 = vdwg.mxu0
    %3353 = vmatprep.subr.bf16.mxu0 0
    %3354 = vmatpush1.bf16.msra.mxu0 %v3084
    %3355 = vmatprep.subr.bf16.mxu0 0
    %3356 = vmatpush1.bf16.msra.mxu0 %v3087
    %3357 = vmatprep.subr.bf16.mxu0 0
    %3358 = vmatpush1.bf16.msra.mxu0 %v3090
    %3359 = vmatprep.subr.bf16.mxu0 0
    %3360 = vmatpush1.bf16.msra.mxu0 %v3093
    %3361 = vmatprep.subr.bf16.mxu0 0
    %3362 = vmatpush1.bf16.msra.mxu0 %v3096
    %3363 = vmatprep.subr.bf16.mxu0 0
    %3364 = vmatpush1.bf16.msra.mxu0 %v3099
    %3365 = vmatprep.subr.bf16.mxu0 0
    %3366 = vmatpush1.bf16.msra.mxu0 %v3102
    %3367 = vmatprep.subr.bf16.mxu0 0
    %3368 = vmatpush1.bf16.msra.mxu0 %v3105
    %3369 = vmatprep.subr.bf16.mxu0 0
    %3370 = vmatpush1.bf16.msra.mxu0 %v3108
    %3371 = vmatprep.subr.bf16.mxu0 0
    %3372 = vmatpush1.bf16.msra.mxu0 %v3111
    %3373 = vmatprep.subr.bf16.mxu0 0
    %3374 = vmatpush1.bf16.msra.mxu0 %v3114
    %3375 = vmatprep.subr.bf16.mxu0 0
    %3376 = vmatpush1.bf16.msra.mxu0 %v3117
    %3377 = vmatprep.subr.bf16.mxu0 0
    %3378 = vmatpush1.bf16.msra.mxu0 %v3120
    %3379 = vmatprep.subr.bf16.mxu0 0
    %3380 = vmatpush1.bf16.msra.mxu0 %v3123
    %3381 = vmatprep.subr.bf16.mxu0 0
    %3382 = vmatpush1.bf16.msra.mxu0 %v3126
    %3383 = vmatprep.subr.bf16.mxu0 0
    %3384 = vmatpush1.bf16.msra.mxu0 %v3129
    %3385 = vmatprep.mubr.bf16.mxu0 %v2568
    %3386 = vmatmul.mubr.bf16.gmra.mrb[0].mxu0 %v2567
    %v3387 = vpop.f32.mrb[0].mxu0
    %v3388 = vadd.f32 %v3347, %v3387
    %v3389 = vpop.f32.mrb[0].mxu0
    %v3390 = vpop.f32.mrb[0].mxu0
    %v3391 = vadd.f32 %v3350, %v3390
    %v3392 = vpop.f32.mrb[0].mxu0
    %3393 = vdwg.mxu0
    %v3394 = vxor.u32 %v3304, 2147483648
    %v3395 = vxor.u32 %v3306, 2147483648
    %v3396 = vxor.u32 %v3388, 2147483648
    %v3397 = vxor.u32 %v3308, 2147483648
    %v3398 = vxor.u32 %v3310, 2147483648
    %v3399 = vxor.u32 %v3391, 2147483648
    %v3400 = vmul.f32 %v3394, 1.442695
    %v3401 = vpow.pop %v3400
    %v3402 = vmul.f32 %v3395, 1.442695
    %v3403 = vpow.pop %v3402
    %v3404 = vmul.f32 %v3396, 1.442695
    %v3405 = vpow.pop %v3404
    %v3406 = vmul.f32 %v3397, 1.442695
    %v3407 = vpow.pop %v3406
    %v3408 = vmul.f32 %v3398, 1.442695
    %v3409 = vpow.pop %v3408
    %v3410 = vmul.f32 %v3399, 1.442695
    %v3411 = vpow.pop %v3410
    %v3412 = vadd.f32 %v3401, 1.0
    %v3413 = vadd.f32 %v3403, 1.0
    %v3414 = vadd.f32 %v3405, 1.0
    %v3415 = vadd.f32 %v3407, 1.0
    %v3416 = vadd.f32 %v3409, 1.0
    %v3417 = vadd.f32 %v3411, 1.0
    %v3418 = vrcp.pop %v3412
    %v3419 = vmul.f32 1.0, %v3418
    %v3420 = vrcp.pop %v3413
    %v3421 = vmul.f32 1.0, %v3420
    %v3422 = vrcp.pop %v3414
    %v3423 = vmul.f32 1.0, %v3422
    %v3424 = vrcp.pop %v3415
    %v3425 = vmul.f32 1.0, %v3424
    %v3426 = vrcp.pop %v3416
    %v3427 = vmul.f32 1.0, %v3426
    %v3428 = vrcp.pop %v3417
    %v3429 = vmul.f32 1.0, %v3428
    %3430 = vst [vmem:[#allocation2] sm:$0xff] %v3419
    %3431 = vst [vmem:[#allocation2 + $0x8] sm:$0xff] %v3421
    %3432 = vst [vmem:[#allocation2 + $0x10] sm:$0xff] %v3423
    %3433 = vst [vmem:[#allocation2 + $0x18] sm:$0xff] %v3425
    %3434 = vst [vmem:[#allocation2 + $0x20] sm:$0xff] %v3427
    %3435 = vst [vmem:[#allocation2 + $0x28] sm:$0xff] %v3429
    // Predicated region
    $region86: #{autoencoder_forward.1} parent=1 // pred_check
      _
    $region87: #{autoencoder_forward.1} parent=1 // pred_check_branch
      %3437 = sbr.rel (0) target = $region89
    $region88: #{autoencoder_forward.1} parent=1 // pred_region
      _
    $region89: #{autoencoder_forward.1} parent=1 // pred_fallthru
      _
    // Predicated region
    $region90: #{autoencoder_forward.1} parent=1 // pred_check
      _
    $region91: #{autoencoder_forward.1} parent=1 // pred_check_branch
      %3439 = sbr.rel (0) target = $region93
    $region92: #{autoencoder_forward.1} parent=1 // pred_region
      %s3441 = ssub.s32 768, 768
      %3442 = vsyncadd [#allocation3], %s3441
      %s3443 = sshll.u32 [#allocation2], 4
      %s3444 = int_to_ptr.vmem [resolvable:$true] %s3443
      %3449 = dma.vmem_to_hbm [thread:$0]  %s3444, 768, %s22, [#allocation3], 384, 384, 24
    $region93: #{autoencoder_forward.1} parent=1 // pred_fallthru
      _
    // Predicated region
    $region94: #{autoencoder_forward.1} parent=1 // pred_check
      _
    $region95: #{autoencoder_forward.1} parent=1 // pred_check_branch
      %3451 = sbr.rel (0) target = $region97
    $region96: #{autoencoder_forward.1} parent=1 // pred_region
      _
    $region97: #{autoencoder_forward.1} parent=1 // pred_fallthru
      _
    // Predicated region
    $region98: #{autoencoder_forward.1} parent=1 // pred_check
      _
    $region99: #{autoencoder_forward.1} parent=1 // pred_check_branch
      %3453 = sbr.rel (0) target = $region101
    $region100: #{autoencoder_forward.1} parent=1 // pred_region
      %3454 = dma.done [#allocation3], 768
    $region101: #{autoencoder_forward.1} parent=1 // pred_fallthru
      _
    %3455 = vsyncpa [#allocation3], 1

</llo_original>
